<compile_context>
chip_gen: v7x
topology: tpu7x:2x2x1
jax: 0.10.0
libtpu: 0.0.40
codegen_flags: <defaults>
</compile_context>

<pallas_src>
import functools

import jax
import jax.numpy as jnp
from jax import lax
from jax.experimental import pallas as pl
from jax.experimental.pallas import tpu as pltpu


# ----------------------------------------------------------------------------
# Pallas kernel: one (batch-block, time-chunk) tile of the REN rollout.
# Grid = (n_batch_blocks, n_chunks); axis 1 iterates time chunks sequentially
# ("arbitrary") and carries the recurrent state in a VMEM scratch; axis 0 is
# "parallel" over independent batch blocks (v7x megacore).
#
#   pu_ref   : (t_chunk, B, nl+nx)  precomputed  u_t @ [D12^T/Lam | B2^T E^{-T}]
#   x0_ref   : (B, nx)              initial internal state
#   wrx_ref  : (nx, nl+nx)          [C1^T/Lam | F^T E^{-T}]
#   wrw_ref  : (nl, nx)             B1^T E^{-T}
#   d11s_ref : (nl, nl)             strictly-lower-tri D11, rows scaled by 1/Lam
#   xn_ref   : (t_chunk, B, nx)     out: post-update state x_{t+1}
#   w_ref    : (t_chunk, B, nl)     out: nonlinear block output w_t
#   x_scr    : (B, nx)              VMEM scratch, persists across time chunks
#
# Per step:  pre   = pu[s] + x @ W_rec_x                     (1 MXU dispatch)
#            w     = serial tanh forward substitution (D11 strictly lower-tri)
#            x_new = pre[:, nl:] + w @ W_rec_w                (1 MXU dispatch)
# ----------------------------------------------------------------------------
def ren_chunk_kernel(pu_ref, x0_ref, wrx_ref, wrw_ref, d11s_ref,
                     xn_ref, w_ref, x_scr, *, mxu_dtype, unroll):
    @pl.when(pl.program_id(1) == 0)
    def _init_state():
        x_scr[...] = x0_ref[...]

    t_chunk = pu_ref.shape[0]
    bsz = x0_ref.shape[0]
    dim_nl = d11s_ref.shape[0]

    # Loaded once per chunk (loop-invariant).
    wrx = wrx_ref[...].astype(mxu_dtype)          # (nx, nl+nx)
    wrw = wrw_ref[...].astype(mxu_dtype)          # (nl, nx)
    col_ids = lax.broadcasted_iota(jnp.int32, (1, dim_nl), 1)

    def step(s, x):
        # Only the true recurrence columns [v_scaled | x_new]; the u-dependent
        # part was precomputed in the wrapper (off the serial critical path).
        pre = pu_ref[s] + jnp.dot(x.astype(mxu_dtype), wrx,
                                  preferred_element_type=jnp.float32)
        vxs = pre[:, :dim_nl]                                  # (B, nl)

        # Serial forward substitution of the implicit layer.
        # 1/Lam is pre-folded into vxs and D11s, so no divide on the chain.
        # D11 rows are re-read from VMEM per i (vld is free vs. the tanh chain).
        # TODO(synk): for dim_nl >= 32, block this solve (prefix contribution
        # via a small matmul per 8-column block, short serial tail per block).
        w = jnp.zeros((bsz, dim_nl), jnp.float32)
        for i in range(dim_nl):                                # static unroll
            row = d11s_ref[i:i + 1, :]                         # (1, nl)
            v_i = vxs[:, i:i + 1] + jnp.sum(w * row, axis=-1, keepdims=True)
            w = jnp.where(col_ids == i, jnp.tanh(v_i), w)

        x_new = pre[:, dim_nl:] + jnp.dot(w.astype(mxu_dtype), wrw,
                                          preferred_element_type=jnp.float32)
        xn_ref[s] = x_new
        w_ref[s] = w
        return x_new

    x_scr[...] = lax.fori_loop(0, t_chunk, step, x_scr[...], unroll=unroll)


# ----------------------------------------------------------------------------
# Plain-JAX parameter derivation (mirrors _update_model_param exactly).
# ----------------------------------------------------------------------------
def derive_ren_matrices(params, *, dim_internal, dim_nl,
                        epsilon=1e-3, contraction_rate_lb=1.0):
    X, Y = params["X"], params["Y"]
    n = 2 * dim_internal + dim_nl
    H = X.T @ X + epsilon * jnp.eye(n, dtype=X.dtype)
    nx, nl = dim_internal, dim_nl
    H11 = H[:nx, :nx]
    H21 = H[nx:nx + nl, :nx]
    H22 = H[nx:nx + nl, nx:nx + nl]
    H31 = H[nx + nl:, :nx]
    H32 = H[nx + nl:, nx:nx + nl]
    H33 = H[nx + nl:, nx + nl:]
    F = H31
    B1 = H32
    E = 0.5 * (H11 + contraction_rate_lb * H33 + Y - Y.T)
    # TODO(synk): matrix inverse has no Pallas primitive; kept in plain-JAX param setup.
    E_inv = jnp.linalg.inv(E)
    Lam = 0.5 * jnp.diag(H22)
    D11 = -jnp.tril(H22, k=-1)
    C1 = -H21
    return dict(F=F, B1=B1, E_inv=E_inv, Lam=Lam, D11=D11, C1=C1,
                B2=params["B2"], C2=params["C2"], D21=params["D21"],
                D22=params["D22"], D12=params["D12"])


def derive_fused_weights(params, *, dim_internal, dim_nl,
                         epsilon=1e-3, contraction_rate_lb=1.0):
    """Fold 1/Lam and E^{-T} into stacked weights so the kernel does 2 dots/step."""
    m = derive_ren_matrices(params, dim_internal=dim_internal, dim_nl=dim_nl,
                            epsilon=epsilon,
                            contraction_rate_lb=contraction_rate_lb)
    f32 = jnp.float32
    inv_lam = (1.0 / m["Lam"]).astype(f32)                       # (nl,)
    EinvT = m["E_inv"].T.astype(f32)

    W_rec_x = jnp.concatenate(                                   # (nx, nl+nx)
        [m["C1"].T.astype(f32) * inv_lam[None, :],
         m["F"].T.astype(f32) @ EinvT], axis=1)
    W_rec_u = jnp.concatenate(                                   # (din, nl+nx)
        [m["D12"].T.astype(f32) * inv_lam[None, :],
         m["B2"].T.astype(f32) @ EinvT], axis=1)
    W_rec_w = m["B1"].T.astype(f32) @ EinvT                      # (nl, nx)
    D11s = m["D11"].astype(f32) * inv_lam[:, None]               # (nl, nl)
    return dict(W_rec_x=W_rec_x, W_rec_u=W_rec_u, W_rec_w=W_rec_w, D11s=D11s,
                C2=m["C2"].astype(f32), D21=m["D21"].astype(f32),
                D22=m["D22"].astype(f32))


# ----------------------------------------------------------------------------
# Wrapper == ContractiveREN.run / __call__ :  (B, T, dim_in) -> (B, T, dim_out)
# ----------------------------------------------------------------------------
def ren_run(u_in, params, *, dim_internal, dim_nl,
            epsilon=1e-3, contraction_rate_lb=1.0, t_chunk=None,
            mxu_dtype=jnp.float32, batch_block=None):
    fw = derive_fused_weights(params, dim_internal=dim_internal, dim_nl=dim_nl,
                              epsilon=epsilon,
                              contraction_rate_lb=contraction_rate_lb)
    B, T, dim_in = u_in.shape
    nx, nl = dim_internal, dim_nl
    dim_out = fw["C2"].shape[0]
    f32 = jnp.float32

    # Peeled t = 0: y[0] = x_init @ C2^T  (x_init defaults to zeros).
    x0 = jnp.zeros((B, nx), f32)
    y0 = x0 @ fw["C2"].T                                         # (B, dim_out)
    if T == 1:
        return y0[:, None, :]

    T_body = T - 1
    u_body = u_in[:, :T_body, :].astype(f32)                     # u[T-1] unused

    # Hoisted input projection for the whole horizon (plain XLA, fully parallel
    # over time; off the serial critical path). Produced time-major so the
    # kernel only ever indexes the leading axis.
    pu = jnp.einsum('btd,dc->tbc', u_body, fw["W_rec_u"])        # (T_body, B, nl+nx)

    # VMEM-budgeted chunking: each (t_chunk, B, k) block pads its (B, k) slice
    # to an (8,128) tile -> ~4 KiB per step per array; 3 arrays double-buffered
    # => ~24 KiB/step, so t_chunk=256 stays ~6 MiB (fits v5e/v6e/v7x defaults).
    if t_chunk is None:
        t_chunk = 256
    t_chunk = max(1, min(t_chunk, T_body))
    n_chunks = -(-T_body // t_chunk)
    T_pad = n_chunks * t_chunk
    if T_pad > T_body:
        pu = jnp.pad(pu, ((0, T_pad - T_body), (0, 0), (0, 0)))

    # Batch blocking (v7x megacore). Blocks must equal B or be a multiple of 8
    # (sublane constraint); otherwise fall back to a single block.
    b_blk = B if batch_block is None else batch_block
    if (B % b_blk != 0) or (b_blk != B and b_blk % 8 != 0):
        b_blk = B
    n_b = B // b_blk

    W_rec_x, W_rec_w, D11s = fw["W_rec_x"], fw["W_rec_w"], fw["D11s"]
    unroll = max(1, min(8, t_chunk))

    grid_spec = pltpu.PrefetchScalarGridSpec(
        num_scalar_prefetch=0,
        grid=(n_b, n_chunks),
        in_specs=[
            pl.BlockSpec((t_chunk, b_blk, nl + nx), lambda b, c: (c, b, 0)),  # pu
            pl.BlockSpec((b_blk, nx), lambda b, c: (b, 0)),                   # x0
            pl.BlockSpec(W_rec_x.shape, lambda b, c: (0, 0)),                 # W_rec_x
            pl.BlockSpec(W_rec_w.shape, lambda b, c: (0, 0)),                 # W_rec_w
            pl.BlockSpec(D11s.shape, lambda b, c: (0, 0)),                    # D11s
        ],
        out_specs=[
            pl.BlockSpec((t_chunk, b_blk, nx), lambda b, c: (c, b, 0)),       # x_{t+1}
            pl.BlockSpec((t_chunk, b_blk, nl), lambda b, c: (c, b, 0)),       # w_t
        ],
        scratch_shapes=[pltpu.VMEM((b_blk, nx), f32)],                        # carried state
    )

    kernel = functools.partial(ren_chunk_kernel, mxu_dtype=mxu_dtype,
                               unroll=unroll)

    xn_seq, w_seq = pl.pallas_call(
        kernel,
        out_shape=(jax.ShapeDtypeStruct((T_pad, B, nx), f32),
                   jax.ShapeDtypeStruct((T_pad, B, nl), f32)),
        grid_spec=grid_spec,
        compiler_params=pltpu.CompilerParams(
            dimension_semantics=("parallel", "arbitrary"),    # batch || , time serial
            vmem_limit_bytes=32 * 1024 * 1024),
    )(pu, x0, W_rec_x, W_rec_w, D11s)

    # Deferred output projection (dense, fully parallel over time; plain XLA).
    y_body = (jnp.einsum('tbx,ox->bto', xn_seq[:T_body], fw["C2"])
              + jnp.einsum('tbw,ow->bto', w_seq[:T_body], fw["D21"])
              + jnp.einsum('btd,od->bto', u_body, fw["D22"]))
    return jnp.concatenate([y0[:, None, :], y_body], axis=1)    # (B, T, dim_out)


# ----------------------------------------------------------------------------
# Pure-JAX reference (mirrors the PyTorch forward/run loops) for verification.
# y[0] = x_init @ C2^T  (== y_init buffer of the module; zeros for zero init).
# ----------------------------------------------------------------------------
def ren_run_reference(u_in, params, *, dim_internal, dim_nl,
                      epsilon=1e-3, contraction_rate_lb=1.0):
    m = derive_ren_matrices(params, dim_internal=dim_internal, dim_nl=dim_nl,
                            epsilon=epsilon,
                            contraction_rate_lb=contraction_rate_lb)
    B, T, _ = u_in.shape
    x = jnp.zeros((B, dim_internal), jnp.float32)
    ys = [x @ m["C2"].T]
    for t in range(T - 1):
        ut = u_in[:, t, :].astype(jnp.float32)
        w = jnp.zeros((B, dim_nl), jnp.float32)
        for i in range(dim_nl):
            v = x @ m["C1"][i] + w @ m["D11"][i] + ut @ m["D12"][i]
            w = w.at[:, i].set(jnp.tanh(v / m["Lam"][i]))
        x = (x @ m["F"].T + w @ m["B1"].T + ut @ m["B2"].T) @ m["E_inv"].T
        ys.append(x @ m["C2"].T + w @ m["D21"].T + ut @ m["D22"].T)
    return jnp.stack(ys, axis=1)


if __name__ == "__main__":
    dim_in, dim_out, dim_internal, dim_nl = 4, 3, 8, 8
    batch, horizon = 2, 8
    init_std = 0.5

    key = jax.random.PRNGKey(0)
    ks = jax.random.split(key, 8)
    n_x = 2 * dim_internal + dim_nl
    params = {
        "X":   jax.random.normal(ks[0], (n_x, n_x), jnp.float32) * init_std,
        "Y":   jax.random.normal(ks[1], (dim_internal, dim_internal), jnp.float32) * init_std,
        "B2":  jax.random.normal(ks[2], (dim_internal, dim_in), jnp.float32) * init_std,
        "C2":  jax.random.normal(ks[3], (dim_out, dim_internal), jnp.float32) * init_std,
        "D21": jax.random.normal(ks[4], (dim_out, dim_nl), jnp.float32) * init_std,
        "D22": jax.random.normal(ks[5], (dim_out, dim_in), jnp.float32) * init_std,
        "D12": jax.random.normal(ks[6], (dim_nl, dim_in), jnp.float32) * init_std,
    }
    u_in = jax.random.normal(ks[7], (batch, horizon, dim_in), jnp.float32)

    y_ref = ren_run_reference(u_in, params, dim_internal=dim_internal, dim_nl=dim_nl)

    # Single-chunk run.
    y_out = ren_run(u_in, params, dim_internal=dim_internal, dim_nl=dim_nl)
    y_out = jax.block_until_ready(y_out)
    assert y_out.shape == (batch, horizon, dim_out)
    assert jnp.allclose(y_out, y_ref, rtol=1e-4, atol=1e-4), "mismatch vs reference"

    # Multi-chunk run (exercises padded tail + state carry across chunks).
    y_out2 = ren_run(u_in, params, dim_internal=dim_internal, dim_nl=dim_nl, t_chunk=3)
    y_out2 = jax.block_until_ready(y_out2)
    assert jnp.allclose(y_out2, y_ref, rtol=1e-4, atol=1e-4), "mismatch (chunked)"

    print("KERNEL_OK")
</pallas_src>

<mosaic_0001>
module attributes {stable_mosaic.version = 11 : i64} {
  func.func @ren_chunk_kernel(%arg0: i32, %arg1: i32, %arg2: memref<7x2x16xf32, #tpu.memory_space<vmem>>, %arg3: memref<2x8xf32, #tpu.memory_space<vmem>>, %arg4: memref<8x16xf32, #tpu.memory_space<vmem>>, %arg5: memref<8x8xf32, #tpu.memory_space<vmem>>, %arg6: memref<8x8xf32, #tpu.memory_space<vmem>>, %arg7: memref<7x2x8xf32, #tpu.memory_space<vmem>>, %arg8: memref<7x2x8xf32, #tpu.memory_space<vmem>>, %arg9: memref<2x8xf32, #tpu.memory_space<vmem>>) attributes {dimension_semantics = [#tpu.dimension_semantics<parallel>, #tpu.dimension_semantics<arbitrary>], iteration_bounds = array<i64: 1, 1>, scalar_prefetch = 0 : i64, scratch_operands = 1 : i64, tpu.core_type = #tpu.core_type<tc>, window_params = [{transform_indices = @transform_0, window_bounds = array<i64: 7, 2, 16>}, {transform_indices = @transform_1, window_bounds = array<i64: 2, 8>}, {pipeline_mode = #tpu.pipeline_mode<synchronous>, transform_indices = @transform_2, window_bounds = array<i64: 8, 16>}, {pipeline_mode = #tpu.pipeline_mode<synchronous>, transform_indices = @transform_3, window_bounds = array<i64: 8, 8>}, {pipeline_mode = #tpu.pipeline_mode<synchronous>, transform_indices = @transform_4, window_bounds = array<i64: 8, 8>}, {transform_indices = @transform_5, window_bounds = array<i64: 7, 2, 8>}, {transform_indices = @transform_6, window_bounds = array<i64: 7, 2, 8>}]} {
    %c0_i32 = arith.constant 0 : i32
    %0 = arith.cmpi eq, %arg1, %c0_i32 : i32
    %1 = arith.extui %0 : i1 to i32
    %c0_i32_0 = arith.constant 0 : i32
    %2 = arith.cmpi ne, %1, %c0_i32_0 : i32
    scf.if %2 {
      %c0_288 = arith.constant 0 : index
      %c0_289 = arith.constant 0 : index
      %974 = vector.load %arg3[%c0_288, %c0_289] : memref<2x8xf32, #tpu.memory_space<vmem>>, vector<2x8xf32>
      %c0_290 = arith.constant 0 : index
      %c0_291 = arith.constant 0 : index
      %975 = vector.load %arg9[%c0_290, %c0_291] : memref<2x8xf32, #tpu.memory_space<vmem>>, vector<2x8xf32>
      tpu.vector_store %arg9[%c0_290, %c0_291], %974 {strides = array<i32>} : memref<2x8xf32, #tpu.memory_space<vmem>>, vector<2x8xf32>,
    } else {
    }
    %c0 = arith.constant 0 : index
    %c0_1 = arith.constant 0 : index
    %3 = vector.load %arg4[%c0, %c0_1] : memref<8x16xf32, #tpu.memory_space<vmem>>, vector<8x16xf32>
    %c0_2 = arith.constant 0 : index
    %c0_3 = arith.constant 0 : index
    %4 = vector.load %arg5[%c0_2, %c0_3] : memref<8x8xf32, #tpu.memory_space<vmem>>, vector<8x8xf32>
    %5 = tpu.iota {dimensions = array<i32: 1>} : vector<1x8xi32>
    %c0_4 = arith.constant 0 : index
    %c0_5 = arith.constant 0 : index
    %6 = vector.load %arg9[%c0_4, %c0_5] : memref<2x8xf32, #tpu.memory_space<vmem>>, vector<2x8xf32>
    %c0_i32_6 = arith.constant 0 : i32
    %7 = arith.index_cast %c0_i32_6 : i32 to index
    %c0_7 = arith.constant 0 : index
    %c0_8 = arith.constant 0 : index
    %8 = vector.load %arg2[%7, %c0_7, %c0_8] : memref<7x2x16xf32, #tpu.memory_space<vmem>>, vector<1x2x16xf32>
    %9 = vector.shape_cast %8 : vector<1x2x16xf32> to vector<2x16xf32>
    %cst = arith.constant dense<0.000000e+00> : vector<2x16xf32>
    %10 = tpu.matmul %6, %3, %cst {dimension_numbers = #tpu.dot_dimension_numbers<[1], [0], [0], [1], [0, 0, 1, 1], [], []>} : vector<2x8xf32>, vector<8x16xf32>, vector<2x16xf32> -> vector<2x16xf32>
    %11 = arith.addf %9, %10 : vector<2x16xf32>
    %12 = vector.extract_strided_slice %11 {offsets = [0, 0], sizes = [2, 8], strides = [1, 1]} : vector<2x16xf32> to vector<2x8xf32>
    %cst_9 = arith.constant 0.000000e+00 : f32
    %13 = vector.broadcast %cst_9 : f32 to vector<2x8xf32>
    %c0_10 = arith.constant 0 : index
    %c0_11 = arith.constant 0 : index
    %14 = vector.load %arg6[%c0_10, %c0_11] : memref<8x8xf32, #tpu.memory_space<vmem>>, vector<1x8xf32>
    %15 = vector.extract_strided_slice %12 {offsets = [0, 0], sizes = [2, 1], strides = [1, 1]} : vector<2x8xf32> to vector<2x1xf32>
    %16 = vector.broadcast %14 : vector<1x8xf32> to vector<2x8xf32>
    %17 = arith.mulf %13, %16 : vector<2x8xf32>
    %cst_12 = arith.constant dense<0.000000e+00> : vector<2xf32>
    %18 = vector.multi_reduction <add>, %17, %cst_12 [1] : vector<2x8xf32> to vector<2xf32>
    %19 = vector.shape_cast %18 : vector<2xf32> to vector<2x1xf32>
    %20 = arith.addf %15, %19 : vector<2x1xf32>
    %c0_i32_13 = arith.constant 0 : i32
    %21 = vector.broadcast %c0_i32_13 : i32 to vector<1x8xi32>
    %22 = arith.cmpi eq, %5, %21 : vector<1x8xi32>
    %23 = math.tanh %20 : vector<2x1xf32>
    %24 = vector.shape_cast %22 : vector<1x8xi1> to vector<1x8xi1>
    %25 = vector.broadcast %24 : vector<1x8xi1> to vector<2x8xi1>
    %26 = vector.shape_cast %23 : vector<2x1xf32> to vector<2x1xf32>
    %27 = vector.broadcast %26 : vector<2x1xf32> to vector<2x8xf32>
    %28 = arith.select %25, %27, %13 : vector<2x8xi1>, vector<2x8xf32>
    %c1 = arith.constant 1 : index
    %c0_14 = arith.constant 0 : index
    %29 = vector.load %arg6[%c1, %c0_14] : memref<8x8xf32, #tpu.memory_space<vmem>>, vector<1x8xf32>
    %30 = vector.extract_strided_slice %12 {offsets = [0, 1], sizes = [2, 1], strides = [1, 1]} : vector<2x8xf32> to vector<2x1xf32>
    %31 = vector.broadcast %29 : vector<1x8xf32> to vector<2x8xf32>
    %32 = arith.mulf %28, %31 : vector<2x8xf32>
    %cst_15 = arith.constant dense<0.000000e+00> : vector<2xf32>
    %33 = vector.multi_reduction <add>, %32, %cst_15 [1] : vector<2x8xf32> to vector<2xf32>
    %34 = vector.shape_cast %33 : vector<2xf32> to vector<2x1xf32>
    %35 = arith.addf %30, %34 : vector<2x1xf32>
    %c1_i32 = arith.constant 1 : i32
    %36 = vector.broadcast %c1_i32 : i32 to vector<1x8xi32>
    %37 = arith.cmpi eq, %5, %36 : vector<1x8xi32>
    %38 = math.tanh %35 : vector<2x1xf32>
    %39 = vector.shape_cast %37 : vector<1x8xi1> to vector<1x8xi1>
    %40 = vector.broadcast %39 : vector<1x8xi1> to vector<2x8xi1>
    %41 = vector.shape_cast %38 : vector<2x1xf32> to vector<2x1xf32>
    %42 = vector.broadcast %41 : vector<2x1xf32> to vector<2x8xf32>
    %43 = arith.select %40, %42, %28 : vector<2x8xi1>, vector<2x8xf32>
    %c2 = arith.constant 2 : index
    %c0_16 = arith.constant 0 : index
    %44 = vector.load %arg6[%c2, %c0_16] : memref<8x8xf32, #tpu.memory_space<vmem>>, vector<1x8xf32>
    %45 = vector.extract_strided_slice %12 {offsets = [0, 2], sizes = [2, 1], strides = [1, 1]} : vector<2x8xf32> to vector<2x1xf32>
    %46 = vector.broadcast %44 : vector<1x8xf32> to vector<2x8xf32>
    %47 = arith.mulf %43, %46 : vector<2x8xf32>
    %cst_17 = arith.constant dense<0.000000e+00> : vector<2xf32>
    %48 = vector.multi_reduction <add>, %47, %cst_17 [1] : vector<2x8xf32> to vector<2xf32>
    %49 = vector.shape_cast %48 : vector<2xf32> to vector<2x1xf32>
    %50 = arith.addf %45, %49 : vector<2x1xf32>
    %c2_i32 = arith.constant 2 : i32
    %51 = vector.broadcast %c2_i32 : i32 to vector<1x8xi32>
    %52 = arith.cmpi eq, %5, %51 : vector<1x8xi32>
    %53 = math.tanh %50 : vector<2x1xf32>
    %54 = vector.shape_cast %52 : vector<1x8xi1> to vector<1x8xi1>
    %55 = vector.broadcast %54 : vector<1x8xi1> to vector<2x8xi1>
    %56 = vector.shape_cast %53 : vector<2x1xf32> to vector<2x1xf32>
    %57 = vector.broadcast %56 : vector<2x1xf32> to vector<2x8xf32>
    %58 = arith.select %55, %57, %43 : vector<2x8xi1>, vector<2x8xf32>
    %c3 = arith.constant 3 : index
    %c0_18 = arith.constant 0 : index
    %59 = vector.load %arg6[%c3, %c0_18] : memref<8x8xf32, #tpu.memory_space<vmem>>, vector<1x8xf32>
    %60 = vector.extract_strided_slice %12 {offsets = [0, 3], sizes = [2, 1], strides = [1, 1]} : vector<2x8xf32> to vector<2x1xf32>
    %61 = vector.broadcast %59 : vector<1x8xf32> to vector<2x8xf32>
    %62 = arith.mulf %58, %61 : vector<2x8xf32>
    %cst_19 = arith.constant dense<0.000000e+00> : vector<2xf32>
    %63 = vector.multi_reduction <add>, %62, %cst_19 [1] : vector<2x8xf32> to vector<2xf32>
    %64 = vector.shape_cast %63 : vector<2xf32> to vector<2x1xf32>
    %65 = arith.addf %60, %64 : vector<2x1xf32>
    %c3_i32 = arith.constant 3 : i32
    %66 = vector.broadcast %c3_i32 : i32 to vector<1x8xi32>
    %67 = arith.cmpi eq, %5, %66 : vector<1x8xi32>
    %68 = math.tanh %65 : vector<2x1xf32>
    %69 = vector.shape_cast %67 : vector<1x8xi1> to vector<1x8xi1>
    %70 = vector.broadcast %69 : vector<1x8xi1> to vector<2x8xi1>
    %71 = vector.shape_cast %68 : vector<2x1xf32> to vector<2x1xf32>
    %72 = vector.broadcast %71 : vector<2x1xf32> to vector<2x8xf32>
    %73 = arith.select %70, %72, %58 : vector<2x8xi1>, vector<2x8xf32>
    %c4 = arith.constant 4 : index
    %c0_20 = arith.constant 0 : index
    %74 = vector.load %arg6[%c4, %c0_20] : memref<8x8xf32, #tpu.memory_space<vmem>>, vector<1x8xf32>
    %75 = vector.extract_strided_slice %12 {offsets = [0, 4], sizes = [2, 1], strides = [1, 1]} : vector<2x8xf32> to vector<2x1xf32>
    %76 = vector.broadcast %74 : vector<1x8xf32> to vector<2x8xf32>
    %77 = arith.mulf %73, %76 : vector<2x8xf32>
    %cst_21 = arith.constant dense<0.000000e+00> : vector<2xf32>
    %78 = vector.multi_reduction <add>, %77, %cst_21 [1] : vector<2x8xf32> to vector<2xf32>
    %79 = vector.shape_cast %78 : vector<2xf32> to vector<2x1xf32>
    %80 = arith.addf %75, %79 : vector<2x1xf32>
    %c4_i32 = arith.constant 4 : i32
    %81 = vector.broadcast %c4_i32 : i32 to vector<1x8xi32>
    %82 = arith.cmpi eq, %5, %81 : vector<1x8xi32>
    %83 = math.tanh %80 : vector<2x1xf32>
    %84 = vector.shape_cast %82 : vector<1x8xi1> to vector<1x8xi1>
    %85 = vector.broadcast %84 : vector<1x8xi1> to vector<2x8xi1>
    %86 = vector.shape_cast %83 : vector<2x1xf32> to vector<2x1xf32>
    %87 = vector.broadcast %86 : vector<2x1xf32> to vector<2x8xf32>
    %88 = arith.select %85, %87, %73 : vector<2x8xi1>, vector<2x8xf32>
    %c5 = arith.constant 5 : index
    %c0_22 = arith.constant 0 : index
    %89 = vector.load %arg6[%c5, %c0_22] : memref<8x8xf32, #tpu.memory_space<vmem>>, vector<1x8xf32>
    %90 = vector.extract_strided_slice %12 {offsets = [0, 5], sizes = [2, 1], strides = [1, 1]} : vector<2x8xf32> to vector<2x1xf32>
    %91 = vector.broadcast %89 : vector<1x8xf32> to vector<2x8xf32>
    %92 = arith.mulf %88, %91 : vector<2x8xf32>
    %cst_23 = arith.constant dense<0.000000e+00> : vector<2xf32>
    %93 = vector.multi_reduction <add>, %92, %cst_23 [1] : vector<2x8xf32> to vector<2xf32>
    %94 = vector.shape_cast %93 : vector<2xf32> to vector<2x1xf32>
    %95 = arith.addf %90, %94 : vector<2x1xf32>
    %c5_i32 = arith.constant 5 : i32
    %96 = vector.broadcast %c5_i32 : i32 to vector<1x8xi32>
    %97 = arith.cmpi eq, %5, %96 : vector<1x8xi32>
    %98 = math.tanh %95 : vector<2x1xf32>
    %99 = vector.shape_cast %97 : vector<1x8xi1> to vector<1x8xi1>
    %100 = vector.broadcast %99 : vector<1x8xi1> to vector<2x8xi1>
    %101 = vector.shape_cast %98 : vector<2x1xf32> to vector<2x1xf32>
    %102 = vector.broadcast %101 : vector<2x1xf32> to vector<2x8xf32>
    %103 = arith.select %100, %102, %88 : vector<2x8xi1>, vector<2x8xf32>
    %c6 = arith.constant 6 : index
    %c0_24 = arith.constant 0 : index
    %104 = vector.load %arg6[%c6, %c0_24] : memref<8x8xf32, #tpu.memory_space<vmem>>, vector<1x8xf32>
    %105 = vector.extract_strided_slice %12 {offsets = [0, 6], sizes = [2, 1], strides = [1, 1]} : vector<2x8xf32> to vector<2x1xf32>
    %106 = vector.broadcast %104 : vector<1x8xf32> to vector<2x8xf32>
    %107 = arith.mulf %103, %106 : vector<2x8xf32>
    %cst_25 = arith.constant dense<0.000000e+00> : vector<2xf32>
    %108 = vector.multi_reduction <add>, %107, %cst_25 [1] : vector<2x8xf32> to vector<2xf32>
    %109 = vector.shape_cast %108 : vector<2xf32> to vector<2x1xf32>
    %110 = arith.addf %105, %109 : vector<2x1xf32>
    %c6_i32 = arith.constant 6 : i32
    %111 = vector.broadcast %c6_i32 : i32 to vector<1x8xi32>
    %112 = arith.cmpi eq, %5, %111 : vector<1x8xi32>
    %113 = math.tanh %110 : vector<2x1xf32>
    %114 = vector.shape_cast %112 : vector<1x8xi1> to vector<1x8xi1>
    %115 = vector.broadcast %114 : vector<1x8xi1> to vector<2x8xi1>
    %116 = vector.shape_cast %113 : vector<2x1xf32> to vector<2x1xf32>
    %117 = vector.broadcast %116 : vector<2x1xf32> to vector<2x8xf32>
    %118 = arith.select %115, %117, %103 : vector<2x8xi1>, vector<2x8xf32>
    %c7 = arith.constant 7 : index
    %c0_26 = arith.constant 0 : index
    %119 = vector.load %arg6[%c7, %c0_26] : memref<8x8xf32, #tpu.memory_space<vmem>>, vector<1x8xf32>
    %120 = vector.extract_strided_slice %12 {offsets = [0, 7], sizes = [2, 1], strides = [1, 1]} : vector<2x8xf32> to vector<2x1xf32>
    %121 = vector.broadcast %119 : vector<1x8xf32> to vector<2x8xf32>
    %122 = arith.mulf %118, %121 : vector<2x8xf32>
    %cst_27 = arith.constant dense<0.000000e+00> : vector<2xf32>
    %123 = vector.multi_reduction <add>, %122, %cst_27 [1] : vector<2x8xf32> to vector<2xf32>
    %124 = vector.shape_cast %123 : vector<2xf32> to vector<2x1xf32>
    %125 = arith.addf %120, %124 : vector<2x1xf32>
    %c7_i32 = arith.constant 7 : i32
    %126 = vector.broadcast %c7_i32 : i32 to vector<1x8xi32>
    %127 = arith.cmpi eq, %5, %126 : vector<1x8xi32>
    %128 = math.tanh %125 : vector<2x1xf32>
    %129 = vector.shape_cast %127 : vector<1x8xi1> to vector<1x8xi1>
    %130 = vector.broadcast %129 : vector<1x8xi1> to vector<2x8xi1>
    %131 = vector.shape_cast %128 : vector<2x1xf32> to vector<2x1xf32>
    %132 = vector.broadcast %131 : vector<2x1xf32> to vector<2x8xf32>
    %133 = arith.select %130, %132, %118 : vector<2x8xi1>, vector<2x8xf32>
    %134 = vector.extract_strided_slice %11 {offsets = [0, 8], sizes = [2, 8], strides = [1, 1]} : vector<2x16xf32> to vector<2x8xf32>
    %cst_28 = arith.constant dense<0.000000e+00> : vector<2x8xf32>
    %135 = tpu.matmul %133, %4, %cst_28 {dimension_numbers = #tpu.dot_dimension_numbers<[1], [0], [0], [1], [0, 0, 1, 1], [], []>} : vector<2x8xf32>, vector<8x8xf32>, vector<2x8xf32> -> vector<2x8xf32>
    %136 = arith.addf %134, %135 : vector<2x8xf32>
    %137 = arith.index_cast %c0_i32_6 : i32 to index
    %c0_29 = arith.constant 0 : index
    %c0_30 = arith.constant 0 : index
    %138 = vector.load %arg7[%137, %c0_29, %c0_30] : memref<7x2x8xf32, #tpu.memory_space<vmem>>, vector<1x2x8xf32>
    %139 = vector.shape_cast %138 : vector<1x2x8xf32> to vector<2x8xf32>
    %140 = vector.shape_cast %136 : vector<2x8xf32> to vector<1x2x8xf32>
    tpu.vector_store %arg7[%137, %c0_29, %c0_30], %140 {strides = array<i32>} : memref<7x2x8xf32, #tpu.memory_space<vmem>>, vector<1x2x8xf32>,
    %141 = arith.index_cast %c0_i32_6 : i32 to index
    %c0_31 = arith.constant 0 : index
    %c0_32 = arith.constant 0 : index
    %142 = vector.load %arg8[%141, %c0_31, %c0_32] : memref<7x2x8xf32, #tpu.memory_space<vmem>>, vector<1x2x8xf32>
    %143 = vector.shape_cast %142 : vector<1x2x8xf32> to vector<2x8xf32>
    %144 = vector.shape_cast %133 : vector<2x8xf32> to vector<1x2x8xf32>
    tpu.vector_store %arg8[%141, %c0_31, %c0_32], %144 {strides = array<i32>} : memref<7x2x8xf32, #tpu.memory_space<vmem>>, vector<1x2x8xf32>,
    %c1_i32_33 = arith.constant 1 : i32
    %145 = arith.index_cast %c1_i32_33 : i32 to index
    %c0_34 = arith.constant 0 : index
    %c0_35 = arith.constant 0 : index
    %146 = vector.load %arg2[%145, %c0_34, %c0_35] : memref<7x2x16xf32, #tpu.memory_space<vmem>>, vector<1x2x16xf32>
    %147 = vector.shape_cast %146 : vector<1x2x16xf32> to vector<2x16xf32>
    %cst_36 = arith.constant dense<0.000000e+00> : vector<2x16xf32>
    %148 = tpu.matmul %136, %3, %cst_36 {dimension_numbers = #tpu.dot_dimension_numbers<[1], [0], [0], [1], [0, 0, 1, 1], [], []>} : vector<2x8xf32>, vector<8x16xf32>, vector<2x16xf32> -> vector<2x16xf32>
    %149 = arith.addf %147, %148 : vector<2x16xf32>
    %150 = vector.extract_strided_slice %149 {offsets = [0, 0], sizes = [2, 8], strides = [1, 1]} : vector<2x16xf32> to vector<2x8xf32>
    %cst_37 = arith.constant 0.000000e+00 : f32
    %151 = vector.broadcast %cst_37 : f32 to vector<2x8xf32>
    %c0_38 = arith.constant 0 : index
    %c0_39 = arith.constant 0 : index
    %152 = vector.load %arg6[%c0_38, %c0_39] : memref<8x8xf32, #tpu.memory_space<vmem>>, vector<1x8xf32>
    %153 = vector.extract_strided_slice %150 {offsets = [0, 0], sizes = [2, 1], strides = [1, 1]} : vector<2x8xf32> to vector<2x1xf32>
    %154 = vector.broadcast %152 : vector<1x8xf32> to vector<2x8xf32>
    %155 = arith.mulf %151, %154 : vector<2x8xf32>
    %cst_40 = arith.constant dense<0.000000e+00> : vector<2xf32>
    %156 = vector.multi_reduction <add>, %155, %cst_40 [1] : vector<2x8xf32> to vector<2xf32>
    %157 = vector.shape_cast %156 : vector<2xf32> to vector<2x1xf32>
    %158 = arith.addf %153, %157 : vector<2x1xf32>
    %c0_i32_41 = arith.constant 0 : i32
    %159 = vector.broadcast %c0_i32_41 : i32 to vector<1x8xi32>
    %160 = arith.cmpi eq, %5, %159 : vector<1x8xi32>
    %161 = math.tanh %158 : vector<2x1xf32>
    %162 = vector.shape_cast %160 : vector<1x8xi1> to vector<1x8xi1>
    %163 = vector.broadcast %162 : vector<1x8xi1> to vector<2x8xi1>
    %164 = vector.shape_cast %161 : vector<2x1xf32> to vector<2x1xf32>
    %165 = vector.broadcast %164 : vector<2x1xf32> to vector<2x8xf32>
    %166 = arith.select %163, %165, %151 : vector<2x8xi1>, vector<2x8xf32>
    %c1_42 = arith.constant 1 : index
    %c0_43 = arith.constant 0 : index
    %167 = vector.load %arg6[%c1_42, %c0_43] : memref<8x8xf32, #tpu.memory_space<vmem>>, vector<1x8xf32>
    %168 = vector.extract_strided_slice %150 {offsets = [0, 1], sizes = [2, 1], strides = [1, 1]} : vector<2x8xf32> to vector<2x1xf32>
    %169 = vector.broadcast %167 : vector<1x8xf32> to vector<2x8xf32>
    %170 = arith.mulf %166, %169 : vector<2x8xf32>
    %cst_44 = arith.constant dense<0.000000e+00> : vector<2xf32>
    %171 = vector.multi_reduction <add>, %170, %cst_44 [1] : vector<2x8xf32> to vector<2xf32>
    %172 = vector.shape_cast %171 : vector<2xf32> to vector<2x1xf32>
    %173 = arith.addf %168, %172 : vector<2x1xf32>
    %c1_i32_45 = arith.constant 1 : i32
    %174 = vector.broadcast %c1_i32_45 : i32 to vector<1x8xi32>
    %175 = arith.cmpi eq, %5, %174 : vector<1x8xi32>
    %176 = math.tanh %173 : vector<2x1xf32>
    %177 = vector.shape_cast %175 : vector<1x8xi1> to vector<1x8xi1>
    %178 = vector.broadcast %177 : vector<1x8xi1> to vector<2x8xi1>
    %179 = vector.shape_cast %176 : vector<2x1xf32> to vector<2x1xf32>
    %180 = vector.broadcast %179 : vector<2x1xf32> to vector<2x8xf32>
    %181 = arith.select %178, %180, %166 : vector<2x8xi1>, vector<2x8xf32>
    %c2_46 = arith.constant 2 : index
    %c0_47 = arith.constant 0 : index
    %182 = vector.load %arg6[%c2_46, %c0_47] : memref<8x8xf32, #tpu.memory_space<vmem>>, vector<1x8xf32>
    %183 = vector.extract_strided_slice %150 {offsets = [0, 2], sizes = [2, 1], strides = [1, 1]} : vector<2x8xf32> to vector<2x1xf32>
    %184 = vector.broadcast %182 : vector<1x8xf32> to vector<2x8xf32>
    %185 = arith.mulf %181, %184 : vector<2x8xf32>
    %cst_48 = arith.constant dense<0.000000e+00> : vector<2xf32>
    %186 = vector.multi_reduction <add>, %185, %cst_48 [1] : vector<2x8xf32> to vector<2xf32>
    %187 = vector.shape_cast %186 : vector<2xf32> to vector<2x1xf32>
    %188 = arith.addf %183, %187 : vector<2x1xf32>
    %c2_i32_49 = arith.constant 2 : i32
    %189 = vector.broadcast %c2_i32_49 : i32 to vector<1x8xi32>
    %190 = arith.cmpi eq, %5, %189 : vector<1x8xi32>
    %191 = math.tanh %188 : vector<2x1xf32>
    %192 = vector.shape_cast %190 : vector<1x8xi1> to vector<1x8xi1>
    %193 = vector.broadcast %192 : vector<1x8xi1> to vector<2x8xi1>
    %194 = vector.shape_cast %191 : vector<2x1xf32> to vector<2x1xf32>
    %195 = vector.broadcast %194 : vector<2x1xf32> to vector<2x8xf32>
    %196 = arith.select %193, %195, %181 : vector<2x8xi1>, vector<2x8xf32>
    %c3_50 = arith.constant 3 : index
    %c0_51 = arith.constant 0 : index
    %197 = vector.load %arg6[%c3_50, %c0_51] : memref<8x8xf32, #tpu.memory_space<vmem>>, vector<1x8xf32>
    %198 = vector.extract_strided_slice %150 {offsets = [0, 3], sizes = [2, 1], strides = [1, 1]} : vector<2x8xf32> to vector<2x1xf32>
    %199 = vector.broadcast %197 : vector<1x8xf32> to vector<2x8xf32>
    %200 = arith.mulf %196, %199 : vector<2x8xf32>
    %cst_52 = arith.constant dense<0.000000e+00> : vector<2xf32>
    %201 = vector.multi_reduction <add>, %200, %cst_52 [1] : vector<2x8xf32> to vector<2xf32>
    %202 = vector.shape_cast %201 : vector<2xf32> to vector<2x1xf32>
    %203 = arith.addf %198, %202 : vector<2x1xf32>
    %c3_i32_53 = arith.constant 3 : i32
    %204 = vector.broadcast %c3_i32_53 : i32 to vector<1x8xi32>
    %205 = arith.cmpi eq, %5, %204 : vector<1x8xi32>
    %206 = math.tanh %203 : vector<2x1xf32>
    %207 = vector.shape_cast %205 : vector<1x8xi1> to vector<1x8xi1>
    %208 = vector.broadcast %207 : vector<1x8xi1> to vector<2x8xi1>
    %209 = vector.shape_cast %206 : vector<2x1xf32> to vector<2x1xf32>
    %210 = vector.broadcast %209 : vector<2x1xf32> to vector<2x8xf32>
    %211 = arith.select %208, %210, %196 : vector<2x8xi1>, vector<2x8xf32>
    %c4_54 = arith.constant 4 : index
    %c0_55 = arith.constant 0 : index
    %212 = vector.load %arg6[%c4_54, %c0_55] : memref<8x8xf32, #tpu.memory_space<vmem>>, vector<1x8xf32>
    %213 = vector.extract_strided_slice %150 {offsets = [0, 4], sizes = [2, 1], strides = [1, 1]} : vector<2x8xf32> to vector<2x1xf32>
    %214 = vector.broadcast %212 : vector<1x8xf32> to vector<2x8xf32>
    %215 = arith.mulf %211, %214 : vector<2x8xf32>
    %cst_56 = arith.constant dense<0.000000e+00> : vector<2xf32>
    %216 = vector.multi_reduction <add>, %215, %cst_56 [1] : vector<2x8xf32> to vector<2xf32>
    %217 = vector.shape_cast %216 : vector<2xf32> to vector<2x1xf32>
    %218 = arith.addf %213, %217 : vector<2x1xf32>
    %c4_i32_57 = arith.constant 4 : i32
    %219 = vector.broadcast %c4_i32_57 : i32 to vector<1x8xi32>
    %220 = arith.cmpi eq, %5, %219 : vector<1x8xi32>
    %221 = math.tanh %218 : vector<2x1xf32>
    %222 = vector.shape_cast %220 : vector<1x8xi1> to vector<1x8xi1>
    %223 = vector.broadcast %222 : vector<1x8xi1> to vector<2x8xi1>
    %224 = vector.shape_cast %221 : vector<2x1xf32> to vector<2x1xf32>
    %225 = vector.broadcast %224 : vector<2x1xf32> to vector<2x8xf32>
    %226 = arith.select %223, %225, %211 : vector<2x8xi1>, vector<2x8xf32>
    %c5_58 = arith.constant 5 : index
    %c0_59 = arith.constant 0 : index
    %227 = vector.load %arg6[%c5_58, %c0_59] : memref<8x8xf32, #tpu.memory_space<vmem>>, vector<1x8xf32>
    %228 = vector.extract_strided_slice %150 {offsets = [0, 5], sizes = [2, 1], strides = [1, 1]} : vector<2x8xf32> to vector<2x1xf32>
    %229 = vector.broadcast %227 : vector<1x8xf32> to vector<2x8xf32>
    %230 = arith.mulf %226, %229 : vector<2x8xf32>
    %cst_60 = arith.constant dense<0.000000e+00> : vector<2xf32>
    %231 = vector.multi_reduction <add>, %230, %cst_60 [1] : vector<2x8xf32> to vector<2xf32>
    %232 = vector.shape_cast %231 : vector<2xf32> to vector<2x1xf32>
    %233 = arith.addf %228, %232 : vector<2x1xf32>
    %c5_i32_61 = arith.constant 5 : i32
    %234 = vector.broadcast %c5_i32_61 : i32 to vector<1x8xi32>
    %235 = arith.cmpi eq, %5, %234 : vector<1x8xi32>
    %236 = math.tanh %233 : vector<2x1xf32>
    %237 = vector.shape_cast %235 : vector<1x8xi1> to vector<1x8xi1>
    %238 = vector.broadcast %237 : vector<1x8xi1> to vector<2x8xi1>
    %239 = vector.shape_cast %236 : vector<2x1xf32> to vector<2x1xf32>
    %240 = vector.broadcast %239 : vector<2x1xf32> to vector<2x8xf32>
    %241 = arith.select %238, %240, %226 : vector<2x8xi1>, vector<2x8xf32>
    %c6_62 = arith.constant 6 : index
    %c0_63 = arith.constant 0 : index
    %242 = vector.load %arg6[%c6_62, %c0_63] : memref<8x8xf32, #tpu.memory_space<vmem>>, vector<1x8xf32>
    %243 = vector.extract_strided_slice %150 {offsets = [0, 6], sizes = [2, 1], strides = [1, 1]} : vector<2x8xf32> to vector<2x1xf32>
    %244 = vector.broadcast %242 : vector<1x8xf32> to vector<2x8xf32>
    %245 = arith.mulf %241, %244 : vector<2x8xf32>
    %cst_64 = arith.constant dense<0.000000e+00> : vector<2xf32>
    %246 = vector.multi_reduction <add>, %245, %cst_64 [1] : vector<2x8xf32> to vector<2xf32>
    %247 = vector.shape_cast %246 : vector<2xf32> to vector<2x1xf32>
    %248 = arith.addf %243, %247 : vector<2x1xf32>
    %c6_i32_65 = arith.constant 6 : i32
    %249 = vector.broadcast %c6_i32_65 : i32 to vector<1x8xi32>
    %250 = arith.cmpi eq, %5, %249 : vector<1x8xi32>
    %251 = math.tanh %248 : vector<2x1xf32>
    %252 = vector.shape_cast %250 : vector<1x8xi1> to vector<1x8xi1>
    %253 = vector.broadcast %252 : vector<1x8xi1> to vector<2x8xi1>
    %254 = vector.shape_cast %251 : vector<2x1xf32> to vector<2x1xf32>
    %255 = vector.broadcast %254 : vector<2x1xf32> to vector<2x8xf32>
    %256 = arith.select %253, %255, %241 : vector<2x8xi1>, vector<2x8xf32>
    %c7_66 = arith.constant 7 : index
    %c0_67 = arith.constant 0 : index
    %257 = vector.load %arg6[%c7_66, %c0_67] : memref<8x8xf32, #tpu.memory_space<vmem>>, vector<1x8xf32>
    %258 = vector.extract_strided_slice %150 {offsets = [0, 7], sizes = [2, 1], strides = [1, 1]} : vector<2x8xf32> to vector<2x1xf32>
    %259 = vector.broadcast %257 : vector<1x8xf32> to vector<2x8xf32>
    %260 = arith.mulf %256, %259 : vector<2x8xf32>
    %cst_68 = arith.constant dense<0.000000e+00> : vector<2xf32>
    %261 = vector.multi_reduction <add>, %260, %cst_68 [1] : vector<2x8xf32> to vector<2xf32>
    %262 = vector.shape_cast %261 : vector<2xf32> to vector<2x1xf32>
    %263 = arith.addf %258, %262 : vector<2x1xf32>
    %c7_i32_69 = arith.constant 7 : i32
    %264 = vector.broadcast %c7_i32_69 : i32 to vector<1x8xi32>
    %265 = arith.cmpi eq, %5, %264 : vector<1x8xi32>
    %266 = math.tanh %263 : vector<2x1xf32>
    %267 = vector.shape_cast %265 : vector<1x8xi1> to vector<1x8xi1>
    %268 = vector.broadcast %267 : vector<1x8xi1> to vector<2x8xi1>
    %269 = vector.shape_cast %266 : vector<2x1xf32> to vector<2x1xf32>
    %270 = vector.broadcast %269 : vector<2x1xf32> to vector<2x8xf32>
    %271 = arith.select %268, %270, %256 : vector<2x8xi1>, vector<2x8xf32>
    %272 = vector.extract_strided_slice %149 {offsets = [0, 8], sizes = [2, 8], strides = [1, 1]} : vector<2x16xf32> to vector<2x8xf32>
    %cst_70 = arith.constant dense<0.000000e+00> : vector<2x8xf32>
    %273 = tpu.matmul %271, %4, %cst_70 {dimension_numbers = #tpu.dot_dimension_numbers<[1], [0], [0], [1], [0, 0, 1, 1], [], []>} : vector<2x8xf32>, vector<8x8xf32>, vector<2x8xf32> -> vector<2x8xf32>
    %274 = arith.addf %272, %273 : vector<2x8xf32>
    %275 = arith.index_cast %c1_i32_33 : i32 to index
    %c0_71 = arith.constant 0 : index
    %c0_72 = arith.constant 0 : index
    %276 = vector.load %arg7[%275, %c0_71, %c0_72] : memref<7x2x8xf32, #tpu.memory_space<vmem>>, vector<1x2x8xf32>
    %277 = vector.shape_cast %276 : vector<1x2x8xf32> to vector<2x8xf32>
    %278 = vector.shape_cast %274 : vector<2x8xf32> to vector<1x2x8xf32>
    tpu.vector_store %arg7[%275, %c0_71, %c0_72], %278 {strides = array<i32>} : memref<7x2x8xf32, #tpu.memory_space<vmem>>, vector<1x2x8xf32>,
    %279 = arith.index_cast %c1_i32_33 : i32 to index
    %c0_73 = arith.constant 0 : index
    %c0_74 = arith.constant 0 : index
    %280 = vector.load %arg8[%279, %c0_73, %c0_74] : memref<7x2x8xf32, #tpu.memory_space<vmem>>, vector<1x2x8xf32>
    %281 = vector.shape_cast %280 : vector<1x2x8xf32> to vector<2x8xf32>
    %282 = vector.shape_cast %271 : vector<2x8xf32> to vector<1x2x8xf32>
    tpu.vector_store %arg8[%279, %c0_73, %c0_74], %282 {strides = array<i32>} : memref<7x2x8xf32, #tpu.memory_space<vmem>>, vector<1x2x8xf32>,
    %c2_i32_75 = arith.constant 2 : i32
    %283 = arith.index_cast %c2_i32_75 : i32 to index
    %c0_76 = arith.constant 0 : index
    %c0_77 = arith.constant 0 : index
    %284 = vector.load %arg2[%283, %c0_76, %c0_77] : memref<7x2x16xf32, #tpu.memory_space<vmem>>, vector<1x2x16xf32>
    %285 = vector.shape_cast %284 : vector<1x2x16xf32> to vector<2x16xf32>
    %cst_78 = arith.constant dense<0.000000e+00> : vector<2x16xf32>
    %286 = tpu.matmul %274, %3, %cst_78 {dimension_numbers = #tpu.dot_dimension_numbers<[1], [0], [0], [1], [0, 0, 1, 1], [], []>} : vector<2x8xf32>, vector<8x16xf32>, vector<2x16xf32> -> vector<2x16xf32>
    %287 = arith.addf %285, %286 : vector<2x16xf32>
    %288 = vector.extract_strided_slice %287 {offsets = [0, 0], sizes = [2, 8], strides = [1, 1]} : vector<2x16xf32> to vector<2x8xf32>
    %cst_79 = arith.constant 0.000000e+00 : f32
    %289 = vector.broadcast %cst_79 : f32 to vector<2x8xf32>
    %c0_80 = arith.constant 0 : index
    %c0_81 = arith.constant 0 : index
    %290 = vector.load %arg6[%c0_80, %c0_81] : memref<8x8xf32, #tpu.memory_space<vmem>>, vector<1x8xf32>
    %291 = vector.extract_strided_slice %288 {offsets = [0, 0], sizes = [2, 1], strides = [1, 1]} : vector<2x8xf32> to vector<2x1xf32>
    %292 = vector.broadcast %290 : vector<1x8xf32> to vector<2x8xf32>
    %293 = arith.mulf %289, %292 : vector<2x8xf32>
    %cst_82 = arith.constant dense<0.000000e+00> : vector<2xf32>
    %294 = vector.multi_reduction <add>, %293, %cst_82 [1] : vector<2x8xf32> to vector<2xf32>
    %295 = vector.shape_cast %294 : vector<2xf32> to vector<2x1xf32>
    %296 = arith.addf %291, %295 : vector<2x1xf32>
    %c0_i32_83 = arith.constant 0 : i32
    %297 = vector.broadcast %c0_i32_83 : i32 to vector<1x8xi32>
    %298 = arith.cmpi eq, %5, %297 : vector<1x8xi32>
    %299 = math.tanh %296 : vector<2x1xf32>
    %300 = vector.shape_cast %298 : vector<1x8xi1> to vector<1x8xi1>
    %301 = vector.broadcast %300 : vector<1x8xi1> to vector<2x8xi1>
    %302 = vector.shape_cast %299 : vector<2x1xf32> to vector<2x1xf32>
    %303 = vector.broadcast %302 : vector<2x1xf32> to vector<2x8xf32>
    %304 = arith.select %301, %303, %289 : vector<2x8xi1>, vector<2x8xf32>
    %c1_84 = arith.constant 1 : index
    %c0_85 = arith.constant 0 : index
    %305 = vector.load %arg6[%c1_84, %c0_85] : memref<8x8xf32, #tpu.memory_space<vmem>>, vector<1x8xf32>
    %306 = vector.extract_strided_slice %288 {offsets = [0, 1], sizes = [2, 1], strides = [1, 1]} : vector<2x8xf32> to vector<2x1xf32>
    %307 = vector.broadcast %305 : vector<1x8xf32> to vector<2x8xf32>
    %308 = arith.mulf %304, %307 : vector<2x8xf32>
    %cst_86 = arith.constant dense<0.000000e+00> : vector<2xf32>
    %309 = vector.multi_reduction <add>, %308, %cst_86 [1] : vector<2x8xf32> to vector<2xf32>
    %310 = vector.shape_cast %309 : vector<2xf32> to vector<2x1xf32>
    %311 = arith.addf %306, %310 : vector<2x1xf32>
    %c1_i32_87 = arith.constant 1 : i32
    %312 = vector.broadcast %c1_i32_87 : i32 to vector<1x8xi32>
    %313 = arith.cmpi eq, %5, %312 : vector<1x8xi32>
    %314 = math.tanh %311 : vector<2x1xf32>
    %315 = vector.shape_cast %313 : vector<1x8xi1> to vector<1x8xi1>
    %316 = vector.broadcast %315 : vector<1x8xi1> to vector<2x8xi1>
    %317 = vector.shape_cast %314 : vector<2x1xf32> to vector<2x1xf32>
    %318 = vector.broadcast %317 : vector<2x1xf32> to vector<2x8xf32>
    %319 = arith.select %316, %318, %304 : vector<2x8xi1>, vector<2x8xf32>
    %c2_88 = arith.constant 2 : index
    %c0_89 = arith.constant 0 : index
    %320 = vector.load %arg6[%c2_88, %c0_89] : memref<8x8xf32, #tpu.memory_space<vmem>>, vector<1x8xf32>
    %321 = vector.extract_strided_slice %288 {offsets = [0, 2], sizes = [2, 1], strides = [1, 1]} : vector<2x8xf32> to vector<2x1xf32>
    %322 = vector.broadcast %320 : vector<1x8xf32> to vector<2x8xf32>
    %323 = arith.mulf %319, %322 : vector<2x8xf32>
    %cst_90 = arith.constant dense<0.000000e+00> : vector<2xf32>
    %324 = vector.multi_reduction <add>, %323, %cst_90 [1] : vector<2x8xf32> to vector<2xf32>
    %325 = vector.shape_cast %324 : vector<2xf32> to vector<2x1xf32>
    %326 = arith.addf %321, %325 : vector<2x1xf32>
    %c2_i32_91 = arith.constant 2 : i32
    %327 = vector.broadcast %c2_i32_91 : i32 to vector<1x8xi32>
    %328 = arith.cmpi eq, %5, %327 : vector<1x8xi32>
    %329 = math.tanh %326 : vector<2x1xf32>
    %330 = vector.shape_cast %328 : vector<1x8xi1> to vector<1x8xi1>
    %331 = vector.broadcast %330 : vector<1x8xi1> to vector<2x8xi1>
    %332 = vector.shape_cast %329 : vector<2x1xf32> to vector<2x1xf32>
    %333 = vector.broadcast %332 : vector<2x1xf32> to vector<2x8xf32>
    %334 = arith.select %331, %333, %319 : vector<2x8xi1>, vector<2x8xf32>
    %c3_92 = arith.constant 3 : index
    %c0_93 = arith.constant 0 : index
    %335 = vector.load %arg6[%c3_92, %c0_93] : memref<8x8xf32, #tpu.memory_space<vmem>>, vector<1x8xf32>
    %336 = vector.extract_strided_slice %288 {offsets = [0, 3], sizes = [2, 1], strides = [1, 1]} : vector<2x8xf32> to vector<2x1xf32>
    %337 = vector.broadcast %335 : vector<1x8xf32> to vector<2x8xf32>
    %338 = arith.mulf %334, %337 : vector<2x8xf32>
    %cst_94 = arith.constant dense<0.000000e+00> : vector<2xf32>
    %339 = vector.multi_reduction <add>, %338, %cst_94 [1] : vector<2x8xf32> to vector<2xf32>
    %340 = vector.shape_cast %339 : vector<2xf32> to vector<2x1xf32>
    %341 = arith.addf %336, %340 : vector<2x1xf32>
    %c3_i32_95 = arith.constant 3 : i32
    %342 = vector.broadcast %c3_i32_95 : i32 to vector<1x8xi32>
    %343 = arith.cmpi eq, %5, %342 : vector<1x8xi32>
    %344 = math.tanh %341 : vector<2x1xf32>
    %345 = vector.shape_cast %343 : vector<1x8xi1> to vector<1x8xi1>
    %346 = vector.broadcast %345 : vector<1x8xi1> to vector<2x8xi1>
    %347 = vector.shape_cast %344 : vector<2x1xf32> to vector<2x1xf32>
    %348 = vector.broadcast %347 : vector<2x1xf32> to vector<2x8xf32>
    %349 = arith.select %346, %348, %334 : vector<2x8xi1>, vector<2x8xf32>
    %c4_96 = arith.constant 4 : index
    %c0_97 = arith.constant 0 : index
    %350 = vector.load %arg6[%c4_96, %c0_97] : memref<8x8xf32, #tpu.memory_space<vmem>>, vector<1x8xf32>
    %351 = vector.extract_strided_slice %288 {offsets = [0, 4], sizes = [2, 1], strides = [1, 1]} : vector<2x8xf32> to vector<2x1xf32>
    %352 = vector.broadcast %350 : vector<1x8xf32> to vector<2x8xf32>
    %353 = arith.mulf %349, %352 : vector<2x8xf32>
    %cst_98 = arith.constant dense<0.000000e+00> : vector<2xf32>
    %354 = vector.multi_reduction <add>, %353, %cst_98 [1] : vector<2x8xf32> to vector<2xf32>
    %355 = vector.shape_cast %354 : vector<2xf32> to vector<2x1xf32>
    %356 = arith.addf %351, %355 : vector<2x1xf32>
    %c4_i32_99 = arith.constant 4 : i32
    %357 = vector.broadcast %c4_i32_99 : i32 to vector<1x8xi32>
    %358 = arith.cmpi eq, %5, %357 : vector<1x8xi32>
    %359 = math.tanh %356 : vector<2x1xf32>
    %360 = vector.shape_cast %358 : vector<1x8xi1> to vector<1x8xi1>
    %361 = vector.broadcast %360 : vector<1x8xi1> to vector<2x8xi1>
    %362 = vector.shape_cast %359 : vector<2x1xf32> to vector<2x1xf32>
    %363 = vector.broadcast %362 : vector<2x1xf32> to vector<2x8xf32>
    %364 = arith.select %361, %363, %349 : vector<2x8xi1>, vector<2x8xf32>
    %c5_100 = arith.constant 5 : index
    %c0_101 = arith.constant 0 : index
    %365 = vector.load %arg6[%c5_100, %c0_101] : memref<8x8xf32, #tpu.memory_space<vmem>>, vector<1x8xf32>
    %366 = vector.extract_strided_slice %288 {offsets = [0, 5], sizes = [2, 1], strides = [1, 1]} : vector<2x8xf32> to vector<2x1xf32>
    %367 = vector.broadcast %365 : vector<1x8xf32> to vector<2x8xf32>
    %368 = arith.mulf %364, %367 : vector<2x8xf32>
    %cst_102 = arith.constant dense<0.000000e+00> : vector<2xf32>
    %369 = vector.multi_reduction <add>, %368, %cst_102 [1] : vector<2x8xf32> to vector<2xf32>
    %370 = vector.shape_cast %369 : vector<2xf32> to vector<2x1xf32>
    %371 = arith.addf %366, %370 : vector<2x1xf32>
    %c5_i32_103 = arith.constant 5 : i32
    %372 = vector.broadcast %c5_i32_103 : i32 to vector<1x8xi32>
    %373 = arith.cmpi eq, %5, %372 : vector<1x8xi32>
    %374 = math.tanh %371 : vector<2x1xf32>
    %375 = vector.shape_cast %373 : vector<1x8xi1> to vector<1x8xi1>
    %376 = vector.broadcast %375 : vector<1x8xi1> to vector<2x8xi1>
    %377 = vector.shape_cast %374 : vector<2x1xf32> to vector<2x1xf32>
    %378 = vector.broadcast %377 : vector<2x1xf32> to vector<2x8xf32>
    %379 = arith.select %376, %378, %364 : vector<2x8xi1>, vector<2x8xf32>
    %c6_104 = arith.constant 6 : index
    %c0_105 = arith.constant 0 : index
    %380 = vector.load %arg6[%c6_104, %c0_105] : memref<8x8xf32, #tpu.memory_space<vmem>>, vector<1x8xf32>
    %381 = vector.extract_strided_slice %288 {offsets = [0, 6], sizes = [2, 1], strides = [1, 1]} : vector<2x8xf32> to vector<2x1xf32>
    %382 = vector.broadcast %380 : vector<1x8xf32> to vector<2x8xf32>
    %383 = arith.mulf %379, %382 : vector<2x8xf32>
    %cst_106 = arith.constant dense<0.000000e+00> : vector<2xf32>
    %384 = vector.multi_reduction <add>, %383, %cst_106 [1] : vector<2x8xf32> to vector<2xf32>
    %385 = vector.shape_cast %384 : vector<2xf32> to vector<2x1xf32>
    %386 = arith.addf %381, %385 : vector<2x1xf32>
    %c6_i32_107 = arith.constant 6 : i32
    %387 = vector.broadcast %c6_i32_107 : i32 to vector<1x8xi32>
    %388 = arith.cmpi eq, %5, %387 : vector<1x8xi32>
    %389 = math.tanh %386 : vector<2x1xf32>
    %390 = vector.shape_cast %388 : vector<1x8xi1> to vector<1x8xi1>
    %391 = vector.broadcast %390 : vector<1x8xi1> to vector<2x8xi1>
    %392 = vector.shape_cast %389 : vector<2x1xf32> to vector<2x1xf32>
    %393 = vector.broadcast %392 : vector<2x1xf32> to vector<2x8xf32>
    %394 = arith.select %391, %393, %379 : vector<2x8xi1>, vector<2x8xf32>
    %c7_108 = arith.constant 7 : index
    %c0_109 = arith.constant 0 : index
    %395 = vector.load %arg6[%c7_108, %c0_109] : memref<8x8xf32, #tpu.memory_space<vmem>>, vector<1x8xf32>
    %396 = vector.extract_strided_slice %288 {offsets = [0, 7], sizes = [2, 1], strides = [1, 1]} : vector<2x8xf32> to vector<2x1xf32>
    %397 = vector.broadcast %395 : vector<1x8xf32> to vector<2x8xf32>
    %398 = arith.mulf %394, %397 : vector<2x8xf32>
    %cst_110 = arith.constant dense<0.000000e+00> : vector<2xf32>
    %399 = vector.multi_reduction <add>, %398, %cst_110 [1] : vector<2x8xf32> to vector<2xf32>
    %400 = vector.shape_cast %399 : vector<2xf32> to vector<2x1xf32>
    %401 = arith.addf %396, %400 : vector<2x1xf32>
    %c7_i32_111 = arith.constant 7 : i32
    %402 = vector.broadcast %c7_i32_111 : i32 to vector<1x8xi32>
    %403 = arith.cmpi eq, %5, %402 : vector<1x8xi32>
    %404 = math.tanh %401 : vector<2x1xf32>
    %405 = vector.shape_cast %403 : vector<1x8xi1> to vector<1x8xi1>
    %406 = vector.broadcast %405 : vector<1x8xi1> to vector<2x8xi1>
    %407 = vector.shape_cast %404 : vector<2x1xf32> to vector<2x1xf32>
    %408 = vector.broadcast %407 : vector<2x1xf32> to vector<2x8xf32>
    %409 = arith.select %406, %408, %394 : vector<2x8xi1>, vector<2x8xf32>
    %410 = vector.extract_strided_slice %287 {offsets = [0, 8], sizes = [2, 8], strides = [1, 1]} : vector<2x16xf32> to vector<2x8xf32>
    %cst_112 = arith.constant dense<0.000000e+00> : vector<2x8xf32>
    %411 = tpu.matmul %409, %4, %cst_112 {dimension_numbers = #tpu.dot_dimension_numbers<[1], [0], [0], [1], [0, 0, 1, 1], [], []>} : vector<2x8xf32>, vector<8x8xf32>, vector<2x8xf32> -> vector<2x8xf32>
    %412 = arith.addf %410, %411 : vector<2x8xf32>
    %413 = arith.index_cast %c2_i32_75 : i32 to index
    %c0_113 = arith.constant 0 : index
    %c0_114 = arith.constant 0 : index
    %414 = vector.load %arg7[%413, %c0_113, %c0_114] : memref<7x2x8xf32, #tpu.memory_space<vmem>>, vector<1x2x8xf32>
    %415 = vector.shape_cast %414 : vector<1x2x8xf32> to vector<2x8xf32>
    %416 = vector.shape_cast %412 : vector<2x8xf32> to vector<1x2x8xf32>
    tpu.vector_store %arg7[%413, %c0_113, %c0_114], %416 {strides = array<i32>} : memref<7x2x8xf32, #tpu.memory_space<vmem>>, vector<1x2x8xf32>,
    %417 = arith.index_cast %c2_i32_75 : i32 to index
    %c0_115 = arith.constant 0 : index
    %c0_116 = arith.constant 0 : index
    %418 = vector.load %arg8[%417, %c0_115, %c0_116] : memref<7x2x8xf32, #tpu.memory_space<vmem>>, vector<1x2x8xf32>
    %419 = vector.shape_cast %418 : vector<1x2x8xf32> to vector<2x8xf32>
    %420 = vector.shape_cast %409 : vector<2x8xf32> to vector<1x2x8xf32>
    tpu.vector_store %arg8[%417, %c0_115, %c0_116], %420 {strides = array<i32>} : memref<7x2x8xf32, #tpu.memory_space<vmem>>, vector<1x2x8xf32>,
    %c3_i32_117 = arith.constant 3 : i32
    %421 = arith.index_cast %c3_i32_117 : i32 to index
    %c0_118 = arith.constant 0 : index
    %c0_119 = arith.constant 0 : index
    %422 = vector.load %arg2[%421, %c0_118, %c0_119] : memref<7x2x16xf32, #tpu.memory_space<vmem>>, vector<1x2x16xf32>
    %423 = vector.shape_cast %422 : vector<1x2x16xf32> to vector<2x16xf32>
    %cst_120 = arith.constant dense<0.000000e+00> : vector<2x16xf32>
    %424 = tpu.matmul %412, %3, %cst_120 {dimension_numbers = #tpu.dot_dimension_numbers<[1], [0], [0], [1], [0, 0, 1, 1], [], []>} : vector<2x8xf32>, vector<8x16xf32>, vector<2x16xf32> -> vector<2x16xf32>
    %425 = arith.addf %423, %424 : vector<2x16xf32>
    %426 = vector.extract_strided_slice %425 {offsets = [0, 0], sizes = [2, 8], strides = [1, 1]} : vector<2x16xf32> to vector<2x8xf32>
    %cst_121 = arith.constant 0.000000e+00 : f32
    %427 = vector.broadcast %cst_121 : f32 to vector<2x8xf32>
    %c0_122 = arith.constant 0 : index
    %c0_123 = arith.constant 0 : index
    %428 = vector.load %arg6[%c0_122, %c0_123] : memref<8x8xf32, #tpu.memory_space<vmem>>, vector<1x8xf32>
    %429 = vector.extract_strided_slice %426 {offsets = [0, 0], sizes = [2, 1], strides = [1, 1]} : vector<2x8xf32> to vector<2x1xf32>
    %430 = vector.broadcast %428 : vector<1x8xf32> to vector<2x8xf32>
    %431 = arith.mulf %427, %430 : vector<2x8xf32>
    %cst_124 = arith.constant dense<0.000000e+00> : vector<2xf32>
    %432 = vector.multi_reduction <add>, %431, %cst_124 [1] : vector<2x8xf32> to vector<2xf32>
    %433 = vector.shape_cast %432 : vector<2xf32> to vector<2x1xf32>
    %434 = arith.addf %429, %433 : vector<2x1xf32>
    %c0_i32_125 = arith.constant 0 : i32
    %435 = vector.broadcast %c0_i32_125 : i32 to vector<1x8xi32>
    %436 = arith.cmpi eq, %5, %435 : vector<1x8xi32>
    %437 = math.tanh %434 : vector<2x1xf32>
    %438 = vector.shape_cast %436 : vector<1x8xi1> to vector<1x8xi1>
    %439 = vector.broadcast %438 : vector<1x8xi1> to vector<2x8xi1>
    %440 = vector.shape_cast %437 : vector<2x1xf32> to vector<2x1xf32>
    %441 = vector.broadcast %440 : vector<2x1xf32> to vector<2x8xf32>
    %442 = arith.select %439, %441, %427 : vector<2x8xi1>, vector<2x8xf32>
    %c1_126 = arith.constant 1 : index
    %c0_127 = arith.constant 0 : index
    %443 = vector.load %arg6[%c1_126, %c0_127] : memref<8x8xf32, #tpu.memory_space<vmem>>, vector<1x8xf32>
    %444 = vector.extract_strided_slice %426 {offsets = [0, 1], sizes = [2, 1], strides = [1, 1]} : vector<2x8xf32> to vector<2x1xf32>
    %445 = vector.broadcast %443 : vector<1x8xf32> to vector<2x8xf32>
    %446 = arith.mulf %442, %445 : vector<2x8xf32>
    %cst_128 = arith.constant dense<0.000000e+00> : vector<2xf32>
    %447 = vector.multi_reduction <add>, %446, %cst_128 [1] : vector<2x8xf32> to vector<2xf32>
    %448 = vector.shape_cast %447 : vector<2xf32> to vector<2x1xf32>
    %449 = arith.addf %444, %448 : vector<2x1xf32>
    %c1_i32_129 = arith.constant 1 : i32
    %450 = vector.broadcast %c1_i32_129 : i32 to vector<1x8xi32>
    %451 = arith.cmpi eq, %5, %450 : vector<1x8xi32>
    %452 = math.tanh %449 : vector<2x1xf32>
    %453 = vector.shape_cast %451 : vector<1x8xi1> to vector<1x8xi1>
    %454 = vector.broadcast %453 : vector<1x8xi1> to vector<2x8xi1>
    %455 = vector.shape_cast %452 : vector<2x1xf32> to vector<2x1xf32>
    %456 = vector.broadcast %455 : vector<2x1xf32> to vector<2x8xf32>
    %457 = arith.select %454, %456, %442 : vector<2x8xi1>, vector<2x8xf32>
    %c2_130 = arith.constant 2 : index
    %c0_131 = arith.constant 0 : index
    %458 = vector.load %arg6[%c2_130, %c0_131] : memref<8x8xf32, #tpu.memory_space<vmem>>, vector<1x8xf32>
    %459 = vector.extract_strided_slice %426 {offsets = [0, 2], sizes = [2, 1], strides = [1, 1]} : vector<2x8xf32> to vector<2x1xf32>
    %460 = vector.broadcast %458 : vector<1x8xf32> to vector<2x8xf32>
    %461 = arith.mulf %457, %460 : vector<2x8xf32>
    %cst_132 = arith.constant dense<0.000000e+00> : vector<2xf32>
    %462 = vector.multi_reduction <add>, %461, %cst_132 [1] : vector<2x8xf32> to vector<2xf32>
    %463 = vector.shape_cast %462 : vector<2xf32> to vector<2x1xf32>
    %464 = arith.addf %459, %463 : vector<2x1xf32>
    %c2_i32_133 = arith.constant 2 : i32
    %465 = vector.broadcast %c2_i32_133 : i32 to vector<1x8xi32>
    %466 = arith.cmpi eq, %5, %465 : vector<1x8xi32>
    %467 = math.tanh %464 : vector<2x1xf32>
    %468 = vector.shape_cast %466 : vector<1x8xi1> to vector<1x8xi1>
    %469 = vector.broadcast %468 : vector<1x8xi1> to vector<2x8xi1>
    %470 = vector.shape_cast %467 : vector<2x1xf32> to vector<2x1xf32>
    %471 = vector.broadcast %470 : vector<2x1xf32> to vector<2x8xf32>
    %472 = arith.select %469, %471, %457 : vector<2x8xi1>, vector<2x8xf32>
    %c3_134 = arith.constant 3 : index
    %c0_135 = arith.constant 0 : index
    %473 = vector.load %arg6[%c3_134, %c0_135] : memref<8x8xf32, #tpu.memory_space<vmem>>, vector<1x8xf32>
    %474 = vector.extract_strided_slice %426 {offsets = [0, 3], sizes = [2, 1], strides = [1, 1]} : vector<2x8xf32> to vector<2x1xf32>
    %475 = vector.broadcast %473 : vector<1x8xf32> to vector<2x8xf32>
    %476 = arith.mulf %472, %475 : vector<2x8xf32>
    %cst_136 = arith.constant dense<0.000000e+00> : vector<2xf32>
    %477 = vector.multi_reduction <add>, %476, %cst_136 [1] : vector<2x8xf32> to vector<2xf32>
    %478 = vector.shape_cast %477 : vector<2xf32> to vector<2x1xf32>
    %479 = arith.addf %474, %478 : vector<2x1xf32>
    %c3_i32_137 = arith.constant 3 : i32
    %480 = vector.broadcast %c3_i32_137 : i32 to vector<1x8xi32>
    %481 = arith.cmpi eq, %5, %480 : vector<1x8xi32>
    %482 = math.tanh %479 : vector<2x1xf32>
    %483 = vector.shape_cast %481 : vector<1x8xi1> to vector<1x8xi1>
    %484 = vector.broadcast %483 : vector<1x8xi1> to vector<2x8xi1>
    %485 = vector.shape_cast %482 : vector<2x1xf32> to vector<2x1xf32>
    %486 = vector.broadcast %485 : vector<2x1xf32> to vector<2x8xf32>
    %487 = arith.select %484, %486, %472 : vector<2x8xi1>, vector<2x8xf32>
    %c4_138 = arith.constant 4 : index
    %c0_139 = arith.constant 0 : index
    %488 = vector.load %arg6[%c4_138, %c0_139] : memref<8x8xf32, #tpu.memory_space<vmem>>, vector<1x8xf32>
    %489 = vector.extract_strided_slice %426 {offsets = [0, 4], sizes = [2, 1], strides = [1, 1]} : vector<2x8xf32> to vector<2x1xf32>
    %490 = vector.broadcast %488 : vector<1x8xf32> to vector<2x8xf32>
    %491 = arith.mulf %487, %490 : vector<2x8xf32>
    %cst_140 = arith.constant dense<0.000000e+00> : vector<2xf32>
    %492 = vector.multi_reduction <add>, %491, %cst_140 [1] : vector<2x8xf32> to vector<2xf32>
    %493 = vector.shape_cast %492 : vector<2xf32> to vector<2x1xf32>
    %494 = arith.addf %489, %493 : vector<2x1xf32>
    %c4_i32_141 = arith.constant 4 : i32
    %495 = vector.broadcast %c4_i32_141 : i32 to vector<1x8xi32>
    %496 = arith.cmpi eq, %5, %495 : vector<1x8xi32>
    %497 = math.tanh %494 : vector<2x1xf32>
    %498 = vector.shape_cast %496 : vector<1x8xi1> to vector<1x8xi1>
    %499 = vector.broadcast %498 : vector<1x8xi1> to vector<2x8xi1>
    %500 = vector.shape_cast %497 : vector<2x1xf32> to vector<2x1xf32>
    %501 = vector.broadcast %500 : vector<2x1xf32> to vector<2x8xf32>
    %502 = arith.select %499, %501, %487 : vector<2x8xi1>, vector<2x8xf32>
    %c5_142 = arith.constant 5 : index
    %c0_143 = arith.constant 0 : index
    %503 = vector.load %arg6[%c5_142, %c0_143] : memref<8x8xf32, #tpu.memory_space<vmem>>, vector<1x8xf32>
    %504 = vector.extract_strided_slice %426 {offsets = [0, 5], sizes = [2, 1], strides = [1, 1]} : vector<2x8xf32> to vector<2x1xf32>
    %505 = vector.broadcast %503 : vector<1x8xf32> to vector<2x8xf32>
    %506 = arith.mulf %502, %505 : vector<2x8xf32>
    %cst_144 = arith.constant dense<0.000000e+00> : vector<2xf32>
    %507 = vector.multi_reduction <add>, %506, %cst_144 [1] : vector<2x8xf32> to vector<2xf32>
    %508 = vector.shape_cast %507 : vector<2xf32> to vector<2x1xf32>
    %509 = arith.addf %504, %508 : vector<2x1xf32>
    %c5_i32_145 = arith.constant 5 : i32
    %510 = vector.broadcast %c5_i32_145 : i32 to vector<1x8xi32>
    %511 = arith.cmpi eq, %5, %510 : vector<1x8xi32>
    %512 = math.tanh %509 : vector<2x1xf32>
    %513 = vector.shape_cast %511 : vector<1x8xi1> to vector<1x8xi1>
    %514 = vector.broadcast %513 : vector<1x8xi1> to vector<2x8xi1>
    %515 = vector.shape_cast %512 : vector<2x1xf32> to vector<2x1xf32>
    %516 = vector.broadcast %515 : vector<2x1xf32> to vector<2x8xf32>
    %517 = arith.select %514, %516, %502 : vector<2x8xi1>, vector<2x8xf32>
    %c6_146 = arith.constant 6 : index
    %c0_147 = arith.constant 0 : index
    %518 = vector.load %arg6[%c6_146, %c0_147] : memref<8x8xf32, #tpu.memory_space<vmem>>, vector<1x8xf32>
    %519 = vector.extract_strided_slice %426 {offsets = [0, 6], sizes = [2, 1], strides = [1, 1]} : vector<2x8xf32> to vector<2x1xf32>
    %520 = vector.broadcast %518 : vector<1x8xf32> to vector<2x8xf32>
    %521 = arith.mulf %517, %520 : vector<2x8xf32>
    %cst_148 = arith.constant dense<0.000000e+00> : vector<2xf32>
    %522 = vector.multi_reduction <add>, %521, %cst_148 [1] : vector<2x8xf32> to vector<2xf32>
    %523 = vector.shape_cast %522 : vector<2xf32> to vector<2x1xf32>
    %524 = arith.addf %519, %523 : vector<2x1xf32>
    %c6_i32_149 = arith.constant 6 : i32
    %525 = vector.broadcast %c6_i32_149 : i32 to vector<1x8xi32>
    %526 = arith.cmpi eq, %5, %525 : vector<1x8xi32>
    %527 = math.tanh %524 : vector<2x1xf32>
    %528 = vector.shape_cast %526 : vector<1x8xi1> to vector<1x8xi1>
    %529 = vector.broadcast %528 : vector<1x8xi1> to vector<2x8xi1>
    %530 = vector.shape_cast %527 : vector<2x1xf32> to vector<2x1xf32>
    %531 = vector.broadcast %530 : vector<2x1xf32> to vector<2x8xf32>
    %532 = arith.select %529, %531, %517 : vector<2x8xi1>, vector<2x8xf32>
    %c7_150 = arith.constant 7 : index
    %c0_151 = arith.constant 0 : index
    %533 = vector.load %arg6[%c7_150, %c0_151] : memref<8x8xf32, #tpu.memory_space<vmem>>, vector<1x8xf32>
    %534 = vector.extract_strided_slice %426 {offsets = [0, 7], sizes = [2, 1], strides = [1, 1]} : vector<2x8xf32> to vector<2x1xf32>
    %535 = vector.broadcast %533 : vector<1x8xf32> to vector<2x8xf32>
    %536 = arith.mulf %532, %535 : vector<2x8xf32>
    %cst_152 = arith.constant dense<0.000000e+00> : vector<2xf32>
    %537 = vector.multi_reduction <add>, %536, %cst_152 [1] : vector<2x8xf32> to vector<2xf32>
    %538 = vector.shape_cast %537 : vector<2xf32> to vector<2x1xf32>
    %539 = arith.addf %534, %538 : vector<2x1xf32>
    %c7_i32_153 = arith.constant 7 : i32
    %540 = vector.broadcast %c7_i32_153 : i32 to vector<1x8xi32>
    %541 = arith.cmpi eq, %5, %540 : vector<1x8xi32>
    %542 = math.tanh %539 : vector<2x1xf32>
    %543 = vector.shape_cast %541 : vector<1x8xi1> to vector<1x8xi1>
    %544 = vector.broadcast %543 : vector<1x8xi1> to vector<2x8xi1>
    %545 = vector.shape_cast %542 : vector<2x1xf32> to vector<2x1xf32>
    %546 = vector.broadcast %545 : vector<2x1xf32> to vector<2x8xf32>
    %547 = arith.select %544, %546, %532 : vector<2x8xi1>, vector<2x8xf32>
    %548 = vector.extract_strided_slice %425 {offsets = [0, 8], sizes = [2, 8], strides = [1, 1]} : vector<2x16xf32> to vector<2x8xf32>
    %cst_154 = arith.constant dense<0.000000e+00> : vector<2x8xf32>
    %549 = tpu.matmul %547, %4, %cst_154 {dimension_numbers = #tpu.dot_dimension_numbers<[1], [0], [0], [1], [0, 0, 1, 1], [], []>} : vector<2x8xf32>, vector<8x8xf32>, vector<2x8xf32> -> vector<2x8xf32>
    %550 = arith.addf %548, %549 : vector<2x8xf32>
    %551 = arith.index_cast %c3_i32_117 : i32 to index
    %c0_155 = arith.constant 0 : index
    %c0_156 = arith.constant 0 : index
    %552 = vector.load %arg7[%551, %c0_155, %c0_156] : memref<7x2x8xf32, #tpu.memory_space<vmem>>, vector<1x2x8xf32>
    %553 = vector.shape_cast %552 : vector<1x2x8xf32> to vector<2x8xf32>
    %554 = vector.shape_cast %550 : vector<2x8xf32> to vector<1x2x8xf32>
    tpu.vector_store %arg7[%551, %c0_155, %c0_156], %554 {strides = array<i32>} : memref<7x2x8xf32, #tpu.memory_space<vmem>>, vector<1x2x8xf32>,
    %555 = arith.index_cast %c3_i32_117 : i32 to index
    %c0_157 = arith.constant 0 : index
    %c0_158 = arith.constant 0 : index
    %556 = vector.load %arg8[%555, %c0_157, %c0_158] : memref<7x2x8xf32, #tpu.memory_space<vmem>>, vector<1x2x8xf32>
    %557 = vector.shape_cast %556 : vector<1x2x8xf32> to vector<2x8xf32>
    %558 = vector.shape_cast %547 : vector<2x8xf32> to vector<1x2x8xf32>
    tpu.vector_store %arg8[%555, %c0_157, %c0_158], %558 {strides = array<i32>} : memref<7x2x8xf32, #tpu.memory_space<vmem>>, vector<1x2x8xf32>,
    %c4_i32_159 = arith.constant 4 : i32
    %559 = arith.index_cast %c4_i32_159 : i32 to index
    %c0_160 = arith.constant 0 : index
    %c0_161 = arith.constant 0 : index
    %560 = vector.load %arg2[%559, %c0_160, %c0_161] : memref<7x2x16xf32, #tpu.memory_space<vmem>>, vector<1x2x16xf32>
    %561 = vector.shape_cast %560 : vector<1x2x16xf32> to vector<2x16xf32>
    %cst_162 = arith.constant dense<0.000000e+00> : vector<2x16xf32>
    %562 = tpu.matmul %550, %3, %cst_162 {dimension_numbers = #tpu.dot_dimension_numbers<[1], [0], [0], [1], [0, 0, 1, 1], [], []>} : vector<2x8xf32>, vector<8x16xf32>, vector<2x16xf32> -> vector<2x16xf32>
    %563 = arith.addf %561, %562 : vector<2x16xf32>
    %564 = vector.extract_strided_slice %563 {offsets = [0, 0], sizes = [2, 8], strides = [1, 1]} : vector<2x16xf32> to vector<2x8xf32>
    %cst_163 = arith.constant 0.000000e+00 : f32
    %565 = vector.broadcast %cst_163 : f32 to vector<2x8xf32>
    %c0_164 = arith.constant 0 : index
    %c0_165 = arith.constant 0 : index
    %566 = vector.load %arg6[%c0_164, %c0_165] : memref<8x8xf32, #tpu.memory_space<vmem>>, vector<1x8xf32>
    %567 = vector.extract_strided_slice %564 {offsets = [0, 0], sizes = [2, 1], strides = [1, 1]} : vector<2x8xf32> to vector<2x1xf32>
    %568 = vector.broadcast %566 : vector<1x8xf32> to vector<2x8xf32>
    %569 = arith.mulf %565, %568 : vector<2x8xf32>
    %cst_166 = arith.constant dense<0.000000e+00> : vector<2xf32>
    %570 = vector.multi_reduction <add>, %569, %cst_166 [1] : vector<2x8xf32> to vector<2xf32>
    %571 = vector.shape_cast %570 : vector<2xf32> to vector<2x1xf32>
    %572 = arith.addf %567, %571 : vector<2x1xf32>
    %c0_i32_167 = arith.constant 0 : i32
    %573 = vector.broadcast %c0_i32_167 : i32 to vector<1x8xi32>
    %574 = arith.cmpi eq, %5, %573 : vector<1x8xi32>
    %575 = math.tanh %572 : vector<2x1xf32>
    %576 = vector.shape_cast %574 : vector<1x8xi1> to vector<1x8xi1>
    %577 = vector.broadcast %576 : vector<1x8xi1> to vector<2x8xi1>
    %578 = vector.shape_cast %575 : vector<2x1xf32> to vector<2x1xf32>
    %579 = vector.broadcast %578 : vector<2x1xf32> to vector<2x8xf32>
    %580 = arith.select %577, %579, %565 : vector<2x8xi1>, vector<2x8xf32>
    %c1_168 = arith.constant 1 : index
    %c0_169 = arith.constant 0 : index
    %581 = vector.load %arg6[%c1_168, %c0_169] : memref<8x8xf32, #tpu.memory_space<vmem>>, vector<1x8xf32>
    %582 = vector.extract_strided_slice %564 {offsets = [0, 1], sizes = [2, 1], strides = [1, 1]} : vector<2x8xf32> to vector<2x1xf32>
    %583 = vector.broadcast %581 : vector<1x8xf32> to vector<2x8xf32>
    %584 = arith.mulf %580, %583 : vector<2x8xf32>
    %cst_170 = arith.constant dense<0.000000e+00> : vector<2xf32>
    %585 = vector.multi_reduction <add>, %584, %cst_170 [1] : vector<2x8xf32> to vector<2xf32>
    %586 = vector.shape_cast %585 : vector<2xf32> to vector<2x1xf32>
    %587 = arith.addf %582, %586 : vector<2x1xf32>
    %c1_i32_171 = arith.constant 1 : i32
    %588 = vector.broadcast %c1_i32_171 : i32 to vector<1x8xi32>
    %589 = arith.cmpi eq, %5, %588 : vector<1x8xi32>
    %590 = math.tanh %587 : vector<2x1xf32>
    %591 = vector.shape_cast %589 : vector<1x8xi1> to vector<1x8xi1>
    %592 = vector.broadcast %591 : vector<1x8xi1> to vector<2x8xi1>
    %593 = vector.shape_cast %590 : vector<2x1xf32> to vector<2x1xf32>
    %594 = vector.broadcast %593 : vector<2x1xf32> to vector<2x8xf32>
    %595 = arith.select %592, %594, %580 : vector<2x8xi1>, vector<2x8xf32>
    %c2_172 = arith.constant 2 : index
    %c0_173 = arith.constant 0 : index
    %596 = vector.load %arg6[%c2_172, %c0_173] : memref<8x8xf32, #tpu.memory_space<vmem>>, vector<1x8xf32>
    %597 = vector.extract_strided_slice %564 {offsets = [0, 2], sizes = [2, 1], strides = [1, 1]} : vector<2x8xf32> to vector<2x1xf32>
    %598 = vector.broadcast %596 : vector<1x8xf32> to vector<2x8xf32>
    %599 = arith.mulf %595, %598 : vector<2x8xf32>
    %cst_174 = arith.constant dense<0.000000e+00> : vector<2xf32>
    %600 = vector.multi_reduction <add>, %599, %cst_174 [1] : vector<2x8xf32> to vector<2xf32>
    %601 = vector.shape_cast %600 : vector<2xf32> to vector<2x1xf32>
    %602 = arith.addf %597, %601 : vector<2x1xf32>
    %c2_i32_175 = arith.constant 2 : i32
    %603 = vector.broadcast %c2_i32_175 : i32 to vector<1x8xi32>
    %604 = arith.cmpi eq, %5, %603 : vector<1x8xi32>
    %605 = math.tanh %602 : vector<2x1xf32>
    %606 = vector.shape_cast %604 : vector<1x8xi1> to vector<1x8xi1>
    %607 = vector.broadcast %606 : vector<1x8xi1> to vector<2x8xi1>
    %608 = vector.shape_cast %605 : vector<2x1xf32> to vector<2x1xf32>
    %609 = vector.broadcast %608 : vector<2x1xf32> to vector<2x8xf32>
    %610 = arith.select %607, %609, %595 : vector<2x8xi1>, vector<2x8xf32>
    %c3_176 = arith.constant 3 : index
    %c0_177 = arith.constant 0 : index
    %611 = vector.load %arg6[%c3_176, %c0_177] : memref<8x8xf32, #tpu.memory_space<vmem>>, vector<1x8xf32>
    %612 = vector.extract_strided_slice %564 {offsets = [0, 3], sizes = [2, 1], strides = [1, 1]} : vector<2x8xf32> to vector<2x1xf32>
    %613 = vector.broadcast %611 : vector<1x8xf32> to vector<2x8xf32>
    %614 = arith.mulf %610, %613 : vector<2x8xf32>
    %cst_178 = arith.constant dense<0.000000e+00> : vector<2xf32>
    %615 = vector.multi_reduction <add>, %614, %cst_178 [1] : vector<2x8xf32> to vector<2xf32>
    %616 = vector.shape_cast %615 : vector<2xf32> to vector<2x1xf32>
    %617 = arith.addf %612, %616 : vector<2x1xf32>
    %c3_i32_179 = arith.constant 3 : i32
    %618 = vector.broadcast %c3_i32_179 : i32 to vector<1x8xi32>
    %619 = arith.cmpi eq, %5, %618 : vector<1x8xi32>
    %620 = math.tanh %617 : vector<2x1xf32>
    %621 = vector.shape_cast %619 : vector<1x8xi1> to vector<1x8xi1>
    %622 = vector.broadcast %621 : vector<1x8xi1> to vector<2x8xi1>
    %623 = vector.shape_cast %620 : vector<2x1xf32> to vector<2x1xf32>
    %624 = vector.broadcast %623 : vector<2x1xf32> to vector<2x8xf32>
    %625 = arith.select %622, %624, %610 : vector<2x8xi1>, vector<2x8xf32>
    %c4_180 = arith.constant 4 : index
    %c0_181 = arith.constant 0 : index
    %626 = vector.load %arg6[%c4_180, %c0_181] : memref<8x8xf32, #tpu.memory_space<vmem>>, vector<1x8xf32>
    %627 = vector.extract_strided_slice %564 {offsets = [0, 4], sizes = [2, 1], strides = [1, 1]} : vector<2x8xf32> to vector<2x1xf32>
    %628 = vector.broadcast %626 : vector<1x8xf32> to vector<2x8xf32>
    %629 = arith.mulf %625, %628 : vector<2x8xf32>
    %cst_182 = arith.constant dense<0.000000e+00> : vector<2xf32>
    %630 = vector.multi_reduction <add>, %629, %cst_182 [1] : vector<2x8xf32> to vector<2xf32>
    %631 = vector.shape_cast %630 : vector<2xf32> to vector<2x1xf32>
    %632 = arith.addf %627, %631 : vector<2x1xf32>
    %c4_i32_183 = arith.constant 4 : i32
    %633 = vector.broadcast %c4_i32_183 : i32 to vector<1x8xi32>
    %634 = arith.cmpi eq, %5, %633 : vector<1x8xi32>
    %635 = math.tanh %632 : vector<2x1xf32>
    %636 = vector.shape_cast %634 : vector<1x8xi1> to vector<1x8xi1>
    %637 = vector.broadcast %636 : vector<1x8xi1> to vector<2x8xi1>
    %638 = vector.shape_cast %635 : vector<2x1xf32> to vector<2x1xf32>
    %639 = vector.broadcast %638 : vector<2x1xf32> to vector<2x8xf32>
    %640 = arith.select %637, %639, %625 : vector<2x8xi1>, vector<2x8xf32>
    %c5_184 = arith.constant 5 : index
    %c0_185 = arith.constant 0 : index
    %641 = vector.load %arg6[%c5_184, %c0_185] : memref<8x8xf32, #tpu.memory_space<vmem>>, vector<1x8xf32>
    %642 = vector.extract_strided_slice %564 {offsets = [0, 5], sizes = [2, 1], strides = [1, 1]} : vector<2x8xf32> to vector<2x1xf32>
    %643 = vector.broadcast %641 : vector<1x8xf32> to vector<2x8xf32>
    %644 = arith.mulf %640, %643 : vector<2x8xf32>
    %cst_186 = arith.constant dense<0.000000e+00> : vector<2xf32>
    %645 = vector.multi_reduction <add>, %644, %cst_186 [1] : vector<2x8xf32> to vector<2xf32>
    %646 = vector.shape_cast %645 : vector<2xf32> to vector<2x1xf32>
    %647 = arith.addf %642, %646 : vector<2x1xf32>
    %c5_i32_187 = arith.constant 5 : i32
    %648 = vector.broadcast %c5_i32_187 : i32 to vector<1x8xi32>
    %649 = arith.cmpi eq, %5, %648 : vector<1x8xi32>
    %650 = math.tanh %647 : vector<2x1xf32>
    %651 = vector.shape_cast %649 : vector<1x8xi1> to vector<1x8xi1>
    %652 = vector.broadcast %651 : vector<1x8xi1> to vector<2x8xi1>
    %653 = vector.shape_cast %650 : vector<2x1xf32> to vector<2x1xf32>
    %654 = vector.broadcast %653 : vector<2x1xf32> to vector<2x8xf32>
    %655 = arith.select %652, %654, %640 : vector<2x8xi1>, vector<2x8xf32>
    %c6_188 = arith.constant 6 : index
    %c0_189 = arith.constant 0 : index
    %656 = vector.load %arg6[%c6_188, %c0_189] : memref<8x8xf32, #tpu.memory_space<vmem>>, vector<1x8xf32>
    %657 = vector.extract_strided_slice %564 {offsets = [0, 6], sizes = [2, 1], strides = [1, 1]} : vector<2x8xf32> to vector<2x1xf32>
    %658 = vector.broadcast %656 : vector<1x8xf32> to vector<2x8xf32>
    %659 = arith.mulf %655, %658 : vector<2x8xf32>
    %cst_190 = arith.constant dense<0.000000e+00> : vector<2xf32>
    %660 = vector.multi_reduction <add>, %659, %cst_190 [1] : vector<2x8xf32> to vector<2xf32>
    %661 = vector.shape_cast %660 : vector<2xf32> to vector<2x1xf32>
    %662 = arith.addf %657, %661 : vector<2x1xf32>
    %c6_i32_191 = arith.constant 6 : i32
    %663 = vector.broadcast %c6_i32_191 : i32 to vector<1x8xi32>
    %664 = arith.cmpi eq, %5, %663 : vector<1x8xi32>
    %665 = math.tanh %662 : vector<2x1xf32>
    %666 = vector.shape_cast %664 : vector<1x8xi1> to vector<1x8xi1>
    %667 = vector.broadcast %666 : vector<1x8xi1> to vector<2x8xi1>
    %668 = vector.shape_cast %665 : vector<2x1xf32> to vector<2x1xf32>
    %669 = vector.broadcast %668 : vector<2x1xf32> to vector<2x8xf32>
    %670 = arith.select %667, %669, %655 : vector<2x8xi1>, vector<2x8xf32>
    %c7_192 = arith.constant 7 : index
    %c0_193 = arith.constant 0 : index
    %671 = vector.load %arg6[%c7_192, %c0_193] : memref<8x8xf32, #tpu.memory_space<vmem>>, vector<1x8xf32>
    %672 = vector.extract_strided_slice %564 {offsets = [0, 7], sizes = [2, 1], strides = [1, 1]} : vector<2x8xf32> to vector<2x1xf32>
    %673 = vector.broadcast %671 : vector<1x8xf32> to vector<2x8xf32>
    %674 = arith.mulf %670, %673 : vector<2x8xf32>
    %cst_194 = arith.constant dense<0.000000e+00> : vector<2xf32>
    %675 = vector.multi_reduction <add>, %674, %cst_194 [1] : vector<2x8xf32> to vector<2xf32>
    %676 = vector.shape_cast %675 : vector<2xf32> to vector<2x1xf32>
    %677 = arith.addf %672, %676 : vector<2x1xf32>
    %c7_i32_195 = arith.constant 7 : i32
    %678 = vector.broadcast %c7_i32_195 : i32 to vector<1x8xi32>
    %679 = arith.cmpi eq, %5, %678 : vector<1x8xi32>
    %680 = math.tanh %677 : vector<2x1xf32>
    %681 = vector.shape_cast %679 : vector<1x8xi1> to vector<1x8xi1>
    %682 = vector.broadcast %681 : vector<1x8xi1> to vector<2x8xi1>
    %683 = vector.shape_cast %680 : vector<2x1xf32> to vector<2x1xf32>
    %684 = vector.broadcast %683 : vector<2x1xf32> to vector<2x8xf32>
    %685 = arith.select %682, %684, %670 : vector<2x8xi1>, vector<2x8xf32>
    %686 = vector.extract_strided_slice %563 {offsets = [0, 8], sizes = [2, 8], strides = [1, 1]} : vector<2x16xf32> to vector<2x8xf32>
    %cst_196 = arith.constant dense<0.000000e+00> : vector<2x8xf32>
    %687 = tpu.matmul %685, %4, %cst_196 {dimension_numbers = #tpu.dot_dimension_numbers<[1], [0], [0], [1], [0, 0, 1, 1], [], []>} : vector<2x8xf32>, vector<8x8xf32>, vector<2x8xf32> -> vector<2x8xf32>
    %688 = arith.addf %686, %687 : vector<2x8xf32>
    %689 = arith.index_cast %c4_i32_159 : i32 to index
    %c0_197 = arith.constant 0 : index
    %c0_198 = arith.constant 0 : index
    %690 = vector.load %arg7[%689, %c0_197, %c0_198] : memref<7x2x8xf32, #tpu.memory_space<vmem>>, vector<1x2x8xf32>
    %691 = vector.shape_cast %690 : vector<1x2x8xf32> to vector<2x8xf32>
    %692 = vector.shape_cast %688 : vector<2x8xf32> to vector<1x2x8xf32>
    tpu.vector_store %arg7[%689, %c0_197, %c0_198], %692 {strides = array<i32>} : memref<7x2x8xf32, #tpu.memory_space<vmem>>, vector<1x2x8xf32>,
    %693 = arith.index_cast %c4_i32_159 : i32 to index
    %c0_199 = arith.constant 0 : index
    %c0_200 = arith.constant 0 : index
    %694 = vector.load %arg8[%693, %c0_199, %c0_200] : memref<7x2x8xf32, #tpu.memory_space<vmem>>, vector<1x2x8xf32>
    %695 = vector.shape_cast %694 : vector<1x2x8xf32> to vector<2x8xf32>
    %696 = vector.shape_cast %685 : vector<2x8xf32> to vector<1x2x8xf32>
    tpu.vector_store %arg8[%693, %c0_199, %c0_200], %696 {strides = array<i32>} : memref<7x2x8xf32, #tpu.memory_space<vmem>>, vector<1x2x8xf32>,
    %c5_i32_201 = arith.constant 5 : i32
    %697 = arith.index_cast %c5_i32_201 : i32 to index
    %c0_202 = arith.constant 0 : index
    %c0_203 = arith.constant 0 : index
    %698 = vector.load %arg2[%697, %c0_202, %c0_203] : memref<7x2x16xf32, #tpu.memory_space<vmem>>, vector<1x2x16xf32>
    %699 = vector.shape_cast %698 : vector<1x2x16xf32> to vector<2x16xf32>
    %cst_204 = arith.constant dense<0.000000e+00> : vector<2x16xf32>
    %700 = tpu.matmul %688, %3, %cst_204 {dimension_numbers = #tpu.dot_dimension_numbers<[1], [0], [0], [1], [0, 0, 1, 1], [], []>} : vector<2x8xf32>, vector<8x16xf32>, vector<2x16xf32> -> vector<2x16xf32>
    %701 = arith.addf %699, %700 : vector<2x16xf32>
    %702 = vector.extract_strided_slice %701 {offsets = [0, 0], sizes = [2, 8], strides = [1, 1]} : vector<2x16xf32> to vector<2x8xf32>
    %cst_205 = arith.constant 0.000000e+00 : f32
    %703 = vector.broadcast %cst_205 : f32 to vector<2x8xf32>
    %c0_206 = arith.constant 0 : index
    %c0_207 = arith.constant 0 : index
    %704 = vector.load %arg6[%c0_206, %c0_207] : memref<8x8xf32, #tpu.memory_space<vmem>>, vector<1x8xf32>
    %705 = vector.extract_strided_slice %702 {offsets = [0, 0], sizes = [2, 1], strides = [1, 1]} : vector<2x8xf32> to vector<2x1xf32>
    %706 = vector.broadcast %704 : vector<1x8xf32> to vector<2x8xf32>
    %707 = arith.mulf %703, %706 : vector<2x8xf32>
    %cst_208 = arith.constant dense<0.000000e+00> : vector<2xf32>
    %708 = vector.multi_reduction <add>, %707, %cst_208 [1] : vector<2x8xf32> to vector<2xf32>
    %709 = vector.shape_cast %708 : vector<2xf32> to vector<2x1xf32>
    %710 = arith.addf %705, %709 : vector<2x1xf32>
    %c0_i32_209 = arith.constant 0 : i32
    %711 = vector.broadcast %c0_i32_209 : i32 to vector<1x8xi32>
    %712 = arith.cmpi eq, %5, %711 : vector<1x8xi32>
    %713 = math.tanh %710 : vector<2x1xf32>
    %714 = vector.shape_cast %712 : vector<1x8xi1> to vector<1x8xi1>
    %715 = vector.broadcast %714 : vector<1x8xi1> to vector<2x8xi1>
    %716 = vector.shape_cast %713 : vector<2x1xf32> to vector<2x1xf32>
    %717 = vector.broadcast %716 : vector<2x1xf32> to vector<2x8xf32>
    %718 = arith.select %715, %717, %703 : vector<2x8xi1>, vector<2x8xf32>
    %c1_210 = arith.constant 1 : index
    %c0_211 = arith.constant 0 : index
    %719 = vector.load %arg6[%c1_210, %c0_211] : memref<8x8xf32, #tpu.memory_space<vmem>>, vector<1x8xf32>
    %720 = vector.extract_strided_slice %702 {offsets = [0, 1], sizes = [2, 1], strides = [1, 1]} : vector<2x8xf32> to vector<2x1xf32>
    %721 = vector.broadcast %719 : vector<1x8xf32> to vector<2x8xf32>
    %722 = arith.mulf %718, %721 : vector<2x8xf32>
    %cst_212 = arith.constant dense<0.000000e+00> : vector<2xf32>
    %723 = vector.multi_reduction <add>, %722, %cst_212 [1] : vector<2x8xf32> to vector<2xf32>
    %724 = vector.shape_cast %723 : vector<2xf32> to vector<2x1xf32>
    %725 = arith.addf %720, %724 : vector<2x1xf32>
    %c1_i32_213 = arith.constant 1 : i32
    %726 = vector.broadcast %c1_i32_213 : i32 to vector<1x8xi32>
    %727 = arith.cmpi eq, %5, %726 : vector<1x8xi32>
    %728 = math.tanh %725 : vector<2x1xf32>
    %729 = vector.shape_cast %727 : vector<1x8xi1> to vector<1x8xi1>
    %730 = vector.broadcast %729 : vector<1x8xi1> to vector<2x8xi1>
    %731 = vector.shape_cast %728 : vector<2x1xf32> to vector<2x1xf32>
    %732 = vector.broadcast %731 : vector<2x1xf32> to vector<2x8xf32>
    %733 = arith.select %730, %732, %718 : vector<2x8xi1>, vector<2x8xf32>
    %c2_214 = arith.constant 2 : index
    %c0_215 = arith.constant 0 : index
    %734 = vector.load %arg6[%c2_214, %c0_215] : memref<8x8xf32, #tpu.memory_space<vmem>>, vector<1x8xf32>
    %735 = vector.extract_strided_slice %702 {offsets = [0, 2], sizes = [2, 1], strides = [1, 1]} : vector<2x8xf32> to vector<2x1xf32>
    %736 = vector.broadcast %734 : vector<1x8xf32> to vector<2x8xf32>
    %737 = arith.mulf %733, %736 : vector<2x8xf32>
    %cst_216 = arith.constant dense<0.000000e+00> : vector<2xf32>
    %738 = vector.multi_reduction <add>, %737, %cst_216 [1] : vector<2x8xf32> to vector<2xf32>
    %739 = vector.shape_cast %738 : vector<2xf32> to vector<2x1xf32>
    %740 = arith.addf %735, %739 : vector<2x1xf32>
    %c2_i32_217 = arith.constant 2 : i32
    %741 = vector.broadcast %c2_i32_217 : i32 to vector<1x8xi32>
    %742 = arith.cmpi eq, %5, %741 : vector<1x8xi32>
    %743 = math.tanh %740 : vector<2x1xf32>
    %744 = vector.shape_cast %742 : vector<1x8xi1> to vector<1x8xi1>
    %745 = vector.broadcast %744 : vector<1x8xi1> to vector<2x8xi1>
    %746 = vector.shape_cast %743 : vector<2x1xf32> to vector<2x1xf32>
    %747 = vector.broadcast %746 : vector<2x1xf32> to vector<2x8xf32>
    %748 = arith.select %745, %747, %733 : vector<2x8xi1>, vector<2x8xf32>
    %c3_218 = arith.constant 3 : index
    %c0_219 = arith.constant 0 : index
    %749 = vector.load %arg6[%c3_218, %c0_219] : memref<8x8xf32, #tpu.memory_space<vmem>>, vector<1x8xf32>
    %750 = vector.extract_strided_slice %702 {offsets = [0, 3], sizes = [2, 1], strides = [1, 1]} : vector<2x8xf32> to vector<2x1xf32>
    %751 = vector.broadcast %749 : vector<1x8xf32> to vector<2x8xf32>
    %752 = arith.mulf %748, %751 : vector<2x8xf32>
    %cst_220 = arith.constant dense<0.000000e+00> : vector<2xf32>
    %753 = vector.multi_reduction <add>, %752, %cst_220 [1] : vector<2x8xf32> to vector<2xf32>
    %754 = vector.shape_cast %753 : vector<2xf32> to vector<2x1xf32>
    %755 = arith.addf %750, %754 : vector<2x1xf32>
    %c3_i32_221 = arith.constant 3 : i32
    %756 = vector.broadcast %c3_i32_221 : i32 to vector<1x8xi32>
    %757 = arith.cmpi eq, %5, %756 : vector<1x8xi32>
    %758 = math.tanh %755 : vector<2x1xf32>
    %759 = vector.shape_cast %757 : vector<1x8xi1> to vector<1x8xi1>
    %760 = vector.broadcast %759 : vector<1x8xi1> to vector<2x8xi1>
    %761 = vector.shape_cast %758 : vector<2x1xf32> to vector<2x1xf32>
    %762 = vector.broadcast %761 : vector<2x1xf32> to vector<2x8xf32>
    %763 = arith.select %760, %762, %748 : vector<2x8xi1>, vector<2x8xf32>
    %c4_222 = arith.constant 4 : index
    %c0_223 = arith.constant 0 : index
    %764 = vector.load %arg6[%c4_222, %c0_223] : memref<8x8xf32, #tpu.memory_space<vmem>>, vector<1x8xf32>
    %765 = vector.extract_strided_slice %702 {offsets = [0, 4], sizes = [2, 1], strides = [1, 1]} : vector<2x8xf32> to vector<2x1xf32>
    %766 = vector.broadcast %764 : vector<1x8xf32> to vector<2x8xf32>
    %767 = arith.mulf %763, %766 : vector<2x8xf32>
    %cst_224 = arith.constant dense<0.000000e+00> : vector<2xf32>
    %768 = vector.multi_reduction <add>, %767, %cst_224 [1] : vector<2x8xf32> to vector<2xf32>
    %769 = vector.shape_cast %768 : vector<2xf32> to vector<2x1xf32>
    %770 = arith.addf %765, %769 : vector<2x1xf32>
    %c4_i32_225 = arith.constant 4 : i32
    %771 = vector.broadcast %c4_i32_225 : i32 to vector<1x8xi32>
    %772 = arith.cmpi eq, %5, %771 : vector<1x8xi32>
    %773 = math.tanh %770 : vector<2x1xf32>
    %774 = vector.shape_cast %772 : vector<1x8xi1> to vector<1x8xi1>
    %775 = vector.broadcast %774 : vector<1x8xi1> to vector<2x8xi1>
    %776 = vector.shape_cast %773 : vector<2x1xf32> to vector<2x1xf32>
    %777 = vector.broadcast %776 : vector<2x1xf32> to vector<2x8xf32>
    %778 = arith.select %775, %777, %763 : vector<2x8xi1>, vector<2x8xf32>
    %c5_226 = arith.constant 5 : index
    %c0_227 = arith.constant 0 : index
    %779 = vector.load %arg6[%c5_226, %c0_227] : memref<8x8xf32, #tpu.memory_space<vmem>>, vector<1x8xf32>
    %780 = vector.extract_strided_slice %702 {offsets = [0, 5], sizes = [2, 1], strides = [1, 1]} : vector<2x8xf32> to vector<2x1xf32>
    %781 = vector.broadcast %779 : vector<1x8xf32> to vector<2x8xf32>
    %782 = arith.mulf %778, %781 : vector<2x8xf32>
    %cst_228 = arith.constant dense<0.000000e+00> : vector<2xf32>
    %783 = vector.multi_reduction <add>, %782, %cst_228 [1] : vector<2x8xf32> to vector<2xf32>
    %784 = vector.shape_cast %783 : vector<2xf32> to vector<2x1xf32>
    %785 = arith.addf %780, %784 : vector<2x1xf32>
    %c5_i32_229 = arith.constant 5 : i32
    %786 = vector.broadcast %c5_i32_229 : i32 to vector<1x8xi32>
    %787 = arith.cmpi eq, %5, %786 : vector<1x8xi32>
    %788 = math.tanh %785 : vector<2x1xf32>
    %789 = vector.shape_cast %787 : vector<1x8xi1> to vector<1x8xi1>
    %790 = vector.broadcast %789 : vector<1x8xi1> to vector<2x8xi1>
    %791 = vector.shape_cast %788 : vector<2x1xf32> to vector<2x1xf32>
    %792 = vector.broadcast %791 : vector<2x1xf32> to vector<2x8xf32>
    %793 = arith.select %790, %792, %778 : vector<2x8xi1>, vector<2x8xf32>
    %c6_230 = arith.constant 6 : index
    %c0_231 = arith.constant 0 : index
    %794 = vector.load %arg6[%c6_230, %c0_231] : memref<8x8xf32, #tpu.memory_space<vmem>>, vector<1x8xf32>
    %795 = vector.extract_strided_slice %702 {offsets = [0, 6], sizes = [2, 1], strides = [1, 1]} : vector<2x8xf32> to vector<2x1xf32>
    %796 = vector.broadcast %794 : vector<1x8xf32> to vector<2x8xf32>
    %797 = arith.mulf %793, %796 : vector<2x8xf32>
    %cst_232 = arith.constant dense<0.000000e+00> : vector<2xf32>
    %798 = vector.multi_reduction <add>, %797, %cst_232 [1] : vector<2x8xf32> to vector<2xf32>
    %799 = vector.shape_cast %798 : vector<2xf32> to vector<2x1xf32>
    %800 = arith.addf %795, %799 : vector<2x1xf32>
    %c6_i32_233 = arith.constant 6 : i32
    %801 = vector.broadcast %c6_i32_233 : i32 to vector<1x8xi32>
    %802 = arith.cmpi eq, %5, %801 : vector<1x8xi32>
    %803 = math.tanh %800 : vector<2x1xf32>
    %804 = vector.shape_cast %802 : vector<1x8xi1> to vector<1x8xi1>
    %805 = vector.broadcast %804 : vector<1x8xi1> to vector<2x8xi1>
    %806 = vector.shape_cast %803 : vector<2x1xf32> to vector<2x1xf32>
    %807 = vector.broadcast %806 : vector<2x1xf32> to vector<2x8xf32>
    %808 = arith.select %805, %807, %793 : vector<2x8xi1>, vector<2x8xf32>
    %c7_234 = arith.constant 7 : index
    %c0_235 = arith.constant 0 : index
    %809 = vector.load %arg6[%c7_234, %c0_235] : memref<8x8xf32, #tpu.memory_space<vmem>>, vector<1x8xf32>
    %810 = vector.extract_strided_slice %702 {offsets = [0, 7], sizes = [2, 1], strides = [1, 1]} : vector<2x8xf32> to vector<2x1xf32>
    %811 = vector.broadcast %809 : vector<1x8xf32> to vector<2x8xf32>
    %812 = arith.mulf %808, %811 : vector<2x8xf32>
    %cst_236 = arith.constant dense<0.000000e+00> : vector<2xf32>
    %813 = vector.multi_reduction <add>, %812, %cst_236 [1] : vector<2x8xf32> to vector<2xf32>
    %814 = vector.shape_cast %813 : vector<2xf32> to vector<2x1xf32>
    %815 = arith.addf %810, %814 : vector<2x1xf32>
    %c7_i32_237 = arith.constant 7 : i32
    %816 = vector.broadcast %c7_i32_237 : i32 to vector<1x8xi32>
    %817 = arith.cmpi eq, %5, %816 : vector<1x8xi32>
    %818 = math.tanh %815 : vector<2x1xf32>
    %819 = vector.shape_cast %817 : vector<1x8xi1> to vector<1x8xi1>
    %820 = vector.broadcast %819 : vector<1x8xi1> to vector<2x8xi1>
    %821 = vector.shape_cast %818 : vector<2x1xf32> to vector<2x1xf32>
    %822 = vector.broadcast %821 : vector<2x1xf32> to vector<2x8xf32>
    %823 = arith.select %820, %822, %808 : vector<2x8xi1>, vector<2x8xf32>
    %824 = vector.extract_strided_slice %701 {offsets = [0, 8], sizes = [2, 8], strides = [1, 1]} : vector<2x16xf32> to vector<2x8xf32>
    %cst_238 = arith.constant dense<0.000000e+00> : vector<2x8xf32>
    %825 = tpu.matmul %823, %4, %cst_238 {dimension_numbers = #tpu.dot_dimension_numbers<[1], [0], [0], [1], [0, 0, 1, 1], [], []>} : vector<2x8xf32>, vector<8x8xf32>, vector<2x8xf32> -> vector<2x8xf32>
    %826 = arith.addf %824, %825 : vector<2x8xf32>
    %827 = arith.index_cast %c5_i32_201 : i32 to index
    %c0_239 = arith.constant 0 : index
    %c0_240 = arith.constant 0 : index
    %828 = vector.load %arg7[%827, %c0_239, %c0_240] : memref<7x2x8xf32, #tpu.memory_space<vmem>>, vector<1x2x8xf32>
    %829 = vector.shape_cast %828 : vector<1x2x8xf32> to vector<2x8xf32>
    %830 = vector.shape_cast %826 : vector<2x8xf32> to vector<1x2x8xf32>
    tpu.vector_store %arg7[%827, %c0_239, %c0_240], %830 {strides = array<i32>} : memref<7x2x8xf32, #tpu.memory_space<vmem>>, vector<1x2x8xf32>,
    %831 = arith.index_cast %c5_i32_201 : i32 to index
    %c0_241 = arith.constant 0 : index
    %c0_242 = arith.constant 0 : index
    %832 = vector.load %arg8[%831, %c0_241, %c0_242] : memref<7x2x8xf32, #tpu.memory_space<vmem>>, vector<1x2x8xf32>
    %833 = vector.shape_cast %832 : vector<1x2x8xf32> to vector<2x8xf32>
    %834 = vector.shape_cast %823 : vector<2x8xf32> to vector<1x2x8xf32>
    tpu.vector_store %arg8[%831, %c0_241, %c0_242], %834 {strides = array<i32>} : memref<7x2x8xf32, #tpu.memory_space<vmem>>, vector<1x2x8xf32>,
    %c6_i32_243 = arith.constant 6 : i32
    %835 = arith.index_cast %c6_i32_243 : i32 to index
    %c0_244 = arith.constant 0 : index
    %c0_245 = arith.constant 0 : index
    %836 = vector.load %arg2[%835, %c0_244, %c0_245] : memref<7x2x16xf32, #tpu.memory_space<vmem>>, vector<1x2x16xf32>
    %837 = vector.shape_cast %836 : vector<1x2x16xf32> to vector<2x16xf32>
    %cst_246 = arith.constant dense<0.000000e+00> : vector<2x16xf32>
    %838 = tpu.matmul %826, %3, %cst_246 {dimension_numbers = #tpu.dot_dimension_numbers<[1], [0], [0], [1], [0, 0, 1, 1], [], []>} : vector<2x8xf32>, vector<8x16xf32>, vector<2x16xf32> -> vector<2x16xf32>
    %839 = arith.addf %837, %838 : vector<2x16xf32>
    %840 = vector.extract_strided_slice %839 {offsets = [0, 0], sizes = [2, 8], strides = [1, 1]} : vector<2x16xf32> to vector<2x8xf32>
    %cst_247 = arith.constant 0.000000e+00 : f32
    %841 = vector.broadcast %cst_247 : f32 to vector<2x8xf32>
    %c0_248 = arith.constant 0 : index
    %c0_249 = arith.constant 0 : index
    %842 = vector.load %arg6[%c0_248, %c0_249] : memref<8x8xf32, #tpu.memory_space<vmem>>, vector<1x8xf32>
    %843 = vector.extract_strided_slice %840 {offsets = [0, 0], sizes = [2, 1], strides = [1, 1]} : vector<2x8xf32> to vector<2x1xf32>
    %844 = vector.broadcast %842 : vector<1x8xf32> to vector<2x8xf32>
    %845 = arith.mulf %841, %844 : vector<2x8xf32>
    %cst_250 = arith.constant dense<0.000000e+00> : vector<2xf32>
    %846 = vector.multi_reduction <add>, %845, %cst_250 [1] : vector<2x8xf32> to vector<2xf32>
    %847 = vector.shape_cast %846 : vector<2xf32> to vector<2x1xf32>
    %848 = arith.addf %843, %847 : vector<2x1xf32>
    %c0_i32_251 = arith.constant 0 : i32
    %849 = vector.broadcast %c0_i32_251 : i32 to vector<1x8xi32>
    %850 = arith.cmpi eq, %5, %849 : vector<1x8xi32>
    %851 = math.tanh %848 : vector<2x1xf32>
    %852 = vector.shape_cast %850 : vector<1x8xi1> to vector<1x8xi1>
    %853 = vector.broadcast %852 : vector<1x8xi1> to vector<2x8xi1>
    %854 = vector.shape_cast %851 : vector<2x1xf32> to vector<2x1xf32>
    %855 = vector.broadcast %854 : vector<2x1xf32> to vector<2x8xf32>
    %856 = arith.select %853, %855, %841 : vector<2x8xi1>, vector<2x8xf32>
    %c1_252 = arith.constant 1 : index
    %c0_253 = arith.constant 0 : index
    %857 = vector.load %arg6[%c1_252, %c0_253] : memref<8x8xf32, #tpu.memory_space<vmem>>, vector<1x8xf32>
    %858 = vector.extract_strided_slice %840 {offsets = [0, 1], sizes = [2, 1], strides = [1, 1]} : vector<2x8xf32> to vector<2x1xf32>
    %859 = vector.broadcast %857 : vector<1x8xf32> to vector<2x8xf32>
    %860 = arith.mulf %856, %859 : vector<2x8xf32>
    %cst_254 = arith.constant dense<0.000000e+00> : vector<2xf32>
    %861 = vector.multi_reduction <add>, %860, %cst_254 [1] : vector<2x8xf32> to vector<2xf32>
    %862 = vector.shape_cast %861 : vector<2xf32> to vector<2x1xf32>
    %863 = arith.addf %858, %862 : vector<2x1xf32>
    %c1_i32_255 = arith.constant 1 : i32
    %864 = vector.broadcast %c1_i32_255 : i32 to vector<1x8xi32>
    %865 = arith.cmpi eq, %5, %864 : vector<1x8xi32>
    %866 = math.tanh %863 : vector<2x1xf32>
    %867 = vector.shape_cast %865 : vector<1x8xi1> to vector<1x8xi1>
    %868 = vector.broadcast %867 : vector<1x8xi1> to vector<2x8xi1>
    %869 = vector.shape_cast %866 : vector<2x1xf32> to vector<2x1xf32>
    %870 = vector.broadcast %869 : vector<2x1xf32> to vector<2x8xf32>
    %871 = arith.select %868, %870, %856 : vector<2x8xi1>, vector<2x8xf32>
    %c2_256 = arith.constant 2 : index
    %c0_257 = arith.constant 0 : index
    %872 = vector.load %arg6[%c2_256, %c0_257] : memref<8x8xf32, #tpu.memory_space<vmem>>, vector<1x8xf32>
    %873 = vector.extract_strided_slice %840 {offsets = [0, 2], sizes = [2, 1], strides = [1, 1]} : vector<2x8xf32> to vector<2x1xf32>
    %874 = vector.broadcast %872 : vector<1x8xf32> to vector<2x8xf32>
    %875 = arith.mulf %871, %874 : vector<2x8xf32>
    %cst_258 = arith.constant dense<0.000000e+00> : vector<2xf32>
    %876 = vector.multi_reduction <add>, %875, %cst_258 [1] : vector<2x8xf32> to vector<2xf32>
    %877 = vector.shape_cast %876 : vector<2xf32> to vector<2x1xf32>
    %878 = arith.addf %873, %877 : vector<2x1xf32>
    %c2_i32_259 = arith.constant 2 : i32
    %879 = vector.broadcast %c2_i32_259 : i32 to vector<1x8xi32>
    %880 = arith.cmpi eq, %5, %879 : vector<1x8xi32>
    %881 = math.tanh %878 : vector<2x1xf32>
    %882 = vector.shape_cast %880 : vector<1x8xi1> to vector<1x8xi1>
    %883 = vector.broadcast %882 : vector<1x8xi1> to vector<2x8xi1>
    %884 = vector.shape_cast %881 : vector<2x1xf32> to vector<2x1xf32>
    %885 = vector.broadcast %884 : vector<2x1xf32> to vector<2x8xf32>
    %886 = arith.select %883, %885, %871 : vector<2x8xi1>, vector<2x8xf32>
    %c3_260 = arith.constant 3 : index
    %c0_261 = arith.constant 0 : index
    %887 = vector.load %arg6[%c3_260, %c0_261] : memref<8x8xf32, #tpu.memory_space<vmem>>, vector<1x8xf32>
    %888 = vector.extract_strided_slice %840 {offsets = [0, 3], sizes = [2, 1], strides = [1, 1]} : vector<2x8xf32> to vector<2x1xf32>
    %889 = vector.broadcast %887 : vector<1x8xf32> to vector<2x8xf32>
    %890 = arith.mulf %886, %889 : vector<2x8xf32>
    %cst_262 = arith.constant dense<0.000000e+00> : vector<2xf32>
    %891 = vector.multi_reduction <add>, %890, %cst_262 [1] : vector<2x8xf32> to vector<2xf32>
    %892 = vector.shape_cast %891 : vector<2xf32> to vector<2x1xf32>
    %893 = arith.addf %888, %892 : vector<2x1xf32>
    %c3_i32_263 = arith.constant 3 : i32
    %894 = vector.broadcast %c3_i32_263 : i32 to vector<1x8xi32>
    %895 = arith.cmpi eq, %5, %894 : vector<1x8xi32>
    %896 = math.tanh %893 : vector<2x1xf32>
    %897 = vector.shape_cast %895 : vector<1x8xi1> to vector<1x8xi1>
    %898 = vector.broadcast %897 : vector<1x8xi1> to vector<2x8xi1>
    %899 = vector.shape_cast %896 : vector<2x1xf32> to vector<2x1xf32>
    %900 = vector.broadcast %899 : vector<2x1xf32> to vector<2x8xf32>
    %901 = arith.select %898, %900, %886 : vector<2x8xi1>, vector<2x8xf32>
    %c4_264 = arith.constant 4 : index
    %c0_265 = arith.constant 0 : index
    %902 = vector.load %arg6[%c4_264, %c0_265] : memref<8x8xf32, #tpu.memory_space<vmem>>, vector<1x8xf32>
    %903 = vector.extract_strided_slice %840 {offsets = [0, 4], sizes = [2, 1], strides = [1, 1]} : vector<2x8xf32> to vector<2x1xf32>
    %904 = vector.broadcast %902 : vector<1x8xf32> to vector<2x8xf32>
    %905 = arith.mulf %901, %904 : vector<2x8xf32>
    %cst_266 = arith.constant dense<0.000000e+00> : vector<2xf32>
    %906 = vector.multi_reduction <add>, %905, %cst_266 [1] : vector<2x8xf32> to vector<2xf32>
    %907 = vector.shape_cast %906 : vector<2xf32> to vector<2x1xf32>
    %908 = arith.addf %903, %907 : vector<2x1xf32>
    %c4_i32_267 = arith.constant 4 : i32
    %909 = vector.broadcast %c4_i32_267 : i32 to vector<1x8xi32>
    %910 = arith.cmpi eq, %5, %909 : vector<1x8xi32>
    %911 = math.tanh %908 : vector<2x1xf32>
    %912 = vector.shape_cast %910 : vector<1x8xi1> to vector<1x8xi1>
    %913 = vector.broadcast %912 : vector<1x8xi1> to vector<2x8xi1>
    %914 = vector.shape_cast %911 : vector<2x1xf32> to vector<2x1xf32>
    %915 = vector.broadcast %914 : vector<2x1xf32> to vector<2x8xf32>
    %916 = arith.select %913, %915, %901 : vector<2x8xi1>, vector<2x8xf32>
    %c5_268 = arith.constant 5 : index
    %c0_269 = arith.constant 0 : index
    %917 = vector.load %arg6[%c5_268, %c0_269] : memref<8x8xf32, #tpu.memory_space<vmem>>, vector<1x8xf32>
    %918 = vector.extract_strided_slice %840 {offsets = [0, 5], sizes = [2, 1], strides = [1, 1]} : vector<2x8xf32> to vector<2x1xf32>
    %919 = vector.broadcast %917 : vector<1x8xf32> to vector<2x8xf32>
    %920 = arith.mulf %916, %919 : vector<2x8xf32>
    %cst_270 = arith.constant dense<0.000000e+00> : vector<2xf32>
    %921 = vector.multi_reduction <add>, %920, %cst_270 [1] : vector<2x8xf32> to vector<2xf32>
    %922 = vector.shape_cast %921 : vector<2xf32> to vector<2x1xf32>
    %923 = arith.addf %918, %922 : vector<2x1xf32>
    %c5_i32_271 = arith.constant 5 : i32
    %924 = vector.broadcast %c5_i32_271 : i32 to vector<1x8xi32>
    %925 = arith.cmpi eq, %5, %924 : vector<1x8xi32>
    %926 = math.tanh %923 : vector<2x1xf32>
    %927 = vector.shape_cast %925 : vector<1x8xi1> to vector<1x8xi1>
    %928 = vector.broadcast %927 : vector<1x8xi1> to vector<2x8xi1>
    %929 = vector.shape_cast %926 : vector<2x1xf32> to vector<2x1xf32>
    %930 = vector.broadcast %929 : vector<2x1xf32> to vector<2x8xf32>
    %931 = arith.select %928, %930, %916 : vector<2x8xi1>, vector<2x8xf32>
    %c6_272 = arith.constant 6 : index
    %c0_273 = arith.constant 0 : index
    %932 = vector.load %arg6[%c6_272, %c0_273] : memref<8x8xf32, #tpu.memory_space<vmem>>, vector<1x8xf32>
    %933 = vector.extract_strided_slice %840 {offsets = [0, 6], sizes = [2, 1], strides = [1, 1]} : vector<2x8xf32> to vector<2x1xf32>
    %934 = vector.broadcast %932 : vector<1x8xf32> to vector<2x8xf32>
    %935 = arith.mulf %931, %934 : vector<2x8xf32>
    %cst_274 = arith.constant dense<0.000000e+00> : vector<2xf32>
    %936 = vector.multi_reduction <add>, %935, %cst_274 [1] : vector<2x8xf32> to vector<2xf32>
    %937 = vector.shape_cast %936 : vector<2xf32> to vector<2x1xf32>
    %938 = arith.addf %933, %937 : vector<2x1xf32>
    %c6_i32_275 = arith.constant 6 : i32
    %939 = vector.broadcast %c6_i32_275 : i32 to vector<1x8xi32>
    %940 = arith.cmpi eq, %5, %939 : vector<1x8xi32>
    %941 = math.tanh %938 : vector<2x1xf32>
    %942 = vector.shape_cast %940 : vector<1x8xi1> to vector<1x8xi1>
    %943 = vector.broadcast %942 : vector<1x8xi1> to vector<2x8xi1>
    %944 = vector.shape_cast %941 : vector<2x1xf32> to vector<2x1xf32>
    %945 = vector.broadcast %944 : vector<2x1xf32> to vector<2x8xf32>
    %946 = arith.select %943, %945, %931 : vector<2x8xi1>, vector<2x8xf32>
    %c7_276 = arith.constant 7 : index
    %c0_277 = arith.constant 0 : index
    %947 = vector.load %arg6[%c7_276, %c0_277] : memref<8x8xf32, #tpu.memory_space<vmem>>, vector<1x8xf32>
    %948 = vector.extract_strided_slice %840 {offsets = [0, 7], sizes = [2, 1], strides = [1, 1]} : vector<2x8xf32> to vector<2x1xf32>
    %949 = vector.broadcast %947 : vector<1x8xf32> to vector<2x8xf32>
    %950 = arith.mulf %946, %949 : vector<2x8xf32>
    %cst_278 = arith.constant dense<0.000000e+00> : vector<2xf32>
    %951 = vector.multi_reduction <add>, %950, %cst_278 [1] : vector<2x8xf32> to vector<2xf32>
    %952 = vector.shape_cast %951 : vector<2xf32> to vector<2x1xf32>
    %953 = arith.addf %948, %952 : vector<2x1xf32>
    %c7_i32_279 = arith.constant 7 : i32
    %954 = vector.broadcast %c7_i32_279 : i32 to vector<1x8xi32>
    %955 = arith.cmpi eq, %5, %954 : vector<1x8xi32>
    %956 = math.tanh %953 : vector<2x1xf32>
    %957 = vector.shape_cast %955 : vector<1x8xi1> to vector<1x8xi1>
    %958 = vector.broadcast %957 : vector<1x8xi1> to vector<2x8xi1>
    %959 = vector.shape_cast %956 : vector<2x1xf32> to vector<2x1xf32>
    %960 = vector.broadcast %959 : vector<2x1xf32> to vector<2x8xf32>
    %961 = arith.select %958, %960, %946 : vector<2x8xi1>, vector<2x8xf32>
    %962 = vector.extract_strided_slice %839 {offsets = [0, 8], sizes = [2, 8], strides = [1, 1]} : vector<2x16xf32> to vector<2x8xf32>
    %cst_280 = arith.constant dense<0.000000e+00> : vector<2x8xf32>
    %963 = tpu.matmul %961, %4, %cst_280 {dimension_numbers = #tpu.dot_dimension_numbers<[1], [0], [0], [1], [0, 0, 1, 1], [], []>} : vector<2x8xf32>, vector<8x8xf32>, vector<2x8xf32> -> vector<2x8xf32>
    %964 = arith.addf %962, %963 : vector<2x8xf32>
    %965 = arith.index_cast %c6_i32_243 : i32 to index
    %c0_281 = arith.constant 0 : index
    %c0_282 = arith.constant 0 : index
    %966 = vector.load %arg7[%965, %c0_281, %c0_282] : memref<7x2x8xf32, #tpu.memory_space<vmem>>, vector<1x2x8xf32>
    %967 = vector.shape_cast %966 : vector<1x2x8xf32> to vector<2x8xf32>
    %968 = vector.shape_cast %964 : vector<2x8xf32> to vector<1x2x8xf32>
    tpu.vector_store %arg7[%965, %c0_281, %c0_282], %968 {strides = array<i32>} : memref<7x2x8xf32, #tpu.memory_space<vmem>>, vector<1x2x8xf32>,
    %969 = arith.index_cast %c6_i32_243 : i32 to index
    %c0_283 = arith.constant 0 : index
    %c0_284 = arith.constant 0 : index
    %970 = vector.load %arg8[%969, %c0_283, %c0_284] : memref<7x2x8xf32, #tpu.memory_space<vmem>>, vector<1x2x8xf32>
    %971 = vector.shape_cast %970 : vector<1x2x8xf32> to vector<2x8xf32>
    %972 = vector.shape_cast %961 : vector<2x8xf32> to vector<1x2x8xf32>
    tpu.vector_store %arg8[%969, %c0_283, %c0_284], %972 {strides = array<i32>} : memref<7x2x8xf32, #tpu.memory_space<vmem>>, vector<1x2x8xf32>,
    %c7_i32_285 = arith.constant 7 : i32
    %c0_286 = arith.constant 0 : index
    %c0_287 = arith.constant 0 : index
    %973 = vector.load %arg9[%c0_286, %c0_287] : memref<2x8xf32, #tpu.memory_space<vmem>>, vector<2x8xf32>
    tpu.vector_store %arg9[%c0_286, %c0_287], %964 {strides = array<i32>} : memref<2x8xf32, #tpu.memory_space<vmem>>, vector<2x8xf32>,
    return
  }
  func.func @transform_0(%arg0: i32, %arg1: i32) -> (i32, i32, i32) {
    %c0_i32 = arith.constant 0 : i32
    %c0_i32_0 = arith.constant 0 : i32
    return %arg1, %arg0, %c0_i32 : i32, i32, i32
  }
  func.func @transform_1(%arg0: i32, %arg1: i32) -> (i32, i32) {
    %c0_i32 = arith.constant 0 : i32
    %c0_i32_0 = arith.constant 0 : i32
    return %arg0, %c0_i32 : i32, i32
  }
  func.func @transform_2(%arg0: i32, %arg1: i32) -> (i32, i32) {
    %c0_i32 = arith.constant 0 : i32
    %c0_i32_0 = arith.constant 0 : i32
    %c0_i32_1 = arith.constant 0 : i32
    return %c0_i32, %c0_i32_0 : i32, i32
  }
  func.func @transform_3(%arg0: i32, %arg1: i32) -> (i32, i32) {
    %c0_i32 = arith.constant 0 : i32
    %c0_i32_0 = arith.constant 0 : i32
    %c0_i32_1 = arith.constant 0 : i32
    return %c0_i32, %c0_i32_0 : i32, i32
  }
  func.func @transform_4(%arg0: i32, %arg1: i32) -> (i32, i32) {
    %c0_i32 = arith.constant 0 : i32
    %c0_i32_0 = arith.constant 0 : i32
    %c0_i32_1 = arith.constant 0 : i32
    return %c0_i32, %c0_i32_0 : i32, i32
  }
  func.func @transform_5(%arg0: i32, %arg1: i32) -> (i32, i32, i32) {
    %c0_i32 = arith.constant 0 : i32
    %c0_i32_0 = arith.constant 0 : i32
    return %arg1, %arg0, %c0_i32 : i32, i32, i32
  }
  func.func @transform_6(%arg0: i32, %arg1: i32) -> (i32, i32, i32) {
    %c0_i32 = arith.constant 0 : i32
    %c0_i32_0 = arith.constant 0 : i32
    return %arg1, %arg0, %c0_i32 : i32, i32, i32
  }
}

</mosaic_0001>

<llo_original>
// kernel: tpu_custom_call.1
$region0: #{tpu_custom_call.1}
  #allocation0 [shape = 'u32[]', space=smem, size = 0x4, offset = 0x4, fixed_abs, tag = 'smem constant byte address 0x4 - core index']
  #allocation1 [shape = 'u32[144,128]{1,0:T(1,128)}', space=vmem, size = 0x12000, scoped, tag = 'internal scratch']
  #allocation2 [shape = 'f32[2,8]{1,0:T(2,128)}', space=vmem, size = 0x400, scoped, tag = 'scratch operand']
  %s0 = inlined_call_operand.hbm [shape: f32[7,2,16], index: 0, kind: input, shape index: {}]
  %s1 = inlined_call_operand.vmem [shape: f32[2,8], index: 1, kind: input, shape index: {}]
  %s2 = inlined_call_operand.hbm [shape: f32[8,16], index: 2, kind: input, shape index: {}]
  %s3 = inlined_call_operand.vmem [shape: f32[8,8], index: 3, kind: input, shape index: {}]
  %s4 = inlined_call_operand.hbm [shape: f32[8,8], index: 4, kind: input, shape index: {}]
  %s5 = inlined_call_operand.hbm [shape: f32[7,2,8], index: 5, kind: output, shape index: {0}]
  %s6 = inlined_call_operand.hbm [shape: f32[7,2,8], index: 6, kind: output, shape index: {1}]
  %7 = xla_tuple %s5, %s6
  %s8 = sld [smem:[#allocation0]]
  $region54: #{tpu_custom_call.1} parent=0
    _
  %s10 = ssub.s32 1, %s8
  %s11 = scalar_select 0, %s10, %s8
  $region1: #{tpu_custom_call.1} parent=0
    #allocation3 [shape = 'u8[7168]{0}', space=vmem, size = 0x1c00, scoped, tag = 'input window, operand 0, single buffered']
    #allocation4 [shape = 's32[1]{0}', space=sflag, size = 0x4, scoped, tag = 'scoped memory for tpu_custom_call.1']
    #allocation5 [shape = 's32[1]{0}', space=sflag, size = 0x4, scoped, tag = 'scoped memory for tpu_custom_call.1']
    #allocation6 [shape = 'u8[4096]{0}', space=vmem, size = 0x1000, scoped, tag = 'input window, operand 2, single buffered']
    #allocation7 [shape = 's32[1]{0}', space=sflag, size = 0x4, scoped, tag = 'scoped memory for tpu_custom_call.1']
    #allocation8 [shape = 'u8[4096]{0}', space=vmem, size = 0x1000, scoped, tag = 'input window, operand 4, single buffered']
    #allocation9 [shape = 'u8[7168]{0}', space=vmem, size = 0x1c00, scoped, tag = 'output window, operand 0, single buffered']
    #allocation10 [shape = 'u8[7168]{0}', space=vmem, size = 0x1c00, scoped, tag = 'output window, operand 1, single buffered']
    #allocation11 [shape = 's32[1]{0}', space=sflag, size = 0x4, scoped, tag = 'scoped memory for tpu_custom_call.1']
    %12 = vsyncpa [#allocation4], 0
    %13 = vsyncpa [#allocation7], 0
    %14 = vsyncpa [#allocation5], 0
    %15 = vsyncpa [#allocation11], 0
    // Predicated region
    $region2: #{tpu_custom_call.1} parent=1 // pred_check
      _
    $region3: #{tpu_custom_call.1} parent=1 // pred_check_branch
      %17 = sbr.rel (0) target = $region5
    $region4: #{tpu_custom_call.1} parent=1 // pred_region
      %s19 = ssub.s32 224, 224
      %20 = vsyncadd [#allocation4], %s19
      %s21 = sshll.u32 [#allocation3], 4
      %s22 = int_to_ptr.vmem [resolvable:$true] %s21
      %27 = dma.hbm_to_vmem [thread:$0]  %s0, 224, %s22, [#allocation4], 32, 32, 2
    $region5: #{tpu_custom_call.1} parent=1 // pred_fallthru
      _
    // Predicated region
    $region6: #{tpu_custom_call.1} parent=1 // pred_check
      _
    $region7: #{tpu_custom_call.1} parent=1 // pred_check_branch
      %29 = sbr.rel (0) target = $region9
    $region8: #{tpu_custom_call.1} parent=1 // pred_region
      _
    $region9: #{tpu_custom_call.1} parent=1 // pred_fallthru
      _
    // Predicated region
    $region10: #{tpu_custom_call.1} parent=1 // pred_check
      _
    $region11: #{tpu_custom_call.1} parent=1 // pred_check_branch
      %31 = sbr.rel (0) target = $region13
    $region12: #{tpu_custom_call.1} parent=1 // pred_region
      %s33 = ssub.s32 128, 128
      %34 = vsyncadd [#allocation7], %s33
      %s36 = sshll.u32 [#allocation6], 4
      %s37 = int_to_ptr.vmem [resolvable:$true] %s36
      %39 = dma.hbm_to_vmem [thread:$0]  %s2, 128, %s37, [#allocation7]
    $region13: #{tpu_custom_call.1} parent=1 // pred_fallthru
      _
    // Predicated region
    $region14: #{tpu_custom_call.1} parent=1 // pred_check
      _
    $region15: #{tpu_custom_call.1} parent=1 // pred_check_branch
      %41 = sbr.rel (0) target = $region17
    $region16: #{tpu_custom_call.1} parent=1 // pred_region
      _
    $region17: #{tpu_custom_call.1} parent=1 // pred_fallthru
      _
    // Predicated region
    $region18: #{tpu_custom_call.1} parent=1 // pred_check
      _
    $region19: #{tpu_custom_call.1} parent=1 // pred_check_branch
      %43 = sbr.rel (0) target = $region21
    $region20: #{tpu_custom_call.1} parent=1 // pred_region
      %s45 = ssub.s32 128, 128
      %46 = vsyncadd [#allocation7], %s45
      %s48 = sshll.u32 [#allocation8], 4
      %s49 = int_to_ptr.vmem [resolvable:$true] %s48
      %51 = dma.hbm_to_vmem [thread:$0]  %s4, 128, %s49, [#allocation7]
    $region21: #{tpu_custom_call.1} parent=1 // pred_fallthru
      _
    // Predicated region
    $region22: #{tpu_custom_call.1} parent=1 // pred_check
      _
    $region23: #{tpu_custom_call.1} parent=1 // pred_check_branch
      %53 = sbr.rel (0) target = $region25
    $region24: #{tpu_custom_call.1} parent=1 // pred_region
      %54 = dma.done [#allocation4], 224
    $region25: #{tpu_custom_call.1} parent=1 // pred_fallthru
      _
    // Predicated region
    $region26: #{tpu_custom_call.1} parent=1 // pred_check
      _
    $region27: #{tpu_custom_call.1} parent=1 // pred_check_branch
      %56 = sbr.rel (0) target = $region29
    $region28: #{tpu_custom_call.1} parent=1 // pred_region
      %57 = dma.done [#allocation7], 128
    $region29: #{tpu_custom_call.1} parent=1 // pred_fallthru
      _
    // Predicated region
    $region30: #{tpu_custom_call.1} parent=1 // pred_check
      _
    $region31: #{tpu_custom_call.1} parent=1 // pred_check_branch
      %59 = sbr.rel (0) target = $region33
    $region32: #{tpu_custom_call.1} parent=1 // pred_region
      %60 = dma.done [#allocation7], 128
    $region33: #{tpu_custom_call.1} parent=1 // pred_fallthru
      _
    %p61 = scmp.eq.s32.totalorder 0, 0
    // Predicated region
    $region34: #{tpu_custom_call.1} parent=1 // pred_check
      %p62 = pneg %p61
    $region35: #{tpu_custom_call.1} parent=1 // pred_check_branch
      %64 = sbr.rel (%p62) target = $region37
    $region36: #{tpu_custom_call.1} parent=1 // pred_region
      %v65 = vld [vmem:[%s1] sm:$0x3]
      %vm66 = vcmask 58368
      %67 = vst.msk [vmem:[#allocation2] sm:$0x3] %vm66, %v65
    $region37: #{tpu_custom_call.1} parent=1 // pred_fallthru
      _
    %v68 = vld [vmem:[#allocation6] sm:$0xff]
    %v69 = vld [vmem:[%s3] sm:$0xff]
    %v70 = vlaneseq
    %v71 = vand.u32 %v70, 127
    %v72 = vld [vmem:[#allocation2] sm:$0x3]
    %v73 = vld [vmem:[#allocation3] sm:$0x3]
    %vm74 = vcmask 64512
    %v76 = vsel %vm74, %v72, 0
    %78 = vmatprep.subr.mxu0 0.0
    %79 = vmatpush1.msra.mxu0 %v68
    %80 = vmatprep.subr.mxu0 0.0
    %81 = vmatpush1.msra.mxu0 0.0
    %82 = vmatprep.subr.mxu0 0.0
    %83 = vmatpush1.msra.mxu0 0.0
    %84 = vmatprep.subr.mxu0 0.0
    %85 = vmatpush1.msra.mxu0 0.0
    %86 = vmatprep.subr.mxu0 0.0
    %87 = vmatpush1.msra.mxu0 0.0
    %88 = vmatprep.subr.mxu0 0.0
    %89 = vmatpush1.msra.mxu0 0.0
    %90 = vmatprep.subr.mxu0 0.0
    %91 = vmatpush1.msra.mxu0 0.0
    %92 = vmatprep.subr.mxu0 0.0
    %93 = vmatpush1.msra.mxu0 0.0
    %94 = vmatprep.subr.mxu0 0.0
    %95 = vmatpush1.msra.mxu0 0.0
    %96 = vmatprep.subr.mxu0 0.0
    %97 = vmatpush1.msra.mxu0 0.0
    %98 = vmatprep.subr.mxu0 0.0
    %99 = vmatpush1.msra.mxu0 0.0
    %100 = vmatprep.subr.mxu0 0.0
    %101 = vmatpush1.msra.mxu0 0.0
    %102 = vmatprep.subr.mxu0 0.0
    %103 = vmatpush1.msra.mxu0 0.0
    %104 = vmatprep.subr.mxu0 0.0
    %105 = vmatpush1.msra.mxu0 0.0
    %106 = vmatprep.subr.mxu0 0.0
    %107 = vmatpush1.msra.mxu0 0.0
    %108 = vmatprep.subr.mxu0 0.0
    %109 = vmatpush1.msra.mxu0 0.0
    %110 = vmatprep.subr.mxu0 0.0
    %111 = vmatpush1.msra.mxu0 0.0
    %112 = vmatprep.subr.mxu0 0.0
    %113 = vmatpush1.msra.mxu0 0.0
    %114 = vmatprep.subr.mxu0 0.0
    %115 = vmatpush1.msra.mxu0 0.0
    %116 = vmatprep.subr.mxu0 0.0
    %117 = vmatpush1.msra.mxu0 0.0
    %118 = vmatprep.subr.mxu0 0.0
    %119 = vmatpush1.msra.mxu0 0.0
    %120 = vmatprep.subr.mxu0 0.0
    %121 = vmatpush1.msra.mxu0 0.0
    %122 = vmatprep.subr.mxu0 0.0
    %123 = vmatpush1.msra.mxu0 0.0
    %124 = vmatprep.subr.mxu0 0.0
    %125 = vmatpush1.msra.mxu0 0.0
    %126 = vmatprep.subr.mxu0 0.0
    %127 = vmatpush1.msra.mxu0 0.0
    %128 = vmatprep.subr.mxu0 0.0
    %129 = vmatpush1.msra.mxu0 0.0
    %130 = vmatprep.subr.mxu0 0.0
    %131 = vmatpush1.msra.mxu0 0.0
    %132 = vmatprep.subr.mxu0 0.0
    %133 = vmatpush1.msra.mxu0 0.0
    %134 = vmatprep.subr.mxu0 0.0
    %135 = vmatpush1.msra.mxu0 0.0
    %136 = vmatprep.subr.mxu0 0.0
    %137 = vmatpush1.msra.mxu0 0.0
    %138 = vmatprep.subr.mxu0 0.0
    %139 = vmatpush1.msra.mxu0 0.0
    %140 = vmatprep.subr.mxu0 0.0
    %141 = vmatpush1.msra.mxu0 0.0
    %142 = vmatprep.mubr.f32.mxu0 0.0
    %143 = vmatmul.mubr.f32.gmra.mrb[0].mxu0 %v76
    %v144 = vpop.f32.mrb[0].mxu0
    %v145 = vadd.f32 0.0, %v144
    %v146 = vpop.f32.mrb[0].mxu0
    %147 = vdwg.mxu0
    %v148 = vadd.f32 %v73, %v145
    %v149 = vld [vmem:[#allocation8] sm:$0x1]
    %v150 = vlaneseq
    %v151 = vshrl.u32 %v150, 7
    %v152 = vsub.s32 0, %v151
    %v153 = vrot.slane %v149, %v152
    %v154 = vmul.f32 %v153, 0.0
    %v155 = vsel %vm74, %v154, 0.0
    %156 = vadd.xlane.f32.xlu0 %v155
    %v157 = vpop.xlane.xlu0 %156
    %v158 = vadd.f32 %v148, %v157
    %vm159 = vcmp.eq.s32.totalorder %v71, 0
    %v160 = vtanh.pop %v158
    %v161 = vsel %vm159, 1, 0
    %vm162 = vcmp.eq.s32.totalorder %v161, 1
    %164 = vset.pattern.permute.xlu0 0
    %165 = vperm.xlu0 %164, %v160
    %v166 = vpop.permute.xlu0 %165
    %v168 = vsel %vm162, %v166, 0.0
    %v169 = vld [vmem:[#allocation8 + $0x1] sm:$0x1]
    %v170 = vlaneseq
    %v171 = vshrl.u32 %v170, 7
    %v172 = vsub.s32 0, %v171
    %v173 = vrot.slane %v169, %v172
    %v174 = vmul.f32 %v168, %v173
    %vm175 = vcmask 58368
    %v176 = vsel %vm175, %v174, 0.0
    %177 = vadd.xlane.f32.xlu0 %v176
    %v178 = vpop.xlane.xlu0 %177
    %v179 = vadd.f32 %v148, %v178
    %vm180 = vcmp.eq.s32.totalorder %v71, 1
    %v181 = vtanh.pop %v179
    %v182 = vsel %vm180, 1, 0
    %vm183 = vcmp.eq.s32.totalorder %v182, 1
    %185 = vset.pattern.permute.xlu0 1
    %186 = vperm.xlu0 %185, %v181
    %v187 = vpop.permute.xlu0 %186
    %v189 = vsel %vm183, %v187, %v168
    %v190 = vld [vmem:[#allocation8 + $0x2] sm:$0x1]
    %v191 = vlaneseq
    %v192 = vshrl.u32 %v191, 7
    %v193 = vsub.s32 0, %v192
    %v194 = vrot.slane %v190, %v193
    %v195 = vmul.f32 %v189, %v194
    %v196 = vsel %vm175, %v195, 0.0
    %197 = vadd.xlane.f32.xlu0 %v196
    %v198 = vpop.xlane.xlu0 %197
    %v199 = vadd.f32 %v148, %v198
    %vm200 = vcmp.eq.s32.totalorder %v71, 2
    %v201 = vtanh.pop %v199
    %v202 = vsel %vm200, 1, 0
    %vm203 = vcmp.eq.s32.totalorder %v202, 1
    %205 = vset.pattern.permute.xlu0 2
    %206 = vperm.xlu0 %205, %v201
    %v207 = vpop.permute.xlu0 %206
    %v209 = vsel %vm203, %v207, %v189
    %v210 = vld [vmem:[#allocation8 + $0x3] sm:$0x1]
    %v211 = vlaneseq
    %v212 = vshrl.u32 %v211, 7
    %v213 = vsub.s32 0, %v212
    %v214 = vrot.slane %v210, %v213
    %v215 = vmul.f32 %v209, %v214
    %v216 = vsel %vm175, %v215, 0.0
    %217 = vadd.xlane.f32.xlu0 %v216
    %v218 = vpop.xlane.xlu0 %217
    %v219 = vadd.f32 %v148, %v218
    %vm220 = vcmp.eq.s32.totalorder %v71, 3
    %v221 = vtanh.pop %v219
    %v222 = vsel %vm220, 1, 0
    %vm223 = vcmp.eq.s32.totalorder %v222, 1
    %225 = vset.pattern.permute.xlu0 3
    %226 = vperm.xlu0 %225, %v221
    %v227 = vpop.permute.xlu0 %226
    %v229 = vsel %vm223, %v227, %v209
    %v230 = vld [vmem:[#allocation8 + $0x4] sm:$0x1]
    %v231 = vlaneseq
    %v232 = vshrl.u32 %v231, 7
    %v233 = vsub.s32 0, %v232
    %v234 = vrot.slane %v230, %v233
    %v235 = vmul.f32 %v229, %v234
    %v236 = vsel %vm175, %v235, 0.0
    %237 = vadd.xlane.f32.xlu0 %v236
    %v238 = vpop.xlane.xlu0 %237
    %v239 = vadd.f32 %v148, %v238
    %vm240 = vcmp.eq.s32.totalorder %v71, 4
    %v241 = vtanh.pop %v239
    %v242 = vsel %vm240, 1, 0
    %vm243 = vcmp.eq.s32.totalorder %v242, 1
    %245 = vset.pattern.permute.xlu0 4
    %246 = vperm.xlu0 %245, %v241
    %v247 = vpop.permute.xlu0 %246
    %v249 = vsel %vm243, %v247, %v229
    %v250 = vld [vmem:[#allocation8 + $0x5] sm:$0x1]
    %v251 = vlaneseq
    %v252 = vshrl.u32 %v251, 7
    %v253 = vsub.s32 0, %v252
    %v254 = vrot.slane %v250, %v253
    %v255 = vmul.f32 %v249, %v254
    %v256 = vsel %vm175, %v255, 0.0
    %257 = vadd.xlane.f32.xlu0 %v256
    %v258 = vpop.xlane.xlu0 %257
    %v259 = vadd.f32 %v148, %v258
    %vm260 = vcmp.eq.s32.totalorder %v71, 5
    %v261 = vtanh.pop %v259
    %v262 = vsel %vm260, 1, 0
    %vm263 = vcmp.eq.s32.totalorder %v262, 1
    %265 = vset.pattern.permute.xlu0 5
    %266 = vperm.xlu0 %265, %v261
    %v267 = vpop.permute.xlu0 %266
    %v269 = vsel %vm263, %v267, %v249
    %v270 = vld [vmem:[#allocation8 + $0x6] sm:$0x1]
    %v271 = vlaneseq
    %v272 = vshrl.u32 %v271, 7
    %v273 = vsub.s32 0, %v272
    %v274 = vrot.slane %v270, %v273
    %v275 = vmul.f32 %v269, %v274
    %v276 = vsel %vm175, %v275, 0.0
    %277 = vadd.xlane.f32.xlu0 %v276
    %v278 = vpop.xlane.xlu0 %277
    %v279 = vadd.f32 %v148, %v278
    %vm280 = vcmp.eq.s32.totalorder %v71, 6
    %v281 = vtanh.pop %v279
    %v282 = vsel %vm280, 1, 0
    %vm283 = vcmp.eq.s32.totalorder %v282, 1
    %285 = vset.pattern.permute.xlu0 6
    %286 = vperm.xlu0 %285, %v281
    %v287 = vpop.permute.xlu0 %286
    %v289 = vsel %vm283, %v287, %v269
    %v290 = vld [vmem:[#allocation8 + $0x7] sm:$0x1]
    %v291 = vlaneseq
    %v292 = vshrl.u32 %v291, 7
    %v293 = vsub.s32 0, %v292
    %v294 = vrot.slane %v290, %v293
    %v295 = vmul.f32 %v289, %v294
    %v296 = vsel %vm175, %v295, 0.0
    %297 = vadd.xlane.f32.xlu0 %v296
    %v298 = vpop.xlane.xlu0 %297
    %v299 = vadd.f32 %v148, %v298
    %vm300 = vcmp.eq.s32.totalorder %v71, 7
    %v301 = vtanh.pop %v299
    %v302 = vsel %vm300, 1, 0
    %vm303 = vcmp.eq.s32.totalorder %v302, 1
    %305 = vset.pattern.permute.xlu0 7
    %306 = vperm.xlu0 %305, %v301
    %v307 = vpop.permute.xlu0 %306
    %v309 = vsel %vm303, %v307, %v289
    %v311 = vsel %vm74, %v309, 0
    %313 = vmatprep.subr.mxu0 0.0
    %314 = vmatpush1.msra.mxu0 %v69
    %315 = vmatprep.subr.mxu0 0.0
    %316 = vmatpush1.msra.mxu0 0.0
    %317 = vmatprep.subr.mxu0 0.0
    %318 = vmatpush1.msra.mxu0 0.0
    %319 = vmatprep.subr.mxu0 0.0
    %320 = vmatpush1.msra.mxu0 0.0
    %321 = vmatprep.subr.mxu0 0.0
    %322 = vmatpush1.msra.mxu0 0.0
    %323 = vmatprep.subr.mxu0 0.0
    %324 = vmatpush1.msra.mxu0 0.0
    %325 = vmatprep.subr.mxu0 0.0
    %326 = vmatpush1.msra.mxu0 0.0
    %327 = vmatprep.subr.mxu0 0.0
    %328 = vmatpush1.msra.mxu0 0.0
    %329 = vmatprep.subr.mxu0 0.0
    %330 = vmatpush1.msra.mxu0 0.0
    %331 = vmatprep.subr.mxu0 0.0
    %332 = vmatpush1.msra.mxu0 0.0
    %333 = vmatprep.subr.mxu0 0.0
    %334 = vmatpush1.msra.mxu0 0.0
    %335 = vmatprep.subr.mxu0 0.0
    %336 = vmatpush1.msra.mxu0 0.0
    %337 = vmatprep.subr.mxu0 0.0
    %338 = vmatpush1.msra.mxu0 0.0
    %339 = vmatprep.subr.mxu0 0.0
    %340 = vmatpush1.msra.mxu0 0.0
    %341 = vmatprep.subr.mxu0 0.0
    %342 = vmatpush1.msra.mxu0 0.0
    %343 = vmatprep.subr.mxu0 0.0
    %344 = vmatpush1.msra.mxu0 0.0
    %345 = vmatprep.subr.mxu0 0.0
    %346 = vmatpush1.msra.mxu0 0.0
    %347 = vmatprep.subr.mxu0 0.0
    %348 = vmatpush1.msra.mxu0 0.0
    %349 = vmatprep.subr.mxu0 0.0
    %350 = vmatpush1.msra.mxu0 0.0
    %351 = vmatprep.subr.mxu0 0.0
    %352 = vmatpush1.msra.mxu0 0.0
    %353 = vmatprep.subr.mxu0 0.0
    %354 = vmatpush1.msra.mxu0 0.0
    %355 = vmatprep.subr.mxu0 0.0
    %356 = vmatpush1.msra.mxu0 0.0
    %357 = vmatprep.subr.mxu0 0.0
    %358 = vmatpush1.msra.mxu0 0.0
    %359 = vmatprep.subr.mxu0 0.0
    %360 = vmatpush1.msra.mxu0 0.0
    %361 = vmatprep.subr.mxu0 0.0
    %362 = vmatpush1.msra.mxu0 0.0
    %363 = vmatprep.subr.mxu0 0.0
    %364 = vmatpush1.msra.mxu0 0.0
    %365 = vmatprep.subr.mxu0 0.0
    %366 = vmatpush1.msra.mxu0 0.0
    %367 = vmatprep.subr.mxu0 0.0
    %368 = vmatpush1.msra.mxu0 0.0
    %369 = vmatprep.subr.mxu0 0.0
    %370 = vmatpush1.msra.mxu0 0.0
    %371 = vmatprep.subr.mxu0 0.0
    %372 = vmatpush1.msra.mxu0 0.0
    %373 = vmatprep.subr.mxu0 0.0
    %374 = vmatpush1.msra.mxu0 0.0
    %375 = vmatprep.subr.mxu0 0.0
    %376 = vmatpush1.msra.mxu0 0.0
    %377 = vmatprep.mubr.f32.mxu0 0.0
    %378 = vmatmul.mubr.f32.gmra.mrb[0].mxu0 %v311
    %v379 = vpop.f32.mrb[0].mxu0
    %v380 = vadd.f32 0.0, %v379
    %v381 = vpop.f32.mrb[0].mxu0
    %382 = vdwg.mxu0
    %384 = vrot.lane.b32.xlu0 %v380, 8
    %v385 = vpop.permute.xlu0 %384
    %v387 = vadd.f32 %v148, %v385
    %389 = vrot.lane.b32.xlu0 %v387, 120
    %v390 = vpop.permute.xlu0 %389
    %392 = vst.msk [vmem:[#allocation9] sm:$0x3] %vm175, %v390
    %393 = vst.msk [vmem:[#allocation10] sm:$0x3] %vm175, %v309
    %s394 = scalar_lea.vmem [#allocation3], 2
    %v395 = vld [vmem:[%s394] sm:$0x3]
    %v396 = vsel %vm74, %v390, 0
    %398 = vmatprep.subr.mxu0 0.0
    %399 = vmatpush1.msra.mxu0 %v68
    %400 = vmatprep.subr.mxu0 0.0
    %401 = vmatpush1.msra.mxu0 0.0
    %402 = vmatprep.subr.mxu0 0.0
    %403 = vmatpush1.msra.mxu0 0.0
    %404 = vmatprep.subr.mxu0 0.0
    %405 = vmatpush1.msra.mxu0 0.0
    %406 = vmatprep.subr.mxu0 0.0
    %407 = vmatpush1.msra.mxu0 0.0
    %408 = vmatprep.subr.mxu0 0.0
    %409 = vmatpush1.msra.mxu0 0.0
    %410 = vmatprep.subr.mxu0 0.0
    %411 = vmatpush1.msra.mxu0 0.0
    %412 = vmatprep.subr.mxu0 0.0
    %413 = vmatpush1.msra.mxu0 0.0
    %414 = vmatprep.subr.mxu0 0.0
    %415 = vmatpush1.msra.mxu0 0.0
    %416 = vmatprep.subr.mxu0 0.0
    %417 = vmatpush1.msra.mxu0 0.0
    %418 = vmatprep.subr.mxu0 0.0
    %419 = vmatpush1.msra.mxu0 0.0
    %420 = vmatprep.subr.mxu0 0.0
    %421 = vmatpush1.msra.mxu0 0.0
    %422 = vmatprep.subr.mxu0 0.0
    %423 = vmatpush1.msra.mxu0 0.0
    %424 = vmatprep.subr.mxu0 0.0
    %425 = vmatpush1.msra.mxu0 0.0
    %426 = vmatprep.subr.mxu0 0.0
    %427 = vmatpush1.msra.mxu0 0.0
    %428 = vmatprep.subr.mxu0 0.0
    %429 = vmatpush1.msra.mxu0 0.0
    %430 = vmatprep.subr.mxu0 0.0
    %431 = vmatpush1.msra.mxu0 0.0
    %432 = vmatprep.subr.mxu0 0.0
    %433 = vmatpush1.msra.mxu0 0.0
    %434 = vmatprep.subr.mxu0 0.0
    %435 = vmatpush1.msra.mxu0 0.0
    %436 = vmatprep.subr.mxu0 0.0
    %437 = vmatpush1.msra.mxu0 0.0
    %438 = vmatprep.subr.mxu0 0.0
    %439 = vmatpush1.msra.mxu0 0.0
    %440 = vmatprep.subr.mxu0 0.0
    %441 = vmatpush1.msra.mxu0 0.0
    %442 = vmatprep.subr.mxu0 0.0
    %443 = vmatpush1.msra.mxu0 0.0
    %444 = vmatprep.subr.mxu0 0.0
    %445 = vmatpush1.msra.mxu0 0.0
    %446 = vmatprep.subr.mxu0 0.0
    %447 = vmatpush1.msra.mxu0 0.0
    %448 = vmatprep.subr.mxu0 0.0
    %449 = vmatpush1.msra.mxu0 0.0
    %450 = vmatprep.subr.mxu0 0.0
    %451 = vmatpush1.msra.mxu0 0.0
    %452 = vmatprep.subr.mxu0 0.0
    %453 = vmatpush1.msra.mxu0 0.0
    %454 = vmatprep.subr.mxu0 0.0
    %455 = vmatpush1.msra.mxu0 0.0
    %456 = vmatprep.subr.mxu0 0.0
    %457 = vmatpush1.msra.mxu0 0.0
    %458 = vmatprep.subr.mxu0 0.0
    %459 = vmatpush1.msra.mxu0 0.0
    %460 = vmatprep.subr.mxu0 0.0
    %461 = vmatpush1.msra.mxu0 0.0
    %462 = vmatprep.mubr.f32.mxu0 0.0
    %463 = vmatmul.mubr.f32.gmra.mrb[0].mxu0 %v396
    %v464 = vpop.f32.mrb[0].mxu0
    %v465 = vadd.f32 0.0, %v464
    %v466 = vpop.f32.mrb[0].mxu0
    %467 = vdwg.mxu0
    %v468 = vadd.f32 %v395, %v465
    %v469 = vld [vmem:[#allocation8] sm:$0x1]
    %v470 = vlaneseq
    %v471 = vshrl.u32 %v470, 7
    %v472 = vsub.s32 0, %v471
    %v473 = vrot.slane %v469, %v472
    %v474 = vmul.f32 %v473, 0.0
    %v475 = vsel %vm74, %v474, 0.0
    %476 = vadd.xlane.f32.xlu0 %v475
    %v477 = vpop.xlane.xlu0 %476
    %v478 = vadd.f32 %v468, %v477
    %v479 = vtanh.pop %v478
    %481 = vset.pattern.permute.xlu0 0
    %482 = vperm.xlu0 %481, %v479
    %v483 = vpop.permute.xlu0 %482
    %v485 = vsel %vm162, %v483, 0.0
    %v486 = vld [vmem:[#allocation8 + $0x1] sm:$0x1]
    %v487 = vlaneseq
    %v488 = vshrl.u32 %v487, 7
    %v489 = vsub.s32 0, %v488
    %v490 = vrot.slane %v486, %v489
    %v491 = vmul.f32 %v485, %v490
    %v492 = vsel %vm175, %v491, 0.0
    %493 = vadd.xlane.f32.xlu0 %v492
    %v494 = vpop.xlane.xlu0 %493
    %v495 = vadd.f32 %v468, %v494
    %v496 = vtanh.pop %v495
    %498 = vset.pattern.permute.xlu0 1
    %499 = vperm.xlu0 %498, %v496
    %v500 = vpop.permute.xlu0 %499
    %v502 = vsel %vm183, %v500, %v485
    %v503 = vld [vmem:[#allocation8 + $0x2] sm:$0x1]
    %v504 = vlaneseq
    %v505 = vshrl.u32 %v504, 7
    %v506 = vsub.s32 0, %v505
    %v507 = vrot.slane %v503, %v506
    %v508 = vmul.f32 %v502, %v507
    %v509 = vsel %vm175, %v508, 0.0
    %510 = vadd.xlane.f32.xlu0 %v509
    %v511 = vpop.xlane.xlu0 %510
    %v512 = vadd.f32 %v468, %v511
    %v513 = vtanh.pop %v512
    %515 = vset.pattern.permute.xlu0 2
    %516 = vperm.xlu0 %515, %v513
    %v517 = vpop.permute.xlu0 %516
    %v519 = vsel %vm203, %v517, %v502
    %v520 = vld [vmem:[#allocation8 + $0x3] sm:$0x1]
    %v521 = vlaneseq
    %v522 = vshrl.u32 %v521, 7
    %v523 = vsub.s32 0, %v522
    %v524 = vrot.slane %v520, %v523
    %v525 = vmul.f32 %v519, %v524
    %v526 = vsel %vm175, %v525, 0.0
    %527 = vadd.xlane.f32.xlu0 %v526
    %v528 = vpop.xlane.xlu0 %527
    %v529 = vadd.f32 %v468, %v528
    %v530 = vtanh.pop %v529
    %532 = vset.pattern.permute.xlu0 3
    %533 = vperm.xlu0 %532, %v530
    %v534 = vpop.permute.xlu0 %533
    %v536 = vsel %vm223, %v534, %v519
    %v537 = vld [vmem:[#allocation8 + $0x4] sm:$0x1]
    %v538 = vlaneseq
    %v539 = vshrl.u32 %v538, 7
    %v540 = vsub.s32 0, %v539
    %v541 = vrot.slane %v537, %v540
    %v542 = vmul.f32 %v536, %v541
    %v543 = vsel %vm175, %v542, 0.0
    %544 = vadd.xlane.f32.xlu0 %v543
    %v545 = vpop.xlane.xlu0 %544
    %v546 = vadd.f32 %v468, %v545
    %v547 = vtanh.pop %v546
    %549 = vset.pattern.permute.xlu0 4
    %550 = vperm.xlu0 %549, %v547
    %v551 = vpop.permute.xlu0 %550
    %v553 = vsel %vm243, %v551, %v536
    %v554 = vld [vmem:[#allocation8 + $0x5] sm:$0x1]
    %v555 = vlaneseq
    %v556 = vshrl.u32 %v555, 7
    %v557 = vsub.s32 0, %v556
    %v558 = vrot.slane %v554, %v557
    %v559 = vmul.f32 %v553, %v558
    %v560 = vsel %vm175, %v559, 0.0
    %561 = vadd.xlane.f32.xlu0 %v560
    %v562 = vpop.xlane.xlu0 %561
    %v563 = vadd.f32 %v468, %v562
    %v564 = vtanh.pop %v563
    %566 = vset.pattern.permute.xlu0 5
    %567 = vperm.xlu0 %566, %v564
    %v568 = vpop.permute.xlu0 %567
    %v570 = vsel %vm263, %v568, %v553
    %v571 = vld [vmem:[#allocation8 + $0x6] sm:$0x1]
    %v572 = vlaneseq
    %v573 = vshrl.u32 %v572, 7
    %v574 = vsub.s32 0, %v573
    %v575 = vrot.slane %v571, %v574
    %v576 = vmul.f32 %v570, %v575
    %v577 = vsel %vm175, %v576, 0.0
    %578 = vadd.xlane.f32.xlu0 %v577
    %v579 = vpop.xlane.xlu0 %578
    %v580 = vadd.f32 %v468, %v579
    %v581 = vtanh.pop %v580
    %583 = vset.pattern.permute.xlu0 6
    %584 = vperm.xlu0 %583, %v581
    %v585 = vpop.permute.xlu0 %584
    %v587 = vsel %vm283, %v585, %v570
    %v588 = vld [vmem:[#allocation8 + $0x7] sm:$0x1]
    %v589 = vlaneseq
    %v590 = vshrl.u32 %v589, 7
    %v591 = vsub.s32 0, %v590
    %v592 = vrot.slane %v588, %v591
    %v593 = vmul.f32 %v587, %v592
    %v594 = vsel %vm175, %v593, 0.0
    %595 = vadd.xlane.f32.xlu0 %v594
    %v596 = vpop.xlane.xlu0 %595
    %v597 = vadd.f32 %v468, %v596
    %v598 = vtanh.pop %v597
    %600 = vset.pattern.permute.xlu0 7
    %601 = vperm.xlu0 %600, %v598
    %v602 = vpop.permute.xlu0 %601
    %v604 = vsel %vm303, %v602, %v587
    %v606 = vsel %vm74, %v604, 0
    %608 = vmatprep.subr.mxu0 0.0
    %609 = vmatpush1.msra.mxu0 %v69
    %610 = vmatprep.subr.mxu0 0.0
    %611 = vmatpush1.msra.mxu0 0.0
    %612 = vmatprep.subr.mxu0 0.0
    %613 = vmatpush1.msra.mxu0 0.0
    %614 = vmatprep.subr.mxu0 0.0
    %615 = vmatpush1.msra.mxu0 0.0
    %616 = vmatprep.subr.mxu0 0.0
    %617 = vmatpush1.msra.mxu0 0.0
    %618 = vmatprep.subr.mxu0 0.0
    %619 = vmatpush1.msra.mxu0 0.0
    %620 = vmatprep.subr.mxu0 0.0
    %621 = vmatpush1.msra.mxu0 0.0
    %622 = vmatprep.subr.mxu0 0.0
    %623 = vmatpush1.msra.mxu0 0.0
    %624 = vmatprep.subr.mxu0 0.0
    %625 = vmatpush1.msra.mxu0 0.0
    %626 = vmatprep.subr.mxu0 0.0
    %627 = vmatpush1.msra.mxu0 0.0
    %628 = vmatprep.subr.mxu0 0.0
    %629 = vmatpush1.msra.mxu0 0.0
    %630 = vmatprep.subr.mxu0 0.0
    %631 = vmatpush1.msra.mxu0 0.0
    %632 = vmatprep.subr.mxu0 0.0
    %633 = vmatpush1.msra.mxu0 0.0
    %634 = vmatprep.subr.mxu0 0.0
    %635 = vmatpush1.msra.mxu0 0.0
    %636 = vmatprep.subr.mxu0 0.0
    %637 = vmatpush1.msra.mxu0 0.0
    %638 = vmatprep.subr.mxu0 0.0
    %639 = vmatpush1.msra.mxu0 0.0
    %640 = vmatprep.subr.mxu0 0.0
    %641 = vmatpush1.msra.mxu0 0.0
    %642 = vmatprep.subr.mxu0 0.0
    %643 = vmatpush1.msra.mxu0 0.0
    %644 = vmatprep.subr.mxu0 0.0
    %645 = vmatpush1.msra.mxu0 0.0
    %646 = vmatprep.subr.mxu0 0.0
    %647 = vmatpush1.msra.mxu0 0.0
    %648 = vmatprep.subr.mxu0 0.0
    %649 = vmatpush1.msra.mxu0 0.0
    %650 = vmatprep.subr.mxu0 0.0
    %651 = vmatpush1.msra.mxu0 0.0
    %652 = vmatprep.subr.mxu0 0.0
    %653 = vmatpush1.msra.mxu0 0.0
    %654 = vmatprep.subr.mxu0 0.0
    %655 = vmatpush1.msra.mxu0 0.0
    %656 = vmatprep.subr.mxu0 0.0
    %657 = vmatpush1.msra.mxu0 0.0
    %658 = vmatprep.subr.mxu0 0.0
    %659 = vmatpush1.msra.mxu0 0.0
    %660 = vmatprep.subr.mxu0 0.0
    %661 = vmatpush1.msra.mxu0 0.0
    %662 = vmatprep.subr.mxu0 0.0
    %663 = vmatpush1.msra.mxu0 0.0
    %664 = vmatprep.subr.mxu0 0.0
    %665 = vmatpush1.msra.mxu0 0.0
    %666 = vmatprep.subr.mxu0 0.0
    %667 = vmatpush1.msra.mxu0 0.0
    %668 = vmatprep.subr.mxu0 0.0
    %669 = vmatpush1.msra.mxu0 0.0
    %670 = vmatprep.subr.mxu0 0.0
    %671 = vmatpush1.msra.mxu0 0.0
    %672 = vmatprep.mubr.f32.mxu0 0.0
    %673 = vmatmul.mubr.f32.gmra.mrb[0].mxu0 %v606
    %v674 = vpop.f32.mrb[0].mxu0
    %v675 = vadd.f32 0.0, %v674
    %v676 = vpop.f32.mrb[0].mxu0
    %677 = vdwg.mxu0
    %679 = vrot.lane.b32.xlu0 %v675, 8
    %v680 = vpop.permute.xlu0 %679
    %v682 = vadd.f32 %v468, %v680
    %684 = vrot.lane.b32.xlu0 %v682, 120
    %v685 = vpop.permute.xlu0 %684
    %s687 = scalar_lea.vmem [#allocation9], 2
    %688 = vst.msk [vmem:[%s687] sm:$0x3] %vm175, %v685
    %s689 = scalar_lea.vmem [#allocation10], 2
    %690 = vst.msk [vmem:[%s689] sm:$0x3] %vm175, %v604
    %s691 = scalar_lea.vmem [#allocation3], 4
    %v692 = vld [vmem:[%s691] sm:$0x3]
    %v693 = vsel %vm74, %v685, 0
    %695 = vmatprep.subr.mxu0 0.0
    %696 = vmatpush1.msra.mxu0 %v68
    %697 = vmatprep.subr.mxu0 0.0
    %698 = vmatpush1.msra.mxu0 0.0
    %699 = vmatprep.subr.mxu0 0.0
    %700 = vmatpush1.msra.mxu0 0.0
    %701 = vmatprep.subr.mxu0 0.0
    %702 = vmatpush1.msra.mxu0 0.0
    %703 = vmatprep.subr.mxu0 0.0
    %704 = vmatpush1.msra.mxu0 0.0
    %705 = vmatprep.subr.mxu0 0.0
    %706 = vmatpush1.msra.mxu0 0.0
    %707 = vmatprep.subr.mxu0 0.0
    %708 = vmatpush1.msra.mxu0 0.0
    %709 = vmatprep.subr.mxu0 0.0
    %710 = vmatpush1.msra.mxu0 0.0
    %711 = vmatprep.subr.mxu0 0.0
    %712 = vmatpush1.msra.mxu0 0.0
    %713 = vmatprep.subr.mxu0 0.0
    %714 = vmatpush1.msra.mxu0 0.0
    %715 = vmatprep.subr.mxu0 0.0
    %716 = vmatpush1.msra.mxu0 0.0
    %717 = vmatprep.subr.mxu0 0.0
    %718 = vmatpush1.msra.mxu0 0.0
    %719 = vmatprep.subr.mxu0 0.0
    %720 = vmatpush1.msra.mxu0 0.0
    %721 = vmatprep.subr.mxu0 0.0
    %722 = vmatpush1.msra.mxu0 0.0
    %723 = vmatprep.subr.mxu0 0.0
    %724 = vmatpush1.msra.mxu0 0.0
    %725 = vmatprep.subr.mxu0 0.0
    %726 = vmatpush1.msra.mxu0 0.0
    %727 = vmatprep.subr.mxu0 0.0
    %728 = vmatpush1.msra.mxu0 0.0
    %729 = vmatprep.subr.mxu0 0.0
    %730 = vmatpush1.msra.mxu0 0.0
    %731 = vmatprep.subr.mxu0 0.0
    %732 = vmatpush1.msra.mxu0 0.0
    %733 = vmatprep.subr.mxu0 0.0
    %734 = vmatpush1.msra.mxu0 0.0
    %735 = vmatprep.subr.mxu0 0.0
    %736 = vmatpush1.msra.mxu0 0.0
    %737 = vmatprep.subr.mxu0 0.0
    %738 = vmatpush1.msra.mxu0 0.0
    %739 = vmatprep.subr.mxu0 0.0
    %740 = vmatpush1.msra.mxu0 0.0
    %741 = vmatprep.subr.mxu0 0.0
    %742 = vmatpush1.msra.mxu0 0.0
    %743 = vmatprep.subr.mxu0 0.0
    %744 = vmatpush1.msra.mxu0 0.0
    %745 = vmatprep.subr.mxu0 0.0
    %746 = vmatpush1.msra.mxu0 0.0
    %747 = vmatprep.subr.mxu0 0.0
    %748 = vmatpush1.msra.mxu0 0.0
    %749 = vmatprep.subr.mxu0 0.0
    %750 = vmatpush1.msra.mxu0 0.0
    %751 = vmatprep.subr.mxu0 0.0
    %752 = vmatpush1.msra.mxu0 0.0
    %753 = vmatprep.subr.mxu0 0.0
    %754 = vmatpush1.msra.mxu0 0.0
    %755 = vmatprep.subr.mxu0 0.0
    %756 = vmatpush1.msra.mxu0 0.0
    %757 = vmatprep.subr.mxu0 0.0
    %758 = vmatpush1.msra.mxu0 0.0
    %759 = vmatprep.mubr.f32.mxu0 0.0
    %760 = vmatmul.mubr.f32.gmra.mrb[0].mxu0 %v693
    %v761 = vpop.f32.mrb[0].mxu0
    %v762 = vadd.f32 0.0, %v761
    %v763 = vpop.f32.mrb[0].mxu0
    %764 = vdwg.mxu0
    %v765 = vadd.f32 %v692, %v762
    %v766 = vld [vmem:[#allocation8] sm:$0x1]
    %v767 = vlaneseq
    %v768 = vshrl.u32 %v767, 7
    %v769 = vsub.s32 0, %v768
    %v770 = vrot.slane %v766, %v769
    %v771 = vmul.f32 %v770, 0.0
    %v772 = vsel %vm74, %v771, 0.0
    %773 = vadd.xlane.f32.xlu0 %v772
    %v774 = vpop.xlane.xlu0 %773
    %v775 = vadd.f32 %v765, %v774
    %v776 = vtanh.pop %v775
    %778 = vset.pattern.permute.xlu0 0
    %779 = vperm.xlu0 %778, %v776
    %v780 = vpop.permute.xlu0 %779
    %v782 = vsel %vm162, %v780, 0.0
    %v783 = vld [vmem:[#allocation8 + $0x1] sm:$0x1]
    %v784 = vlaneseq
    %v785 = vshrl.u32 %v784, 7
    %v786 = vsub.s32 0, %v785
    %v787 = vrot.slane %v783, %v786
    %v788 = vmul.f32 %v782, %v787
    %v789 = vsel %vm175, %v788, 0.0
    %790 = vadd.xlane.f32.xlu0 %v789
    %v791 = vpop.xlane.xlu0 %790
    %v792 = vadd.f32 %v765, %v791
    %v793 = vtanh.pop %v792
    %795 = vset.pattern.permute.xlu0 1
    %796 = vperm.xlu0 %795, %v793
    %v797 = vpop.permute.xlu0 %796
    %v799 = vsel %vm183, %v797, %v782
    %v800 = vld [vmem:[#allocation8 + $0x2] sm:$0x1]
    %v801 = vlaneseq
    %v802 = vshrl.u32 %v801, 7
    %v803 = vsub.s32 0, %v802
    %v804 = vrot.slane %v800, %v803
    %v805 = vmul.f32 %v799, %v804
    %v806 = vsel %vm175, %v805, 0.0
    %807 = vadd.xlane.f32.xlu0 %v806
    %v808 = vpop.xlane.xlu0 %807
    %v809 = vadd.f32 %v765, %v808
    %v810 = vtanh.pop %v809
    %812 = vset.pattern.permute.xlu0 2
    %813 = vperm.xlu0 %812, %v810
    %v814 = vpop.permute.xlu0 %813
    %v816 = vsel %vm203, %v814, %v799
    %v817 = vld [vmem:[#allocation8 + $0x3] sm:$0x1]
    %v818 = vlaneseq
    %v819 = vshrl.u32 %v818, 7
    %v820 = vsub.s32 0, %v819
    %v821 = vrot.slane %v817, %v820
    %v822 = vmul.f32 %v816, %v821
    %v823 = vsel %vm175, %v822, 0.0
    %824 = vadd.xlane.f32.xlu0 %v823
    %v825 = vpop.xlane.xlu0 %824
    %v826 = vadd.f32 %v765, %v825
    %v827 = vtanh.pop %v826
    %829 = vset.pattern.permute.xlu0 3
    %830 = vperm.xlu0 %829, %v827
    %v831 = vpop.permute.xlu0 %830
    %v833 = vsel %vm223, %v831, %v816
    %v834 = vld [vmem:[#allocation8 + $0x4] sm:$0x1]
    %v835 = vlaneseq
    %v836 = vshrl.u32 %v835, 7
    %v837 = vsub.s32 0, %v836
    %v838 = vrot.slane %v834, %v837
    %v839 = vmul.f32 %v833, %v838
    %v840 = vsel %vm175, %v839, 0.0
    %841 = vadd.xlane.f32.xlu0 %v840
    %v842 = vpop.xlane.xlu0 %841
    %v843 = vadd.f32 %v765, %v842
    %v844 = vtanh.pop %v843
    %846 = vset.pattern.permute.xlu0 4
    %847 = vperm.xlu0 %846, %v844
    %v848 = vpop.permute.xlu0 %847
    %v850 = vsel %vm243, %v848, %v833
    %v851 = vld [vmem:[#allocation8 + $0x5] sm:$0x1]
    %v852 = vlaneseq
    %v853 = vshrl.u32 %v852, 7
    %v854 = vsub.s32 0, %v853
    %v855 = vrot.slane %v851, %v854
    %v856 = vmul.f32 %v850, %v855
    %v857 = vsel %vm175, %v856, 0.0
    %858 = vadd.xlane.f32.xlu0 %v857
    %v859 = vpop.xlane.xlu0 %858
    %v860 = vadd.f32 %v765, %v859
    %v861 = vtanh.pop %v860
    %863 = vset.pattern.permute.xlu0 5
    %864 = vperm.xlu0 %863, %v861
    %v865 = vpop.permute.xlu0 %864
    %v867 = vsel %vm263, %v865, %v850
    %v868 = vld [vmem:[#allocation8 + $0x6] sm:$0x1]
    %v869 = vlaneseq
    %v870 = vshrl.u32 %v869, 7
    %v871 = vsub.s32 0, %v870
    %v872 = vrot.slane %v868, %v871
    %v873 = vmul.f32 %v867, %v872
    %v874 = vsel %vm175, %v873, 0.0
    %875 = vadd.xlane.f32.xlu0 %v874
    %v876 = vpop.xlane.xlu0 %875
    %v877 = vadd.f32 %v765, %v876
    %v878 = vtanh.pop %v877
    %880 = vset.pattern.permute.xlu0 6
    %881 = vperm.xlu0 %880, %v878
    %v882 = vpop.permute.xlu0 %881
    %v884 = vsel %vm283, %v882, %v867
    %v885 = vld [vmem:[#allocation8 + $0x7] sm:$0x1]
    %v886 = vlaneseq
    %v887 = vshrl.u32 %v886, 7
    %v888 = vsub.s32 0, %v887
    %v889 = vrot.slane %v885, %v888
    %v890 = vmul.f32 %v884, %v889
    %v891 = vsel %vm175, %v890, 0.0
    %892 = vadd.xlane.f32.xlu0 %v891
    %v893 = vpop.xlane.xlu0 %892
    %v894 = vadd.f32 %v765, %v893
    %v895 = vtanh.pop %v894
    %897 = vset.pattern.permute.xlu0 7
    %898 = vperm.xlu0 %897, %v895
    %v899 = vpop.permute.xlu0 %898
    %v901 = vsel %vm303, %v899, %v884
    %v903 = vsel %vm74, %v901, 0
    %905 = vmatprep.subr.mxu0 0.0
    %906 = vmatpush1.msra.mxu0 %v69
    %907 = vmatprep.subr.mxu0 0.0
    %908 = vmatpush1.msra.mxu0 0.0
    %909 = vmatprep.subr.mxu0 0.0
    %910 = vmatpush1.msra.mxu0 0.0
    %911 = vmatprep.subr.mxu0 0.0
    %912 = vmatpush1.msra.mxu0 0.0
    %913 = vmatprep.subr.mxu0 0.0
    %914 = vmatpush1.msra.mxu0 0.0
    %915 = vmatprep.subr.mxu0 0.0
    %916 = vmatpush1.msra.mxu0 0.0
    %917 = vmatprep.subr.mxu0 0.0
    %918 = vmatpush1.msra.mxu0 0.0
    %919 = vmatprep.subr.mxu0 0.0
    %920 = vmatpush1.msra.mxu0 0.0
    %921 = vmatprep.subr.mxu0 0.0
    %922 = vmatpush1.msra.mxu0 0.0
    %923 = vmatprep.subr.mxu0 0.0
    %924 = vmatpush1.msra.mxu0 0.0
    %925 = vmatprep.subr.mxu0 0.0
    %926 = vmatpush1.msra.mxu0 0.0
    %927 = vmatprep.subr.mxu0 0.0
    %928 = vmatpush1.msra.mxu0 0.0
    %929 = vmatprep.subr.mxu0 0.0
    %930 = vmatpush1.msra.mxu0 0.0
    %931 = vmatprep.subr.mxu0 0.0
    %932 = vmatpush1.msra.mxu0 0.0
    %933 = vmatprep.subr.mxu0 0.0
    %934 = vmatpush1.msra.mxu0 0.0
    %935 = vmatprep.subr.mxu0 0.0
    %936 = vmatpush1.msra.mxu0 0.0
    %937 = vmatprep.subr.mxu0 0.0
    %938 = vmatpush1.msra.mxu0 0.0
    %939 = vmatprep.subr.mxu0 0.0
    %940 = vmatpush1.msra.mxu0 0.0
    %941 = vmatprep.subr.mxu0 0.0
    %942 = vmatpush1.msra.mxu0 0.0
    %943 = vmatprep.subr.mxu0 0.0
    %944 = vmatpush1.msra.mxu0 0.0
    %945 = vmatprep.subr.mxu0 0.0
    %946 = vmatpush1.msra.mxu0 0.0
    %947 = vmatprep.subr.mxu0 0.0
    %948 = vmatpush1.msra.mxu0 0.0
    %949 = vmatprep.subr.mxu0 0.0
    %950 = vmatpush1.msra.mxu0 0.0
    %951 = vmatprep.subr.mxu0 0.0
    %952 = vmatpush1.msra.mxu0 0.0
    %953 = vmatprep.subr.mxu0 0.0
    %954 = vmatpush1.msra.mxu0 0.0
    %955 = vmatprep.subr.mxu0 0.0
    %956 = vmatpush1.msra.mxu0 0.0
    %957 = vmatprep.subr.mxu0 0.0
    %958 = vmatpush1.msra.mxu0 0.0
    %959 = vmatprep.subr.mxu0 0.0
    %960 = vmatpush1.msra.mxu0 0.0
    %961 = vmatprep.subr.mxu0 0.0
    %962 = vmatpush1.msra.mxu0 0.0
    %963 = vmatprep.subr.mxu0 0.0
    %964 = vmatpush1.msra.mxu0 0.0
    %965 = vmatprep.subr.mxu0 0.0
    %966 = vmatpush1.msra.mxu0 0.0
    %967 = vmatprep.subr.mxu0 0.0
    %968 = vmatpush1.msra.mxu0 0.0
    %969 = vmatprep.mubr.f32.mxu0 0.0
    %970 = vmatmul.mubr.f32.gmra.mrb[0].mxu0 %v903
    %v971 = vpop.f32.mrb[0].mxu0
    %v972 = vadd.f32 0.0, %v971
    %v973 = vpop.f32.mrb[0].mxu0
    %974 = vdwg.mxu0
    %976 = vrot.lane.b32.xlu0 %v972, 8
    %v977 = vpop.permute.xlu0 %976
    %v979 = vadd.f32 %v765, %v977
    %981 = vrot.lane.b32.xlu0 %v979, 120
    %v982 = vpop.permute.xlu0 %981
    %s984 = scalar_lea.vmem [#allocation9], 4
    %985 = vst.msk [vmem:[%s984] sm:$0x3] %vm175, %v982
    %s986 = scalar_lea.vmem [#allocation10], 4
    %987 = vst.msk [vmem:[%s986] sm:$0x3] %vm175, %v901
    %s988 = scalar_lea.vmem [#allocation3], 6
    %v989 = vld [vmem:[%s988] sm:$0x3]
    %v990 = vsel %vm74, %v982, 0
    %992 = vmatprep.subr.mxu0 0.0
    %993 = vmatpush1.msra.mxu0 %v68
    %994 = vmatprep.subr.mxu0 0.0
    %995 = vmatpush1.msra.mxu0 0.0
    %996 = vmatprep.subr.mxu0 0.0
    %997 = vmatpush1.msra.mxu0 0.0
    %998 = vmatprep.subr.mxu0 0.0
    %999 = vmatpush1.msra.mxu0 0.0
    %1000 = vmatprep.subr.mxu0 0.0
    %1001 = vmatpush1.msra.mxu0 0.0
    %1002 = vmatprep.subr.mxu0 0.0
    %1003 = vmatpush1.msra.mxu0 0.0
    %1004 = vmatprep.subr.mxu0 0.0
    %1005 = vmatpush1.msra.mxu0 0.0
    %1006 = vmatprep.subr.mxu0 0.0
    %1007 = vmatpush1.msra.mxu0 0.0
    %1008 = vmatprep.subr.mxu0 0.0
    %1009 = vmatpush1.msra.mxu0 0.0
    %1010 = vmatprep.subr.mxu0 0.0
    %1011 = vmatpush1.msra.mxu0 0.0
    %1012 = vmatprep.subr.mxu0 0.0
    %1013 = vmatpush1.msra.mxu0 0.0
    %1014 = vmatprep.subr.mxu0 0.0
    %1015 = vmatpush1.msra.mxu0 0.0
    %1016 = vmatprep.subr.mxu0 0.0
    %1017 = vmatpush1.msra.mxu0 0.0
    %1018 = vmatprep.subr.mxu0 0.0
    %1019 = vmatpush1.msra.mxu0 0.0
    %1020 = vmatprep.subr.mxu0 0.0
    %1021 = vmatpush1.msra.mxu0 0.0
    %1022 = vmatprep.subr.mxu0 0.0
    %1023 = vmatpush1.msra.mxu0 0.0
    %1024 = vmatprep.subr.mxu0 0.0
    %1025 = vmatpush1.msra.mxu0 0.0
    %1026 = vmatprep.subr.mxu0 0.0
    %1027 = vmatpush1.msra.mxu0 0.0
    %1028 = vmatprep.subr.mxu0 0.0
    %1029 = vmatpush1.msra.mxu0 0.0
    %1030 = vmatprep.subr.mxu0 0.0
    %1031 = vmatpush1.msra.mxu0 0.0
    %1032 = vmatprep.subr.mxu0 0.0
    %1033 = vmatpush1.msra.mxu0 0.0
    %1034 = vmatprep.subr.mxu0 0.0
    %1035 = vmatpush1.msra.mxu0 0.0
    %1036 = vmatprep.subr.mxu0 0.0
    %1037 = vmatpush1.msra.mxu0 0.0
    %1038 = vmatprep.subr.mxu0 0.0
    %1039 = vmatpush1.msra.mxu0 0.0
    %1040 = vmatprep.subr.mxu0 0.0
    %1041 = vmatpush1.msra.mxu0 0.0
    %1042 = vmatprep.subr.mxu0 0.0
    %1043 = vmatpush1.msra.mxu0 0.0
    %1044 = vmatprep.subr.mxu0 0.0
    %1045 = vmatpush1.msra.mxu0 0.0
    %1046 = vmatprep.subr.mxu0 0.0
    %1047 = vmatpush1.msra.mxu0 0.0
    %1048 = vmatprep.subr.mxu0 0.0
    %1049 = vmatpush1.msra.mxu0 0.0
    %1050 = vmatprep.subr.mxu0 0.0
    %1051 = vmatpush1.msra.mxu0 0.0
    %1052 = vmatprep.subr.mxu0 0.0
    %1053 = vmatpush1.msra.mxu0 0.0
    %1054 = vmatprep.subr.mxu0 0.0
    %1055 = vmatpush1.msra.mxu0 0.0
    %1056 = vmatprep.mubr.f32.mxu0 0.0
    %1057 = vmatmul.mubr.f32.gmra.mrb[0].mxu0 %v990
    %v1058 = vpop.f32.mrb[0].mxu0
    %v1059 = vadd.f32 0.0, %v1058
    %v1060 = vpop.f32.mrb[0].mxu0
    %1061 = vdwg.mxu0
    %v1062 = vadd.f32 %v989, %v1059
    %v1063 = vld [vmem:[#allocation8] sm:$0x1]
    %v1064 = vlaneseq
    %v1065 = vshrl.u32 %v1064, 7
    %v1066 = vsub.s32 0, %v1065
    %v1067 = vrot.slane %v1063, %v1066
    %v1068 = vmul.f32 %v1067, 0.0
    %v1069 = vsel %vm74, %v1068, 0.0
    %1070 = vadd.xlane.f32.xlu0 %v1069
    %v1071 = vpop.xlane.xlu0 %1070
    %v1072 = vadd.f32 %v1062, %v1071
    %v1073 = vtanh.pop %v1072
    %1075 = vset.pattern.permute.xlu0 0
    %1076 = vperm.xlu0 %1075, %v1073
    %v1077 = vpop.permute.xlu0 %1076
    %v1079 = vsel %vm162, %v1077, 0.0
    %v1080 = vld [vmem:[#allocation8 + $0x1] sm:$0x1]
    %v1081 = vlaneseq
    %v1082 = vshrl.u32 %v1081, 7
    %v1083 = vsub.s32 0, %v1082
    %v1084 = vrot.slane %v1080, %v1083
    %v1085 = vmul.f32 %v1079, %v1084
    %v1086 = vsel %vm175, %v1085, 0.0
    %1087 = vadd.xlane.f32.xlu0 %v1086
    %v1088 = vpop.xlane.xlu0 %1087
    %v1089 = vadd.f32 %v1062, %v1088
    %v1090 = vtanh.pop %v1089
    %1092 = vset.pattern.permute.xlu0 1
    %1093 = vperm.xlu0 %1092, %v1090
    %v1094 = vpop.permute.xlu0 %1093
    %v1096 = vsel %vm183, %v1094, %v1079
    %v1097 = vld [vmem:[#allocation8 + $0x2] sm:$0x1]
    %v1098 = vlaneseq
    %v1099 = vshrl.u32 %v1098, 7
    %v1100 = vsub.s32 0, %v1099
    %v1101 = vrot.slane %v1097, %v1100
    %v1102 = vmul.f32 %v1096, %v1101
    %v1103 = vsel %vm175, %v1102, 0.0
    %1104 = vadd.xlane.f32.xlu0 %v1103
    %v1105 = vpop.xlane.xlu0 %1104
    %v1106 = vadd.f32 %v1062, %v1105
    %v1107 = vtanh.pop %v1106
    %1109 = vset.pattern.permute.xlu0 2
    %1110 = vperm.xlu0 %1109, %v1107
    %v1111 = vpop.permute.xlu0 %1110
    %v1113 = vsel %vm203, %v1111, %v1096
    %v1114 = vld [vmem:[#allocation8 + $0x3] sm:$0x1]
    %v1115 = vlaneseq
    %v1116 = vshrl.u32 %v1115, 7
    %v1117 = vsub.s32 0, %v1116
    %v1118 = vrot.slane %v1114, %v1117
    %v1119 = vmul.f32 %v1113, %v1118
    %v1120 = vsel %vm175, %v1119, 0.0
    %1121 = vadd.xlane.f32.xlu0 %v1120
    %v1122 = vpop.xlane.xlu0 %1121
    %v1123 = vadd.f32 %v1062, %v1122
    %v1124 = vtanh.pop %v1123
    %1126 = vset.pattern.permute.xlu0 3
    %1127 = vperm.xlu0 %1126, %v1124
    %v1128 = vpop.permute.xlu0 %1127
    %v1130 = vsel %vm223, %v1128, %v1113
    %v1131 = vld [vmem:[#allocation8 + $0x4] sm:$0x1]
    %v1132 = vlaneseq
    %v1133 = vshrl.u32 %v1132, 7
    %v1134 = vsub.s32 0, %v1133
    %v1135 = vrot.slane %v1131, %v1134
    %v1136 = vmul.f32 %v1130, %v1135
    %v1137 = vsel %vm175, %v1136, 0.0
    %1138 = vadd.xlane.f32.xlu0 %v1137
    %v1139 = vpop.xlane.xlu0 %1138
    %v1140 = vadd.f32 %v1062, %v1139
    %v1141 = vtanh.pop %v1140
    %1143 = vset.pattern.permute.xlu0 4
    %1144 = vperm.xlu0 %1143, %v1141
    %v1145 = vpop.permute.xlu0 %1144
    %v1147 = vsel %vm243, %v1145, %v1130
    %v1148 = vld [vmem:[#allocation8 + $0x5] sm:$0x1]
    %v1149 = vlaneseq
    %v1150 = vshrl.u32 %v1149, 7
    %v1151 = vsub.s32 0, %v1150
    %v1152 = vrot.slane %v1148, %v1151
    %v1153 = vmul.f32 %v1147, %v1152
    %v1154 = vsel %vm175, %v1153, 0.0
    %1155 = vadd.xlane.f32.xlu0 %v1154
    %v1156 = vpop.xlane.xlu0 %1155
    %v1157 = vadd.f32 %v1062, %v1156
    %v1158 = vtanh.pop %v1157
    %1160 = vset.pattern.permute.xlu0 5
    %1161 = vperm.xlu0 %1160, %v1158
    %v1162 = vpop.permute.xlu0 %1161
    %v1164 = vsel %vm263, %v1162, %v1147
    %v1165 = vld [vmem:[#allocation8 + $0x6] sm:$0x1]
    %v1166 = vlaneseq
    %v1167 = vshrl.u32 %v1166, 7
    %v1168 = vsub.s32 0, %v1167
    %v1169 = vrot.slane %v1165, %v1168
    %v1170 = vmul.f32 %v1164, %v1169
    %v1171 = vsel %vm175, %v1170, 0.0
    %1172 = vadd.xlane.f32.xlu0 %v1171
    %v1173 = vpop.xlane.xlu0 %1172
    %v1174 = vadd.f32 %v1062, %v1173
    %v1175 = vtanh.pop %v1174
    %1177 = vset.pattern.permute.xlu0 6
    %1178 = vperm.xlu0 %1177, %v1175
    %v1179 = vpop.permute.xlu0 %1178
    %v1181 = vsel %vm283, %v1179, %v1164
    %v1182 = vld [vmem:[#allocation8 + $0x7] sm:$0x1]
    %v1183 = vlaneseq
    %v1184 = vshrl.u32 %v1183, 7
    %v1185 = vsub.s32 0, %v1184
    %v1186 = vrot.slane %v1182, %v1185
    %v1187 = vmul.f32 %v1181, %v1186
    %v1188 = vsel %vm175, %v1187, 0.0
    %1189 = vadd.xlane.f32.xlu0 %v1188
    %v1190 = vpop.xlane.xlu0 %1189
    %v1191 = vadd.f32 %v1062, %v1190
    %v1192 = vtanh.pop %v1191
    %1194 = vset.pattern.permute.xlu0 7
    %1195 = vperm.xlu0 %1194, %v1192
    %v1196 = vpop.permute.xlu0 %1195
    %v1198 = vsel %vm303, %v1196, %v1181
    %v1200 = vsel %vm74, %v1198, 0
    %1202 = vmatprep.subr.mxu0 0.0
    %1203 = vmatpush1.msra.mxu0 %v69
    %1204 = vmatprep.subr.mxu0 0.0
    %1205 = vmatpush1.msra.mxu0 0.0
    %1206 = vmatprep.subr.mxu0 0.0
    %1207 = vmatpush1.msra.mxu0 0.0
    %1208 = vmatprep.subr.mxu0 0.0
    %1209 = vmatpush1.msra.mxu0 0.0
    %1210 = vmatprep.subr.mxu0 0.0
    %1211 = vmatpush1.msra.mxu0 0.0
    %1212 = vmatprep.subr.mxu0 0.0
    %1213 = vmatpush1.msra.mxu0 0.0
    %1214 = vmatprep.subr.mxu0 0.0
    %1215 = vmatpush1.msra.mxu0 0.0
    %1216 = vmatprep.subr.mxu0 0.0
    %1217 = vmatpush1.msra.mxu0 0.0
    %1218 = vmatprep.subr.mxu0 0.0
    %1219 = vmatpush1.msra.mxu0 0.0
    %1220 = vmatprep.subr.mxu0 0.0
    %1221 = vmatpush1.msra.mxu0 0.0
    %1222 = vmatprep.subr.mxu0 0.0
    %1223 = vmatpush1.msra.mxu0 0.0
    %1224 = vmatprep.subr.mxu0 0.0
    %1225 = vmatpush1.msra.mxu0 0.0
    %1226 = vmatprep.subr.mxu0 0.0
    %1227 = vmatpush1.msra.mxu0 0.0
    %1228 = vmatprep.subr.mxu0 0.0
    %1229 = vmatpush1.msra.mxu0 0.0
    %1230 = vmatprep.subr.mxu0 0.0
    %1231 = vmatpush1.msra.mxu0 0.0
    %1232 = vmatprep.subr.mxu0 0.0
    %1233 = vmatpush1.msra.mxu0 0.0
    %1234 = vmatprep.subr.mxu0 0.0
    %1235 = vmatpush1.msra.mxu0 0.0
    %1236 = vmatprep.subr.mxu0 0.0
    %1237 = vmatpush1.msra.mxu0 0.0
    %1238 = vmatprep.subr.mxu0 0.0
    %1239 = vmatpush1.msra.mxu0 0.0
    %1240 = vmatprep.subr.mxu0 0.0
    %1241 = vmatpush1.msra.mxu0 0.0
    %1242 = vmatprep.subr.mxu0 0.0
    %1243 = vmatpush1.msra.mxu0 0.0
    %1244 = vmatprep.subr.mxu0 0.0
    %1245 = vmatpush1.msra.mxu0 0.0
    %1246 = vmatprep.subr.mxu0 0.0
    %1247 = vmatpush1.msra.mxu0 0.0
    %1248 = vmatprep.subr.mxu0 0.0
    %1249 = vmatpush1.msra.mxu0 0.0
    %1250 = vmatprep.subr.mxu0 0.0
    %1251 = vmatpush1.msra.mxu0 0.0
    %1252 = vmatprep.subr.mxu0 0.0
    %1253 = vmatpush1.msra.mxu0 0.0
    %1254 = vmatprep.subr.mxu0 0.0
    %1255 = vmatpush1.msra.mxu0 0.0
    %1256 = vmatprep.subr.mxu0 0.0
    %1257 = vmatpush1.msra.mxu0 0.0
    %1258 = vmatprep.subr.mxu0 0.0
    %1259 = vmatpush1.msra.mxu0 0.0
    %1260 = vmatprep.subr.mxu0 0.0
    %1261 = vmatpush1.msra.mxu0 0.0
    %1262 = vmatprep.subr.mxu0 0.0
    %1263 = vmatpush1.msra.mxu0 0.0
    %1264 = vmatprep.subr.mxu0 0.0
    %1265 = vmatpush1.msra.mxu0 0.0
    %1266 = vmatprep.mubr.f32.mxu0 0.0
    %1267 = vmatmul.mubr.f32.gmra.mrb[0].mxu0 %v1200
    %v1268 = vpop.f32.mrb[0].mxu0
    %v1269 = vadd.f32 0.0, %v1268
    %v1270 = vpop.f32.mrb[0].mxu0
    %1271 = vdwg.mxu0
    %1273 = vrot.lane.b32.xlu0 %v1269, 8
    %v1274 = vpop.permute.xlu0 %1273
    %v1276 = vadd.f32 %v1062, %v1274
    %1278 = vrot.lane.b32.xlu0 %v1276, 120
    %v1279 = vpop.permute.xlu0 %1278
    %s1281 = scalar_lea.vmem [#allocation9], 6
    %1282 = vst.msk [vmem:[%s1281] sm:$0x3] %vm175, %v1279
    %s1283 = scalar_lea.vmem [#allocation10], 6
    %1284 = vst.msk [vmem:[%s1283] sm:$0x3] %vm175, %v1198
    %s1285 = scalar_lea.vmem [#allocation3], 8
    %v1286 = vld [vmem:[%s1285] sm:$0x3]
    %v1287 = vsel %vm74, %v1279, 0
    %1289 = vmatprep.subr.mxu0 0.0
    %1290 = vmatpush1.msra.mxu0 %v68
    %1291 = vmatprep.subr.mxu0 0.0
    %1292 = vmatpush1.msra.mxu0 0.0
    %1293 = vmatprep.subr.mxu0 0.0
    %1294 = vmatpush1.msra.mxu0 0.0
    %1295 = vmatprep.subr.mxu0 0.0
    %1296 = vmatpush1.msra.mxu0 0.0
    %1297 = vmatprep.subr.mxu0 0.0
    %1298 = vmatpush1.msra.mxu0 0.0
    %1299 = vmatprep.subr.mxu0 0.0
    %1300 = vmatpush1.msra.mxu0 0.0
    %1301 = vmatprep.subr.mxu0 0.0
    %1302 = vmatpush1.msra.mxu0 0.0
    %1303 = vmatprep.subr.mxu0 0.0
    %1304 = vmatpush1.msra.mxu0 0.0
    %1305 = vmatprep.subr.mxu0 0.0
    %1306 = vmatpush1.msra.mxu0 0.0
    %1307 = vmatprep.subr.mxu0 0.0
    %1308 = vmatpush1.msra.mxu0 0.0
    %1309 = vmatprep.subr.mxu0 0.0
    %1310 = vmatpush1.msra.mxu0 0.0
    %1311 = vmatprep.subr.mxu0 0.0
    %1312 = vmatpush1.msra.mxu0 0.0
    %1313 = vmatprep.subr.mxu0 0.0
    %1314 = vmatpush1.msra.mxu0 0.0
    %1315 = vmatprep.subr.mxu0 0.0
    %1316 = vmatpush1.msra.mxu0 0.0
    %1317 = vmatprep.subr.mxu0 0.0
    %1318 = vmatpush1.msra.mxu0 0.0
    %1319 = vmatprep.subr.mxu0 0.0
    %1320 = vmatpush1.msra.mxu0 0.0
    %1321 = vmatprep.subr.mxu0 0.0
    %1322 = vmatpush1.msra.mxu0 0.0
    %1323 = vmatprep.subr.mxu0 0.0
    %1324 = vmatpush1.msra.mxu0 0.0
    %1325 = vmatprep.subr.mxu0 0.0
    %1326 = vmatpush1.msra.mxu0 0.0
    %1327 = vmatprep.subr.mxu0 0.0
    %1328 = vmatpush1.msra.mxu0 0.0
    %1329 = vmatprep.subr.mxu0 0.0
    %1330 = vmatpush1.msra.mxu0 0.0
    %1331 = vmatprep.subr.mxu0 0.0
    %1332 = vmatpush1.msra.mxu0 0.0
    %1333 = vmatprep.subr.mxu0 0.0
    %1334 = vmatpush1.msra.mxu0 0.0
    %1335 = vmatprep.subr.mxu0 0.0
    %1336 = vmatpush1.msra.mxu0 0.0
    %1337 = vmatprep.subr.mxu0 0.0
    %1338 = vmatpush1.msra.mxu0 0.0
    %1339 = vmatprep.subr.mxu0 0.0
    %1340 = vmatpush1.msra.mxu0 0.0
    %1341 = vmatprep.subr.mxu0 0.0
    %1342 = vmatpush1.msra.mxu0 0.0
    %1343 = vmatprep.subr.mxu0 0.0
    %1344 = vmatpush1.msra.mxu0 0.0
    %1345 = vmatprep.subr.mxu0 0.0
    %1346 = vmatpush1.msra.mxu0 0.0
    %1347 = vmatprep.subr.mxu0 0.0
    %1348 = vmatpush1.msra.mxu0 0.0
    %1349 = vmatprep.subr.mxu0 0.0
    %1350 = vmatpush1.msra.mxu0 0.0
    %1351 = vmatprep.subr.mxu0 0.0
    %1352 = vmatpush1.msra.mxu0 0.0
    %1353 = vmatprep.mubr.f32.mxu0 0.0
    %1354 = vmatmul.mubr.f32.gmra.mrb[0].mxu0 %v1287
    %v1355 = vpop.f32.mrb[0].mxu0
    %v1356 = vadd.f32 0.0, %v1355
    %v1357 = vpop.f32.mrb[0].mxu0
    %1358 = vdwg.mxu0
    %v1359 = vadd.f32 %v1286, %v1356
    %v1360 = vld [vmem:[#allocation8] sm:$0x1]
    %v1361 = vlaneseq
    %v1362 = vshrl.u32 %v1361, 7
    %v1363 = vsub.s32 0, %v1362
    %v1364 = vrot.slane %v1360, %v1363
    %v1365 = vmul.f32 %v1364, 0.0
    %v1366 = vsel %vm74, %v1365, 0.0
    %1367 = vadd.xlane.f32.xlu0 %v1366
    %v1368 = vpop.xlane.xlu0 %1367
    %v1369 = vadd.f32 %v1359, %v1368
    %v1370 = vtanh.pop %v1369
    %1372 = vset.pattern.permute.xlu0 0
    %1373 = vperm.xlu0 %1372, %v1370
    %v1374 = vpop.permute.xlu0 %1373
    %v1376 = vsel %vm162, %v1374, 0.0
    %v1377 = vld [vmem:[#allocation8 + $0x1] sm:$0x1]
    %v1378 = vlaneseq
    %v1379 = vshrl.u32 %v1378, 7
    %v1380 = vsub.s32 0, %v1379
    %v1381 = vrot.slane %v1377, %v1380
    %v1382 = vmul.f32 %v1376, %v1381
    %v1383 = vsel %vm175, %v1382, 0.0
    %1384 = vadd.xlane.f32.xlu0 %v1383
    %v1385 = vpop.xlane.xlu0 %1384
    %v1386 = vadd.f32 %v1359, %v1385
    %v1387 = vtanh.pop %v1386
    %1389 = vset.pattern.permute.xlu0 1
    %1390 = vperm.xlu0 %1389, %v1387
    %v1391 = vpop.permute.xlu0 %1390
    %v1393 = vsel %vm183, %v1391, %v1376
    %v1394 = vld [vmem:[#allocation8 + $0x2] sm:$0x1]
    %v1395 = vlaneseq
    %v1396 = vshrl.u32 %v1395, 7
    %v1397 = vsub.s32 0, %v1396
    %v1398 = vrot.slane %v1394, %v1397
    %v1399 = vmul.f32 %v1393, %v1398
    %v1400 = vsel %vm175, %v1399, 0.0
    %1401 = vadd.xlane.f32.xlu0 %v1400
    %v1402 = vpop.xlane.xlu0 %1401
    %v1403 = vadd.f32 %v1359, %v1402
    %v1404 = vtanh.pop %v1403
    %1406 = vset.pattern.permute.xlu0 2
    %1407 = vperm.xlu0 %1406, %v1404
    %v1408 = vpop.permute.xlu0 %1407
    %v1410 = vsel %vm203, %v1408, %v1393
    %v1411 = vld [vmem:[#allocation8 + $0x3] sm:$0x1]
    %v1412 = vlaneseq
    %v1413 = vshrl.u32 %v1412, 7
    %v1414 = vsub.s32 0, %v1413
    %v1415 = vrot.slane %v1411, %v1414
    %v1416 = vmul.f32 %v1410, %v1415
    %v1417 = vsel %vm175, %v1416, 0.0
    %1418 = vadd.xlane.f32.xlu0 %v1417
    %v1419 = vpop.xlane.xlu0 %1418
    %v1420 = vadd.f32 %v1359, %v1419
    %v1421 = vtanh.pop %v1420
    %1423 = vset.pattern.permute.xlu0 3
    %1424 = vperm.xlu0 %1423, %v1421
    %v1425 = vpop.permute.xlu0 %1424
    %v1427 = vsel %vm223, %v1425, %v1410
    %v1428 = vld [vmem:[#allocation8 + $0x4] sm:$0x1]
    %v1429 = vlaneseq
    %v1430 = vshrl.u32 %v1429, 7
    %v1431 = vsub.s32 0, %v1430
    %v1432 = vrot.slane %v1428, %v1431
    %v1433 = vmul.f32 %v1427, %v1432
    %v1434 = vsel %vm175, %v1433, 0.0
    %1435 = vadd.xlane.f32.xlu0 %v1434
    %v1436 = vpop.xlane.xlu0 %1435
    %v1437 = vadd.f32 %v1359, %v1436
    %v1438 = vtanh.pop %v1437
    %1440 = vset.pattern.permute.xlu0 4
    %1441 = vperm.xlu0 %1440, %v1438
    %v1442 = vpop.permute.xlu0 %1441
    %v1444 = vsel %vm243, %v1442, %v1427
    %v1445 = vld [vmem:[#allocation8 + $0x5] sm:$0x1]
    %v1446 = vlaneseq
    %v1447 = vshrl.u32 %v1446, 7
    %v1448 = vsub.s32 0, %v1447
    %v1449 = vrot.slane %v1445, %v1448
    %v1450 = vmul.f32 %v1444, %v1449
    %v1451 = vsel %vm175, %v1450, 0.0
    %1452 = vadd.xlane.f32.xlu0 %v1451
    %v1453 = vpop.xlane.xlu0 %1452
    %v1454 = vadd.f32 %v1359, %v1453
    %v1455 = vtanh.pop %v1454
    %1457 = vset.pattern.permute.xlu0 5
    %1458 = vperm.xlu0 %1457, %v1455
    %v1459 = vpop.permute.xlu0 %1458
    %v1461 = vsel %vm263, %v1459, %v1444
    %v1462 = vld [vmem:[#allocation8 + $0x6] sm:$0x1]
    %v1463 = vlaneseq
    %v1464 = vshrl.u32 %v1463, 7
    %v1465 = vsub.s32 0, %v1464
    %v1466 = vrot.slane %v1462, %v1465
    %v1467 = vmul.f32 %v1461, %v1466
    %v1468 = vsel %vm175, %v1467, 0.0
    %1469 = vadd.xlane.f32.xlu0 %v1468
    %v1470 = vpop.xlane.xlu0 %1469
    %v1471 = vadd.f32 %v1359, %v1470
    %v1472 = vtanh.pop %v1471
    %1474 = vset.pattern.permute.xlu0 6
    %1475 = vperm.xlu0 %1474, %v1472
    %v1476 = vpop.permute.xlu0 %1475
    %v1478 = vsel %vm283, %v1476, %v1461
    %v1479 = vld [vmem:[#allocation8 + $0x7] sm:$0x1]
    %v1480 = vlaneseq
    %v1481 = vshrl.u32 %v1480, 7
    %v1482 = vsub.s32 0, %v1481
    %v1483 = vrot.slane %v1479, %v1482
    %v1484 = vmul.f32 %v1478, %v1483
    %v1485 = vsel %vm175, %v1484, 0.0
    %1486 = vadd.xlane.f32.xlu0 %v1485
    %v1487 = vpop.xlane.xlu0 %1486
    %v1488 = vadd.f32 %v1359, %v1487
    %v1489 = vtanh.pop %v1488
    %1491 = vset.pattern.permute.xlu0 7
    %1492 = vperm.xlu0 %1491, %v1489
    %v1493 = vpop.permute.xlu0 %1492
    %v1495 = vsel %vm303, %v1493, %v1478
    %v1497 = vsel %vm74, %v1495, 0
    %1499 = vmatprep.subr.mxu0 0.0
    %1500 = vmatpush1.msra.mxu0 %v69
    %1501 = vmatprep.subr.mxu0 0.0
    %1502 = vmatpush1.msra.mxu0 0.0
    %1503 = vmatprep.subr.mxu0 0.0
    %1504 = vmatpush1.msra.mxu0 0.0
    %1505 = vmatprep.subr.mxu0 0.0
    %1506 = vmatpush1.msra.mxu0 0.0
    %1507 = vmatprep.subr.mxu0 0.0
    %1508 = vmatpush1.msra.mxu0 0.0
    %1509 = vmatprep.subr.mxu0 0.0
    %1510 = vmatpush1.msra.mxu0 0.0
    %1511 = vmatprep.subr.mxu0 0.0
    %1512 = vmatpush1.msra.mxu0 0.0
    %1513 = vmatprep.subr.mxu0 0.0
    %1514 = vmatpush1.msra.mxu0 0.0
    %1515 = vmatprep.subr.mxu0 0.0
    %1516 = vmatpush1.msra.mxu0 0.0
    %1517 = vmatprep.subr.mxu0 0.0
    %1518 = vmatpush1.msra.mxu0 0.0
    %1519 = vmatprep.subr.mxu0 0.0
    %1520 = vmatpush1.msra.mxu0 0.0
    %1521 = vmatprep.subr.mxu0 0.0
    %1522 = vmatpush1.msra.mxu0 0.0
    %1523 = vmatprep.subr.mxu0 0.0
    %1524 = vmatpush1.msra.mxu0 0.0
    %1525 = vmatprep.subr.mxu0 0.0
    %1526 = vmatpush1.msra.mxu0 0.0
    %1527 = vmatprep.subr.mxu0 0.0
    %1528 = vmatpush1.msra.mxu0 0.0
    %1529 = vmatprep.subr.mxu0 0.0
    %1530 = vmatpush1.msra.mxu0 0.0
    %1531 = vmatprep.subr.mxu0 0.0
    %1532 = vmatpush1.msra.mxu0 0.0
    %1533 = vmatprep.subr.mxu0 0.0
    %1534 = vmatpush1.msra.mxu0 0.0
    %1535 = vmatprep.subr.mxu0 0.0
    %1536 = vmatpush1.msra.mxu0 0.0
    %1537 = vmatprep.subr.mxu0 0.0
    %1538 = vmatpush1.msra.mxu0 0.0
    %1539 = vmatprep.subr.mxu0 0.0
    %1540 = vmatpush1.msra.mxu0 0.0
    %1541 = vmatprep.subr.mxu0 0.0
    %1542 = vmatpush1.msra.mxu0 0.0
    %1543 = vmatprep.subr.mxu0 0.0
    %1544 = vmatpush1.msra.mxu0 0.0
    %1545 = vmatprep.subr.mxu0 0.0
    %1546 = vmatpush1.msra.mxu0 0.0
    %1547 = vmatprep.subr.mxu0 0.0
    %1548 = vmatpush1.msra.mxu0 0.0
    %1549 = vmatprep.subr.mxu0 0.0
    %1550 = vmatpush1.msra.mxu0 0.0
    %1551 = vmatprep.subr.mxu0 0.0
    %1552 = vmatpush1.msra.mxu0 0.0
    %1553 = vmatprep.subr.mxu0 0.0
    %1554 = vmatpush1.msra.mxu0 0.0
    %1555 = vmatprep.subr.mxu0 0.0
    %1556 = vmatpush1.msra.mxu0 0.0
    %1557 = vmatprep.subr.mxu0 0.0
    %1558 = vmatpush1.msra.mxu0 0.0
    %1559 = vmatprep.subr.mxu0 0.0
    %1560 = vmatpush1.msra.mxu0 0.0
    %1561 = vmatprep.subr.mxu0 0.0
    %1562 = vmatpush1.msra.mxu0 0.0
    %1563 = vmatprep.mubr.f32.mxu0 0.0
    %1564 = vmatmul.mubr.f32.gmra.mrb[0].mxu0 %v1497
    %v1565 = vpop.f32.mrb[0].mxu0
    %v1566 = vadd.f32 0.0, %v1565
    %v1567 = vpop.f32.mrb[0].mxu0
    %1568 = vdwg.mxu0
    %1570 = vrot.lane.b32.xlu0 %v1566, 8
    %v1571 = vpop.permute.xlu0 %1570
    %v1573 = vadd.f32 %v1359, %v1571
    %1575 = vrot.lane.b32.xlu0 %v1573, 120
    %v1576 = vpop.permute.xlu0 %1575
    %s1578 = scalar_lea.vmem [#allocation9], 8
    %1579 = vst.msk [vmem:[%s1578] sm:$0x3] %vm175, %v1576
    %s1580 = scalar_lea.vmem [#allocation10], 8
    %1581 = vst.msk [vmem:[%s1580] sm:$0x3] %vm175, %v1495
    %s1582 = scalar_lea.vmem [#allocation3], 10
    %v1583 = vld [vmem:[%s1582] sm:$0x3]
    %v1584 = vsel %vm74, %v1576, 0
    %1586 = vmatprep.subr.mxu0 0.0
    %1587 = vmatpush1.msra.mxu0 %v68
    %1588 = vmatprep.subr.mxu0 0.0
    %1589 = vmatpush1.msra.mxu0 0.0
    %1590 = vmatprep.subr.mxu0 0.0
    %1591 = vmatpush1.msra.mxu0 0.0
    %1592 = vmatprep.subr.mxu0 0.0
    %1593 = vmatpush1.msra.mxu0 0.0
    %1594 = vmatprep.subr.mxu0 0.0
    %1595 = vmatpush1.msra.mxu0 0.0
    %1596 = vmatprep.subr.mxu0 0.0
    %1597 = vmatpush1.msra.mxu0 0.0
    %1598 = vmatprep.subr.mxu0 0.0
    %1599 = vmatpush1.msra.mxu0 0.0
    %1600 = vmatprep.subr.mxu0 0.0
    %1601 = vmatpush1.msra.mxu0 0.0
    %1602 = vmatprep.subr.mxu0 0.0
    %1603 = vmatpush1.msra.mxu0 0.0
    %1604 = vmatprep.subr.mxu0 0.0
    %1605 = vmatpush1.msra.mxu0 0.0
    %1606 = vmatprep.subr.mxu0 0.0
    %1607 = vmatpush1.msra.mxu0 0.0
    %1608 = vmatprep.subr.mxu0 0.0
    %1609 = vmatpush1.msra.mxu0 0.0
    %1610 = vmatprep.subr.mxu0 0.0
    %1611 = vmatpush1.msra.mxu0 0.0
    %1612 = vmatprep.subr.mxu0 0.0
    %1613 = vmatpush1.msra.mxu0 0.0
    %1614 = vmatprep.subr.mxu0 0.0
    %1615 = vmatpush1.msra.mxu0 0.0
    %1616 = vmatprep.subr.mxu0 0.0
    %1617 = vmatpush1.msra.mxu0 0.0
    %1618 = vmatprep.subr.mxu0 0.0
    %1619 = vmatpush1.msra.mxu0 0.0
    %1620 = vmatprep.subr.mxu0 0.0
    %1621 = vmatpush1.msra.mxu0 0.0
    %1622 = vmatprep.subr.mxu0 0.0
    %1623 = vmatpush1.msra.mxu0 0.0
    %1624 = vmatprep.subr.mxu0 0.0
    %1625 = vmatpush1.msra.mxu0 0.0
    %1626 = vmatprep.subr.mxu0 0.0
    %1627 = vmatpush1.msra.mxu0 0.0
    %1628 = vmatprep.subr.mxu0 0.0
    %1629 = vmatpush1.msra.mxu0 0.0
    %1630 = vmatprep.subr.mxu0 0.0
    %1631 = vmatpush1.msra.mxu0 0.0
    %1632 = vmatprep.subr.mxu0 0.0
    %1633 = vmatpush1.msra.mxu0 0.0
    %1634 = vmatprep.subr.mxu0 0.0
    %1635 = vmatpush1.msra.mxu0 0.0
    %1636 = vmatprep.subr.mxu0 0.0
    %1637 = vmatpush1.msra.mxu0 0.0
    %1638 = vmatprep.subr.mxu0 0.0
    %1639 = vmatpush1.msra.mxu0 0.0
    %1640 = vmatprep.subr.mxu0 0.0
    %1641 = vmatpush1.msra.mxu0 0.0
    %1642 = vmatprep.subr.mxu0 0.0
    %1643 = vmatpush1.msra.mxu0 0.0
    %1644 = vmatprep.subr.mxu0 0.0
    %1645 = vmatpush1.msra.mxu0 0.0
    %1646 = vmatprep.subr.mxu0 0.0
    %1647 = vmatpush1.msra.mxu0 0.0
    %1648 = vmatprep.subr.mxu0 0.0
    %1649 = vmatpush1.msra.mxu0 0.0
    %1650 = vmatprep.mubr.f32.mxu0 0.0
    %1651 = vmatmul.mubr.f32.gmra.mrb[0].mxu0 %v1584
    %v1652 = vpop.f32.mrb[0].mxu0
    %v1653 = vadd.f32 0.0, %v1652
    %v1654 = vpop.f32.mrb[0].mxu0
    %1655 = vdwg.mxu0
    %v1656 = vadd.f32 %v1583, %v1653
    %v1657 = vld [vmem:[#allocation8] sm:$0x1]
    %v1658 = vlaneseq
    %v1659 = vshrl.u32 %v1658, 7
    %v1660 = vsub.s32 0, %v1659
    %v1661 = vrot.slane %v1657, %v1660
    %v1662 = vmul.f32 %v1661, 0.0
    %v1663 = vsel %vm74, %v1662, 0.0
    %1664 = vadd.xlane.f32.xlu0 %v1663
    %v1665 = vpop.xlane.xlu0 %1664
    %v1666 = vadd.f32 %v1656, %v1665
    %v1667 = vtanh.pop %v1666
    %1669 = vset.pattern.permute.xlu0 0
    %1670 = vperm.xlu0 %1669, %v1667
    %v1671 = vpop.permute.xlu0 %1670
    %v1673 = vsel %vm162, %v1671, 0.0
    %v1674 = vld [vmem:[#allocation8 + $0x1] sm:$0x1]
    %v1675 = vlaneseq
    %v1676 = vshrl.u32 %v1675, 7
    %v1677 = vsub.s32 0, %v1676
    %v1678 = vrot.slane %v1674, %v1677
    %v1679 = vmul.f32 %v1673, %v1678
    %v1680 = vsel %vm175, %v1679, 0.0
    %1681 = vadd.xlane.f32.xlu0 %v1680
    %v1682 = vpop.xlane.xlu0 %1681
    %v1683 = vadd.f32 %v1656, %v1682
    %v1684 = vtanh.pop %v1683
    %1686 = vset.pattern.permute.xlu0 1
    %1687 = vperm.xlu0 %1686, %v1684
    %v1688 = vpop.permute.xlu0 %1687
    %v1690 = vsel %vm183, %v1688, %v1673
    %v1691 = vld [vmem:[#allocation8 + $0x2] sm:$0x1]
    %v1692 = vlaneseq
    %v1693 = vshrl.u32 %v1692, 7
    %v1694 = vsub.s32 0, %v1693
    %v1695 = vrot.slane %v1691, %v1694
    %v1696 = vmul.f32 %v1690, %v1695
    %v1697 = vsel %vm175, %v1696, 0.0
    %1698 = vadd.xlane.f32.xlu0 %v1697
    %v1699 = vpop.xlane.xlu0 %1698
    %v1700 = vadd.f32 %v1656, %v1699
    %v1701 = vtanh.pop %v1700
    %1703 = vset.pattern.permute.xlu0 2
    %1704 = vperm.xlu0 %1703, %v1701
    %v1705 = vpop.permute.xlu0 %1704
    %v1707 = vsel %vm203, %v1705, %v1690
    %v1708 = vld [vmem:[#allocation8 + $0x3] sm:$0x1]
    %v1709 = vlaneseq
    %v1710 = vshrl.u32 %v1709, 7
    %v1711 = vsub.s32 0, %v1710
    %v1712 = vrot.slane %v1708, %v1711
    %v1713 = vmul.f32 %v1707, %v1712
    %v1714 = vsel %vm175, %v1713, 0.0
    %1715 = vadd.xlane.f32.xlu0 %v1714
    %v1716 = vpop.xlane.xlu0 %1715
    %v1717 = vadd.f32 %v1656, %v1716
    %v1718 = vtanh.pop %v1717
    %1720 = vset.pattern.permute.xlu0 3
    %1721 = vperm.xlu0 %1720, %v1718
    %v1722 = vpop.permute.xlu0 %1721
    %v1724 = vsel %vm223, %v1722, %v1707
    %v1725 = vld [vmem:[#allocation8 + $0x4] sm:$0x1]
    %v1726 = vlaneseq
    %v1727 = vshrl.u32 %v1726, 7
    %v1728 = vsub.s32 0, %v1727
    %v1729 = vrot.slane %v1725, %v1728
    %v1730 = vmul.f32 %v1724, %v1729
    %v1731 = vsel %vm175, %v1730, 0.0
    %1732 = vadd.xlane.f32.xlu0 %v1731
    %v1733 = vpop.xlane.xlu0 %1732
    %v1734 = vadd.f32 %v1656, %v1733
    %v1735 = vtanh.pop %v1734
    %1737 = vset.pattern.permute.xlu0 4
    %1738 = vperm.xlu0 %1737, %v1735
    %v1739 = vpop.permute.xlu0 %1738
    %v1741 = vsel %vm243, %v1739, %v1724
    %v1742 = vld [vmem:[#allocation8 + $0x5] sm:$0x1]
    %v1743 = vlaneseq
    %v1744 = vshrl.u32 %v1743, 7
    %v1745 = vsub.s32 0, %v1744
    %v1746 = vrot.slane %v1742, %v1745
    %v1747 = vmul.f32 %v1741, %v1746
    %v1748 = vsel %vm175, %v1747, 0.0
    %1749 = vadd.xlane.f32.xlu0 %v1748
    %v1750 = vpop.xlane.xlu0 %1749
    %v1751 = vadd.f32 %v1656, %v1750
    %v1752 = vtanh.pop %v1751
    %1754 = vset.pattern.permute.xlu0 5
    %1755 = vperm.xlu0 %1754, %v1752
    %v1756 = vpop.permute.xlu0 %1755
    %v1758 = vsel %vm263, %v1756, %v1741
    %v1759 = vld [vmem:[#allocation8 + $0x6] sm:$0x1]
    %v1760 = vlaneseq
    %v1761 = vshrl.u32 %v1760, 7
    %v1762 = vsub.s32 0, %v1761
    %v1763 = vrot.slane %v1759, %v1762
    %v1764 = vmul.f32 %v1758, %v1763
    %v1765 = vsel %vm175, %v1764, 0.0
    %1766 = vadd.xlane.f32.xlu0 %v1765
    %v1767 = vpop.xlane.xlu0 %1766
    %v1768 = vadd.f32 %v1656, %v1767
    %v1769 = vtanh.pop %v1768
    %1771 = vset.pattern.permute.xlu0 6
    %1772 = vperm.xlu0 %1771, %v1769
    %v1773 = vpop.permute.xlu0 %1772
    %v1775 = vsel %vm283, %v1773, %v1758
    %v1776 = vld [vmem:[#allocation8 + $0x7] sm:$0x1]
    %v1777 = vlaneseq
    %v1778 = vshrl.u32 %v1777, 7
    %v1779 = vsub.s32 0, %v1778
    %v1780 = vrot.slane %v1776, %v1779
    %v1781 = vmul.f32 %v1775, %v1780
    %v1782 = vsel %vm175, %v1781, 0.0
    %1783 = vadd.xlane.f32.xlu0 %v1782
    %v1784 = vpop.xlane.xlu0 %1783
    %v1785 = vadd.f32 %v1656, %v1784
    %v1786 = vtanh.pop %v1785
    %1788 = vset.pattern.permute.xlu0 7
    %1789 = vperm.xlu0 %1788, %v1786
    %v1790 = vpop.permute.xlu0 %1789
    %v1792 = vsel %vm303, %v1790, %v1775
    %v1794 = vsel %vm74, %v1792, 0
    %1796 = vmatprep.subr.mxu0 0.0
    %1797 = vmatpush1.msra.mxu0 %v69
    %1798 = vmatprep.subr.mxu0 0.0
    %1799 = vmatpush1.msra.mxu0 0.0
    %1800 = vmatprep.subr.mxu0 0.0
    %1801 = vmatpush1.msra.mxu0 0.0
    %1802 = vmatprep.subr.mxu0 0.0
    %1803 = vmatpush1.msra.mxu0 0.0
    %1804 = vmatprep.subr.mxu0 0.0
    %1805 = vmatpush1.msra.mxu0 0.0
    %1806 = vmatprep.subr.mxu0 0.0
    %1807 = vmatpush1.msra.mxu0 0.0
    %1808 = vmatprep.subr.mxu0 0.0
    %1809 = vmatpush1.msra.mxu0 0.0
    %1810 = vmatprep.subr.mxu0 0.0
    %1811 = vmatpush1.msra.mxu0 0.0
    %1812 = vmatprep.subr.mxu0 0.0
    %1813 = vmatpush1.msra.mxu0 0.0
    %1814 = vmatprep.subr.mxu0 0.0
    %1815 = vmatpush1.msra.mxu0 0.0
    %1816 = vmatprep.subr.mxu0 0.0
    %1817 = vmatpush1.msra.mxu0 0.0
    %1818 = vmatprep.subr.mxu0 0.0
    %1819 = vmatpush1.msra.mxu0 0.0
    %1820 = vmatprep.subr.mxu0 0.0
    %1821 = vmatpush1.msra.mxu0 0.0
    %1822 = vmatprep.subr.mxu0 0.0
    %1823 = vmatpush1.msra.mxu0 0.0
    %1824 = vmatprep.subr.mxu0 0.0
    %1825 = vmatpush1.msra.mxu0 0.0
    %1826 = vmatprep.subr.mxu0 0.0
    %1827 = vmatpush1.msra.mxu0 0.0
    %1828 = vmatprep.subr.mxu0 0.0
    %1829 = vmatpush1.msra.mxu0 0.0
    %1830 = vmatprep.subr.mxu0 0.0
    %1831 = vmatpush1.msra.mxu0 0.0
    %1832 = vmatprep.subr.mxu0 0.0
    %1833 = vmatpush1.msra.mxu0 0.0
    %1834 = vmatprep.subr.mxu0 0.0
    %1835 = vmatpush1.msra.mxu0 0.0
    %1836 = vmatprep.subr.mxu0 0.0
    %1837 = vmatpush1.msra.mxu0 0.0
    %1838 = vmatprep.subr.mxu0 0.0
    %1839 = vmatpush1.msra.mxu0 0.0
    %1840 = vmatprep.subr.mxu0 0.0
    %1841 = vmatpush1.msra.mxu0 0.0
    %1842 = vmatprep.subr.mxu0 0.0
    %1843 = vmatpush1.msra.mxu0 0.0
    %1844 = vmatprep.subr.mxu0 0.0
    %1845 = vmatpush1.msra.mxu0 0.0
    %1846 = vmatprep.subr.mxu0 0.0
    %1847 = vmatpush1.msra.mxu0 0.0
    %1848 = vmatprep.subr.mxu0 0.0
    %1849 = vmatpush1.msra.mxu0 0.0
    %1850 = vmatprep.subr.mxu0 0.0
    %1851 = vmatpush1.msra.mxu0 0.0
    %1852 = vmatprep.subr.mxu0 0.0
    %1853 = vmatpush1.msra.mxu0 0.0
    %1854 = vmatprep.subr.mxu0 0.0
    %1855 = vmatpush1.msra.mxu0 0.0
    %1856 = vmatprep.subr.mxu0 0.0
    %1857 = vmatpush1.msra.mxu0 0.0
    %1858 = vmatprep.subr.mxu0 0.0
    %1859 = vmatpush1.msra.mxu0 0.0
    %1860 = vmatprep.mubr.f32.mxu0 0.0
    %1861 = vmatmul.mubr.f32.gmra.mrb[0].mxu0 %v1794
    %v1862 = vpop.f32.mrb[0].mxu0
    %v1863 = vadd.f32 0.0, %v1862
    %v1864 = vpop.f32.mrb[0].mxu0
    %1865 = vdwg.mxu0
    %1867 = vrot.lane.b32.xlu0 %v1863, 8
    %v1868 = vpop.permute.xlu0 %1867
    %v1870 = vadd.f32 %v1656, %v1868
    %1872 = vrot.lane.b32.xlu0 %v1870, 120
    %v1873 = vpop.permute.xlu0 %1872
    %s1875 = scalar_lea.vmem [#allocation9], 10
    %1876 = vst.msk [vmem:[%s1875] sm:$0x3] %vm175, %v1873
    %s1877 = scalar_lea.vmem [#allocation10], 10
    %1878 = vst.msk [vmem:[%s1877] sm:$0x3] %vm175, %v1792
    %s1879 = scalar_lea.vmem [#allocation3], 12
    %v1880 = vld [vmem:[%s1879] sm:$0x3]
    %v1881 = vsel %vm74, %v1873, 0
    %1883 = vmatprep.subr.mxu0 0.0
    %1884 = vmatpush1.msra.mxu0 %v68
    %1885 = vmatprep.subr.mxu0 0.0
    %1886 = vmatpush1.msra.mxu0 0.0
    %1887 = vmatprep.subr.mxu0 0.0
    %1888 = vmatpush1.msra.mxu0 0.0
    %1889 = vmatprep.subr.mxu0 0.0
    %1890 = vmatpush1.msra.mxu0 0.0
    %1891 = vmatprep.subr.mxu0 0.0
    %1892 = vmatpush1.msra.mxu0 0.0
    %1893 = vmatprep.subr.mxu0 0.0
    %1894 = vmatpush1.msra.mxu0 0.0
    %1895 = vmatprep.subr.mxu0 0.0
    %1896 = vmatpush1.msra.mxu0 0.0
    %1897 = vmatprep.subr.mxu0 0.0
    %1898 = vmatpush1.msra.mxu0 0.0
    %1899 = vmatprep.subr.mxu0 0.0
    %1900 = vmatpush1.msra.mxu0 0.0
    %1901 = vmatprep.subr.mxu0 0.0
    %1902 = vmatpush1.msra.mxu0 0.0
    %1903 = vmatprep.subr.mxu0 0.0
    %1904 = vmatpush1.msra.mxu0 0.0
    %1905 = vmatprep.subr.mxu0 0.0
    %1906 = vmatpush1.msra.mxu0 0.0
    %1907 = vmatprep.subr.mxu0 0.0
    %1908 = vmatpush1.msra.mxu0 0.0
    %1909 = vmatprep.subr.mxu0 0.0
    %1910 = vmatpush1.msra.mxu0 0.0
    %1911 = vmatprep.subr.mxu0 0.0
    %1912 = vmatpush1.msra.mxu0 0.0
    %1913 = vmatprep.subr.mxu0 0.0
    %1914 = vmatpush1.msra.mxu0 0.0
    %1915 = vmatprep.subr.mxu0 0.0
    %1916 = vmatpush1.msra.mxu0 0.0
    %1917 = vmatprep.subr.mxu0 0.0
    %1918 = vmatpush1.msra.mxu0 0.0
    %1919 = vmatprep.subr.mxu0 0.0
    %1920 = vmatpush1.msra.mxu0 0.0
    %1921 = vmatprep.subr.mxu0 0.0
    %1922 = vmatpush1.msra.mxu0 0.0
    %1923 = vmatprep.subr.mxu0 0.0
    %1924 = vmatpush1.msra.mxu0 0.0
    %1925 = vmatprep.subr.mxu0 0.0
    %1926 = vmatpush1.msra.mxu0 0.0
    %1927 = vmatprep.subr.mxu0 0.0
    %1928 = vmatpush1.msra.mxu0 0.0
    %1929 = vmatprep.subr.mxu0 0.0
    %1930 = vmatpush1.msra.mxu0 0.0
    %1931 = vmatprep.subr.mxu0 0.0
    %1932 = vmatpush1.msra.mxu0 0.0
    %1933 = vmatprep.subr.mxu0 0.0
    %1934 = vmatpush1.msra.mxu0 0.0
    %1935 = vmatprep.subr.mxu0 0.0
    %1936 = vmatpush1.msra.mxu0 0.0
    %1937 = vmatprep.subr.mxu0 0.0
    %1938 = vmatpush1.msra.mxu0 0.0
    %1939 = vmatprep.subr.mxu0 0.0
    %1940 = vmatpush1.msra.mxu0 0.0
    %1941 = vmatprep.subr.mxu0 0.0
    %1942 = vmatpush1.msra.mxu0 0.0
    %1943 = vmatprep.subr.mxu0 0.0
    %1944 = vmatpush1.msra.mxu0 0.0
    %1945 = vmatprep.subr.mxu0 0.0
    %1946 = vmatpush1.msra.mxu0 0.0
    %1947 = vmatprep.mubr.f32.mxu0 0.0
    %1948 = vmatmul.mubr.f32.gmra.mrb[0].mxu0 %v1881
    %v1949 = vpop.f32.mrb[0].mxu0
    %v1950 = vadd.f32 0.0, %v1949
    %v1951 = vpop.f32.mrb[0].mxu0
    %1952 = vdwg.mxu0
    %v1953 = vadd.f32 %v1880, %v1950
    %v1954 = vld [vmem:[#allocation8] sm:$0x1]
    %v1955 = vlaneseq
    %v1956 = vshrl.u32 %v1955, 7
    %v1957 = vsub.s32 0, %v1956
    %v1958 = vrot.slane %v1954, %v1957
    %v1959 = vmul.f32 %v1958, 0.0
    %v1960 = vsel %vm74, %v1959, 0.0
    %1961 = vadd.xlane.f32.xlu0 %v1960
    %v1962 = vpop.xlane.xlu0 %1961
    %v1963 = vadd.f32 %v1953, %v1962
    %v1964 = vtanh.pop %v1963
    %1966 = vset.pattern.permute.xlu0 0
    %1967 = vperm.xlu0 %1966, %v1964
    %v1968 = vpop.permute.xlu0 %1967
    %v1970 = vsel %vm162, %v1968, 0.0
    %v1971 = vld [vmem:[#allocation8 + $0x1] sm:$0x1]
    %v1972 = vlaneseq
    %v1973 = vshrl.u32 %v1972, 7
    %v1974 = vsub.s32 0, %v1973
    %v1975 = vrot.slane %v1971, %v1974
    %v1976 = vmul.f32 %v1970, %v1975
    %v1977 = vsel %vm175, %v1976, 0.0
    %1978 = vadd.xlane.f32.xlu0 %v1977
    %v1979 = vpop.xlane.xlu0 %1978
    %v1980 = vadd.f32 %v1953, %v1979
    %v1981 = vtanh.pop %v1980
    %1983 = vset.pattern.permute.xlu0 1
    %1984 = vperm.xlu0 %1983, %v1981
    %v1985 = vpop.permute.xlu0 %1984
    %v1987 = vsel %vm183, %v1985, %v1970
    %v1988 = vld [vmem:[#allocation8 + $0x2] sm:$0x1]
    %v1989 = vlaneseq
    %v1990 = vshrl.u32 %v1989, 7
    %v1991 = vsub.s32 0, %v1990
    %v1992 = vrot.slane %v1988, %v1991
    %v1993 = vmul.f32 %v1987, %v1992
    %v1994 = vsel %vm175, %v1993, 0.0
    %1995 = vadd.xlane.f32.xlu0 %v1994
    %v1996 = vpop.xlane.xlu0 %1995
    %v1997 = vadd.f32 %v1953, %v1996
    %v1998 = vtanh.pop %v1997
    %2000 = vset.pattern.permute.xlu0 2
    %2001 = vperm.xlu0 %2000, %v1998
    %v2002 = vpop.permute.xlu0 %2001
    %v2004 = vsel %vm203, %v2002, %v1987
    %v2005 = vld [vmem:[#allocation8 + $0x3] sm:$0x1]
    %v2006 = vlaneseq
    %v2007 = vshrl.u32 %v2006, 7
    %v2008 = vsub.s32 0, %v2007
    %v2009 = vrot.slane %v2005, %v2008
    %v2010 = vmul.f32 %v2004, %v2009
    %v2011 = vsel %vm175, %v2010, 0.0
    %2012 = vadd.xlane.f32.xlu0 %v2011
    %v2013 = vpop.xlane.xlu0 %2012
    %v2014 = vadd.f32 %v1953, %v2013
    %v2015 = vtanh.pop %v2014
    %2017 = vset.pattern.permute.xlu0 3
    %2018 = vperm.xlu0 %2017, %v2015
    %v2019 = vpop.permute.xlu0 %2018
    %v2021 = vsel %vm223, %v2019, %v2004
    %v2022 = vld [vmem:[#allocation8 + $0x4] sm:$0x1]
    %v2023 = vlaneseq
    %v2024 = vshrl.u32 %v2023, 7
    %v2025 = vsub.s32 0, %v2024
    %v2026 = vrot.slane %v2022, %v2025
    %v2027 = vmul.f32 %v2021, %v2026
    %v2028 = vsel %vm175, %v2027, 0.0
    %2029 = vadd.xlane.f32.xlu0 %v2028
    %v2030 = vpop.xlane.xlu0 %2029
    %v2031 = vadd.f32 %v1953, %v2030
    %v2032 = vtanh.pop %v2031
    %2034 = vset.pattern.permute.xlu0 4
    %2035 = vperm.xlu0 %2034, %v2032
    %v2036 = vpop.permute.xlu0 %2035
    %v2038 = vsel %vm243, %v2036, %v2021
    %v2039 = vld [vmem:[#allocation8 + $0x5] sm:$0x1]
    %v2040 = vlaneseq
    %v2041 = vshrl.u32 %v2040, 7
    %v2042 = vsub.s32 0, %v2041
    %v2043 = vrot.slane %v2039, %v2042
    %v2044 = vmul.f32 %v2038, %v2043
    %v2045 = vsel %vm175, %v2044, 0.0
    %2046 = vadd.xlane.f32.xlu0 %v2045
    %v2047 = vpop.xlane.xlu0 %2046
    %v2048 = vadd.f32 %v1953, %v2047
    %v2049 = vtanh.pop %v2048
    %2051 = vset.pattern.permute.xlu0 5
    %2052 = vperm.xlu0 %2051, %v2049
    %v2053 = vpop.permute.xlu0 %2052
    %v2055 = vsel %vm263, %v2053, %v2038
    %v2056 = vld [vmem:[#allocation8 + $0x6] sm:$0x1]
    %v2057 = vlaneseq
    %v2058 = vshrl.u32 %v2057, 7
    %v2059 = vsub.s32 0, %v2058
    %v2060 = vrot.slane %v2056, %v2059
    %v2061 = vmul.f32 %v2055, %v2060
    %v2062 = vsel %vm175, %v2061, 0.0
    %2063 = vadd.xlane.f32.xlu0 %v2062
    %v2064 = vpop.xlane.xlu0 %2063
    %v2065 = vadd.f32 %v1953, %v2064
    %v2066 = vtanh.pop %v2065
    %2068 = vset.pattern.permute.xlu0 6
    %2069 = vperm.xlu0 %2068, %v2066
    %v2070 = vpop.permute.xlu0 %2069
    %v2072 = vsel %vm283, %v2070, %v2055
    %v2073 = vld [vmem:[#allocation8 + $0x7] sm:$0x1]
    %v2074 = vlaneseq
    %v2075 = vshrl.u32 %v2074, 7
    %v2076 = vsub.s32 0, %v2075
    %v2077 = vrot.slane %v2073, %v2076
    %v2078 = vmul.f32 %v2072, %v2077
    %v2079 = vsel %vm175, %v2078, 0.0
    %2080 = vadd.xlane.f32.xlu0 %v2079
    %v2081 = vpop.xlane.xlu0 %2080
    %v2082 = vadd.f32 %v1953, %v2081
    %v2083 = vtanh.pop %v2082
    %2085 = vset.pattern.permute.xlu0 7
    %2086 = vperm.xlu0 %2085, %v2083
    %v2087 = vpop.permute.xlu0 %2086
    %v2089 = vsel %vm303, %v2087, %v2072
    %v2091 = vsel %vm74, %v2089, 0
    %2093 = vmatprep.subr.mxu0 0.0
    %2094 = vmatpush1.msra.mxu0 %v69
    %2095 = vmatprep.subr.mxu0 0.0
    %2096 = vmatpush1.msra.mxu0 0.0
    %2097 = vmatprep.subr.mxu0 0.0
    %2098 = vmatpush1.msra.mxu0 0.0
    %2099 = vmatprep.subr.mxu0 0.0
    %2100 = vmatpush1.msra.mxu0 0.0
    %2101 = vmatprep.subr.mxu0 0.0
    %2102 = vmatpush1.msra.mxu0 0.0
    %2103 = vmatprep.subr.mxu0 0.0
    %2104 = vmatpush1.msra.mxu0 0.0
    %2105 = vmatprep.subr.mxu0 0.0
    %2106 = vmatpush1.msra.mxu0 0.0
    %2107 = vmatprep.subr.mxu0 0.0
    %2108 = vmatpush1.msra.mxu0 0.0
    %2109 = vmatprep.subr.mxu0 0.0
    %2110 = vmatpush1.msra.mxu0 0.0
    %2111 = vmatprep.subr.mxu0 0.0
    %2112 = vmatpush1.msra.mxu0 0.0
    %2113 = vmatprep.subr.mxu0 0.0
    %2114 = vmatpush1.msra.mxu0 0.0
    %2115 = vmatprep.subr.mxu0 0.0
    %2116 = vmatpush1.msra.mxu0 0.0
    %2117 = vmatprep.subr.mxu0 0.0
    %2118 = vmatpush1.msra.mxu0 0.0
    %2119 = vmatprep.subr.mxu0 0.0
    %2120 = vmatpush1.msra.mxu0 0.0
    %2121 = vmatprep.subr.mxu0 0.0
    %2122 = vmatpush1.msra.mxu0 0.0
    %2123 = vmatprep.subr.mxu0 0.0
    %2124 = vmatpush1.msra.mxu0 0.0
    %2125 = vmatprep.subr.mxu0 0.0
    %2126 = vmatpush1.msra.mxu0 0.0
    %2127 = vmatprep.subr.mxu0 0.0
    %2128 = vmatpush1.msra.mxu0 0.0
    %2129 = vmatprep.subr.mxu0 0.0
    %2130 = vmatpush1.msra.mxu0 0.0
    %2131 = vmatprep.subr.mxu0 0.0
    %2132 = vmatpush1.msra.mxu0 0.0
    %2133 = vmatprep.subr.mxu0 0.0
    %2134 = vmatpush1.msra.mxu0 0.0
    %2135 = vmatprep.subr.mxu0 0.0
    %2136 = vmatpush1.msra.mxu0 0.0
    %2137 = vmatprep.subr.mxu0 0.0
    %2138 = vmatpush1.msra.mxu0 0.0
    %2139 = vmatprep.subr.mxu0 0.0
    %2140 = vmatpush1.msra.mxu0 0.0
    %2141 = vmatprep.subr.mxu0 0.0
    %2142 = vmatpush1.msra.mxu0 0.0
    %2143 = vmatprep.subr.mxu0 0.0
    %2144 = vmatpush1.msra.mxu0 0.0
    %2145 = vmatprep.subr.mxu0 0.0
    %2146 = vmatpush1.msra.mxu0 0.0
    %2147 = vmatprep.subr.mxu0 0.0
    %2148 = vmatpush1.msra.mxu0 0.0
    %2149 = vmatprep.subr.mxu0 0.0
    %2150 = vmatpush1.msra.mxu0 0.0
    %2151 = vmatprep.subr.mxu0 0.0
    %2152 = vmatpush1.msra.mxu0 0.0
    %2153 = vmatprep.subr.mxu0 0.0
    %2154 = vmatpush1.msra.mxu0 0.0
    %2155 = vmatprep.subr.mxu0 0.0
    %2156 = vmatpush1.msra.mxu0 0.0
    %2157 = vmatprep.mubr.f32.mxu0 0.0
    %2158 = vmatmul.mubr.f32.gmra.mrb[0].mxu0 %v2091
    %v2159 = vpop.f32.mrb[0].mxu0
    %v2160 = vadd.f32 0.0, %v2159
    %v2161 = vpop.f32.mrb[0].mxu0
    %2162 = vdwg.mxu0
    %2164 = vrot.lane.b32.xlu0 %v2160, 8
    %v2165 = vpop.permute.xlu0 %2164
    %v2167 = vadd.f32 %v1953, %v2165
    %2169 = vrot.lane.b32.xlu0 %v2167, 120
    %v2170 = vpop.permute.xlu0 %2169
    %s2172 = scalar_lea.vmem [#allocation9], 12
    %2173 = vst.msk [vmem:[%s2172] sm:$0x3] %vm175, %v2170
    %s2174 = scalar_lea.vmem [#allocation10], 12
    %2175 = vst.msk [vmem:[%s2174] sm:$0x3] %vm175, %v2089
    %2176 = vst.msk [vmem:[#allocation2] sm:$0x3] %vm175, %v2170
    // Predicated region
    $region38: #{tpu_custom_call.1} parent=1 // pred_check
      _
    $region39: #{tpu_custom_call.1} parent=1 // pred_check_branch
      %2178 = sbr.rel (0) target = $region41
    $region40: #{tpu_custom_call.1} parent=1 // pred_region
      %s2180 = ssub.s32 224, 224
      %2181 = vsyncadd [#allocation5], %s2180
      %s2182 = sshll.u32 [#allocation9], 4
      %s2183 = int_to_ptr.vmem [resolvable:$true] %s2182
      %2188 = dma.vmem_to_hbm [thread:$0]  %s2183, 224, %s5, [#allocation5], 32, 32, 2
    $region41: #{tpu_custom_call.1} parent=1 // pred_fallthru
      _
    // Predicated region
    $region42: #{tpu_custom_call.1} parent=1 // pred_check
      _
    $region43: #{tpu_custom_call.1} parent=1 // pred_check_branch
      %2190 = sbr.rel (0) target = $region45
    $region44: #{tpu_custom_call.1} parent=1 // pred_region
      %s2192 = ssub.s32 224, 224
      %2193 = vsyncadd [#allocation11], %s2192
      %s2194 = sshll.u32 [#allocation10], 4
      %s2195 = int_to_ptr.vmem [resolvable:$true] %s2194
      %2200 = dma.vmem_to_hbm [thread:$0]  %s2195, 224, %s6, [#allocation11], 32, 32, 2
    $region45: #{tpu_custom_call.1} parent=1 // pred_fallthru
      _
    // Predicated region
    $region46: #{tpu_custom_call.1} parent=1 // pred_check
      _
    $region47: #{tpu_custom_call.1} parent=1 // pred_check_branch
      %2202 = sbr.rel (0) target = $region49
    $region48: #{tpu_custom_call.1} parent=1 // pred_region
      %2203 = dma.done [#allocation5], 224
    $region49: #{tpu_custom_call.1} parent=1 // pred_fallthru
      _
    // Predicated region
    $region50: #{tpu_custom_call.1} parent=1 // pred_check
      _
    $region51: #{tpu_custom_call.1} parent=1 // pred_check_branch
      %2205 = sbr.rel (0) target = $region53
    $region52: #{tpu_custom_call.1} parent=1 // pred_region
      %2206 = dma.done [#allocation11], 224
    $region53: #{tpu_custom_call.1} parent=1 // pred_fallthru
      _
    %2207 = vsyncpa [#allocation4], 1
    %2208 = vsyncpa [#allocation7], 1
    %2209 = vsyncpa [#allocation5], 1
    %2210 = vsyncpa [#allocation11], 1

</llo_original>
